<compile_context>
chip_gen: v7x
topology: tpu7x:2x2x1
jax: 0.10.0
libtpu: 0.0.40
codegen_flags: <defaults>
</compile_context>

<pallas_src>
import jax
import jax.numpy as jnp
from jax import lax
from jax.experimental import pallas as pl
from jax.experimental.pallas import tpu as pltpu

INPUT_SIZE = 306
HIDDEN_SIZE = 500
OUT_SIZE = 2

D_PAD = 384   # 306 -> 3*128
H_PAD = 512   # 500 -> 4*128
O_PAD = 128   # 2   -> 1*128 (lane-dense output; sliced in the wrapper)
B_PAD = 8     # batch padded to one full f32 sublane tile

SCALE = 1e16  # folded into W_ih in prepare_params (never captured in-kernel)


def rnn_fc_kernel(x_ref, h0_ref, wih_ref, whh_ref, wfc_ref, bfc_ref, out_ref):
    # x_ref:  (T*B_PAD, D_PAD)  time-major 2-D slab, compute dtype (f32 or bf16)
    # h0_ref: (B_PAD, H_PAD)    f32 initial hidden (zero-padded)
    # wih_ref:(D_PAD, H_PAD)    (W_ih^T * SCALE), compute dtype, zero-padded
    # whh_ref:(H_PAD, H_PAD)    W_hh^T, compute dtype, zero-padded
    # wfc_ref:(H_PAD, O_PAD)    W_fc^T, f32, zero-padded
    # bfc_ref:(B_PAD, O_PAD)    FC bias (pre-broadcast), f32, zero-padded
    # out_ref:(B_PAD, O_PAD)    f32
    TB, _ = x_ref.shape
    Bp = B_PAD
    T = TB // Bp

    wih = wih_ref[...]
    whh = whh_ref[...]
    cdt = whh.dtype  # matmul operand dtype; accumulation stays f32

    def xi_proj(t):
        # Static 8-row slice of the time-major slab -> one small MXU matmul.
        return jnp.dot(x_ref[t * Bp:(t + 1) * Bp, :], wih,
                       preferred_element_type=jnp.float32)

    h = h0_ref[...]            # f32
    xi = xi_proj(0)

    # Fully unrolled recurrence (T static).  xi[t+1] is independent of h, so its
    # MXU pushes interleave with / hide under step t's W_hh drain and EUP tanh.
    for t in range(T):
        hh = jnp.dot(h.astype(cdt), whh, preferred_element_type=jnp.float32)
        xi_next = xi_proj(t + 1) if (t + 1) < T else None
        h = jnp.tanh(xi + hh)                     # f32 add + f32 tanh (v5e-safe)
        if xi_next is not None:
            xi = xi_next

    out_ref[...] = (
        jnp.dot(h, wfc_ref[...], preferred_element_type=jnp.float32)
        + bfc_ref[...]
    )


def prepare_params(w_ih, w_hh, w_fc, b_fc, scale=SCALE, compute_dtype=jnp.float32):
    """One-time weight prep (pad / transpose / fold scale).  Keep off the hot path."""
    wih_t = jnp.zeros((D_PAD, H_PAD), compute_dtype)
    wih_t = wih_t.at[:INPUT_SIZE, :HIDDEN_SIZE].set(
        (w_ih.T * jnp.float32(scale)).astype(compute_dtype))
    whh_t = jnp.zeros((H_PAD, H_PAD), compute_dtype)
    whh_t = whh_t.at[:HIDDEN_SIZE, :HIDDEN_SIZE].set(w_hh.T.astype(compute_dtype))
    # Final FC kept in f32 regardless of compute dtype.
    wfc_t = jnp.zeros((H_PAD, O_PAD), jnp.float32)
    wfc_t = wfc_t.at[:HIDDEN_SIZE, :OUT_SIZE].set(w_fc.T)
    bfc_p = jnp.zeros((B_PAD, O_PAD), jnp.float32).at[:, :OUT_SIZE].set(b_fc[None, :])
    return {"wih": wih_t, "whh": whh_t, "wfc": wfc_t, "bfc": bfc_p}


@jax.jit
def model_forward(x, h0, params):
    """x: (B, T, 306) f32, h0: (B, 500) f32, params from prepare_params; -> (B, 2) f32."""
    B, T, D = x.shape
    assert D == INPUT_SIZE
    assert B <= B_PAD
    cdt = params["wih"].dtype

    # Per-call glue: only the activations are padded / laid out here.
    x_t = jnp.transpose(x, (1, 0, 2)).astype(cdt)                       # (T, B, D)
    x_pad = jnp.zeros((T, B_PAD, D_PAD), cdt).at[:, :B, :INPUT_SIZE].set(x_t)
    x_slab = x_pad.reshape(T * B_PAD, D_PAD)                            # 2-D slab
    h0_pad = jnp.zeros((B_PAD, H_PAD), jnp.float32).at[:B, :HIDDEN_SIZE].set(h0)

    vmem = pl.BlockSpec(memory_space=pltpu.MemorySpace.VMEM)
    out_pad = pl.pallas_call(
        rnn_fc_kernel,
        out_shape=jax.ShapeDtypeStruct((B_PAD, O_PAD), jnp.float32),
        in_specs=[vmem] * 6,
        out_specs=vmem,
    )(x_slab, h0_pad, params["wih"], params["whh"], params["wfc"], params["bfc"])

    return out_pad[:B, :OUT_SIZE]


def reference_forward(x, h0, w_ih, w_hh, w_fc, b_fc, scale=SCALE):
    """Pure-JAX reference matching PyTorch nn.RNN (tanh, bias=False) + Linear."""
    xs = x * jnp.float32(scale)
    hp = lax.Precision.HIGHEST

    def step(h, x_t):
        h_new = jnp.tanh(
            jnp.dot(x_t, w_ih.T, precision=hp) + jnp.dot(h, w_hh.T, precision=hp)
        )
        return h_new, None

    h_final, _ = lax.scan(step, h0, jnp.transpose(xs, (1, 0, 2)))
    return jnp.dot(h_final, w_fc.T, precision=hp) + b_fc


if __name__ == "__main__":
    key = jax.random.PRNGKey(0)
    k_x, k_h0, k_wih, k_whh, k_wfc, k_bfc = jax.random.split(key, 6)

    B, T = 2, 8
    x = jax.random.normal(k_x, (B, T, INPUT_SIZE), jnp.float32)
    # torch.randn(1, B, 500).view(-1, 500) -> (B, 500); drawn deterministically here.
    h0 = jax.random.normal(k_h0, (B, HIDDEN_SIZE), jnp.float32)

    bound = 1.0 / jnp.sqrt(jnp.float32(HIDDEN_SIZE))
    w_ih = jax.random.uniform(k_wih, (HIDDEN_SIZE, INPUT_SIZE), jnp.float32, -bound, bound)
    w_hh = jax.random.uniform(k_whh, (HIDDEN_SIZE, HIDDEN_SIZE), jnp.float32, -bound, bound)
    w_fc = jax.random.uniform(k_wfc, (OUT_SIZE, HIDDEN_SIZE), jnp.float32, -bound, bound)
    b_fc = jax.random.uniform(k_bfc, (OUT_SIZE,), jnp.float32, -bound, bound)

    # Test 1: module semantics (scale = 1e16; tanh saturates, matches PyTorch forward).
    params = prepare_params(w_ih, w_hh, w_fc, b_fc, scale=SCALE)
    out = jax.block_until_ready(model_forward(x, h0, params))
    assert out.shape == (B, OUT_SIZE), out.shape
    ref = jax.block_until_ready(reference_forward(x, h0, w_ih, w_hh, w_fc, b_fc, scale=SCALE))
    assert jnp.allclose(out, ref, rtol=1e-3, atol=1e-3), (out, ref)

    # Test 2: scale = 1.0 exercises the real f32 matmul precision path
    # (non-saturated tanh), guarding against regressions hidden by saturation.
    params1 = prepare_params(w_ih, w_hh, w_fc, b_fc, scale=1.0)
    out1 = jax.block_until_ready(model_forward(x, h0, params1))
    ref1 = jax.block_until_ready(reference_forward(x, h0, w_ih, w_hh, w_fc, b_fc, scale=1.0))
    assert jnp.allclose(out1, ref1, rtol=1e-3, atol=1e-3), (out1, ref1)

    # Test 3: bf16 matmul operands (f32 accumulate / f32 tanh / f32 FC) — the
    # v6e/v7x fast path from the review; checked at a looser tolerance.
    params_bf = prepare_params(w_ih, w_hh, w_fc, b_fc, scale=1.0,
                               compute_dtype=jnp.bfloat16)
    out_bf = jax.block_until_ready(model_forward(x, h0, params_bf))
    assert jnp.allclose(out_bf, ref1, rtol=5e-2, atol=5e-2), (out_bf, ref1)

    print("KERNEL_OK")
</pallas_src>

<mosaic_0001>
module attributes {stable_mosaic.version = 11 : i64} {
  func.func @rnn_fc_kernel(%arg0: memref<64x384xf32, #tpu.memory_space<vmem>>, %arg1: memref<8x512xf32, #tpu.memory_space<vmem>>, %arg2: memref<384x512xf32, #tpu.memory_space<vmem>>, %arg3: memref<512x512xf32, #tpu.memory_space<vmem>>, %arg4: memref<512x128xf32, #tpu.memory_space<vmem>>, %arg5: memref<8x128xf32, #tpu.memory_space<vmem>>, %arg6: memref<8x128xf32, #tpu.memory_space<vmem>>) attributes {dimension_semantics = [], scalar_prefetch = 0 : i64, scratch_operands = 0 : i64, tpu.core_type = #tpu.core_type<tc>} {
    %c0 = arith.constant 0 : index
    %c0_0 = arith.constant 0 : index
    %0 = vector.load %arg2[%c0, %c0_0] : memref<384x512xf32, #tpu.memory_space<vmem>>, vector<384x512xf32>
    %c0_1 = arith.constant 0 : index
    %c0_2 = arith.constant 0 : index
    %1 = vector.load %arg3[%c0_1, %c0_2] : memref<512x512xf32, #tpu.memory_space<vmem>>, vector<512x512xf32>
    %c0_3 = arith.constant 0 : index
    %c0_4 = arith.constant 0 : index
    %2 = vector.load %arg1[%c0_3, %c0_4] : memref<8x512xf32, #tpu.memory_space<vmem>>, vector<8x512xf32>
    %c0_5 = arith.constant 0 : index
    %c0_6 = arith.constant 0 : index
    %3 = vector.load %arg0[%c0_5, %c0_6] : memref<64x384xf32, #tpu.memory_space<vmem>>, vector<8x384xf32>
    %cst = arith.constant dense<0.000000e+00> : vector<8x512xf32>
    %4 = tpu.matmul %3, %0, %cst {dimension_numbers = #tpu.dot_dimension_numbers<[1], [0], [0], [1], [0, 0, 1, 1], [], []>} : vector<8x384xf32>, vector<384x512xf32>, vector<8x512xf32> -> vector<8x512xf32>
    %cst_7 = arith.constant dense<0.000000e+00> : vector<8x512xf32>
    %5 = tpu.matmul %2, %1, %cst_7 {dimension_numbers = #tpu.dot_dimension_numbers<[1], [0], [0], [1], [0, 0, 1, 1], [], []>} : vector<8x512xf32>, vector<512x512xf32>, vector<8x512xf32> -> vector<8x512xf32>
    %c8 = arith.constant 8 : index
    %c0_8 = arith.constant 0 : index
    %6 = vector.load %arg0[%c8, %c0_8] : memref<64x384xf32, #tpu.memory_space<vmem>>, vector<8x384xf32>
    %cst_9 = arith.constant dense<0.000000e+00> : vector<8x512xf32>
    %7 = tpu.matmul %6, %0, %cst_9 {dimension_numbers = #tpu.dot_dimension_numbers<[1], [0], [0], [1], [0, 0, 1, 1], [], []>} : vector<8x384xf32>, vector<384x512xf32>, vector<8x512xf32> -> vector<8x512xf32>
    %8 = arith.addf %4, %5 : vector<8x512xf32>
    %9 = math.tanh %8 : vector<8x512xf32>
    %cst_10 = arith.constant dense<0.000000e+00> : vector<8x512xf32>
    %10 = tpu.matmul %9, %1, %cst_10 {dimension_numbers = #tpu.dot_dimension_numbers<[1], [0], [0], [1], [0, 0, 1, 1], [], []>} : vector<8x512xf32>, vector<512x512xf32>, vector<8x512xf32> -> vector<8x512xf32>
    %c16 = arith.constant 16 : index
    %c0_11 = arith.constant 0 : index
    %11 = vector.load %arg0[%c16, %c0_11] : memref<64x384xf32, #tpu.memory_space<vmem>>, vector<8x384xf32>
    %cst_12 = arith.constant dense<0.000000e+00> : vector<8x512xf32>
    %12 = tpu.matmul %11, %0, %cst_12 {dimension_numbers = #tpu.dot_dimension_numbers<[1], [0], [0], [1], [0, 0, 1, 1], [], []>} : vector<8x384xf32>, vector<384x512xf32>, vector<8x512xf32> -> vector<8x512xf32>
    %13 = arith.addf %7, %10 : vector<8x512xf32>
    %14 = math.tanh %13 : vector<8x512xf32>
    %cst_13 = arith.constant dense<0.000000e+00> : vector<8x512xf32>
    %15 = tpu.matmul %14, %1, %cst_13 {dimension_numbers = #tpu.dot_dimension_numbers<[1], [0], [0], [1], [0, 0, 1, 1], [], []>} : vector<8x512xf32>, vector<512x512xf32>, vector<8x512xf32> -> vector<8x512xf32>
    %c24 = arith.constant 24 : index
    %c0_14 = arith.constant 0 : index
    %16 = vector.load %arg0[%c24, %c0_14] : memref<64x384xf32, #tpu.memory_space<vmem>>, vector<8x384xf32>
    %cst_15 = arith.constant dense<0.000000e+00> : vector<8x512xf32>
    %17 = tpu.matmul %16, %0, %cst_15 {dimension_numbers = #tpu.dot_dimension_numbers<[1], [0], [0], [1], [0, 0, 1, 1], [], []>} : vector<8x384xf32>, vector<384x512xf32>, vector<8x512xf32> -> vector<8x512xf32>
    %18 = arith.addf %12, %15 : vector<8x512xf32>
    %19 = math.tanh %18 : vector<8x512xf32>
    %cst_16 = arith.constant dense<0.000000e+00> : vector<8x512xf32>
    %20 = tpu.matmul %19, %1, %cst_16 {dimension_numbers = #tpu.dot_dimension_numbers<[1], [0], [0], [1], [0, 0, 1, 1], [], []>} : vector<8x512xf32>, vector<512x512xf32>, vector<8x512xf32> -> vector<8x512xf32>
    %c32 = arith.constant 32 : index
    %c0_17 = arith.constant 0 : index
    %21 = vector.load %arg0[%c32, %c0_17] : memref<64x384xf32, #tpu.memory_space<vmem>>, vector<8x384xf32>
    %cst_18 = arith.constant dense<0.000000e+00> : vector<8x512xf32>
    %22 = tpu.matmul %21, %0, %cst_18 {dimension_numbers = #tpu.dot_dimension_numbers<[1], [0], [0], [1], [0, 0, 1, 1], [], []>} : vector<8x384xf32>, vector<384x512xf32>, vector<8x512xf32> -> vector<8x512xf32>
    %23 = arith.addf %17, %20 : vector<8x512xf32>
    %24 = math.tanh %23 : vector<8x512xf32>
    %cst_19 = arith.constant dense<0.000000e+00> : vector<8x512xf32>
    %25 = tpu.matmul %24, %1, %cst_19 {dimension_numbers = #tpu.dot_dimension_numbers<[1], [0], [0], [1], [0, 0, 1, 1], [], []>} : vector<8x512xf32>, vector<512x512xf32>, vector<8x512xf32> -> vector<8x512xf32>
    %c40 = arith.constant 40 : index
    %c0_20 = arith.constant 0 : index
    %26 = vector.load %arg0[%c40, %c0_20] : memref<64x384xf32, #tpu.memory_space<vmem>>, vector<8x384xf32>
    %cst_21 = arith.constant dense<0.000000e+00> : vector<8x512xf32>
    %27 = tpu.matmul %26, %0, %cst_21 {dimension_numbers = #tpu.dot_dimension_numbers<[1], [0], [0], [1], [0, 0, 1, 1], [], []>} : vector<8x384xf32>, vector<384x512xf32>, vector<8x512xf32> -> vector<8x512xf32>
    %28 = arith.addf %22, %25 : vector<8x512xf32>
    %29 = math.tanh %28 : vector<8x512xf32>
    %cst_22 = arith.constant dense<0.000000e+00> : vector<8x512xf32>
    %30 = tpu.matmul %29, %1, %cst_22 {dimension_numbers = #tpu.dot_dimension_numbers<[1], [0], [0], [1], [0, 0, 1, 1], [], []>} : vector<8x512xf32>, vector<512x512xf32>, vector<8x512xf32> -> vector<8x512xf32>
    %c48 = arith.constant 48 : index
    %c0_23 = arith.constant 0 : index
    %31 = vector.load %arg0[%c48, %c0_23] : memref<64x384xf32, #tpu.memory_space<vmem>>, vector<8x384xf32>
    %cst_24 = arith.constant dense<0.000000e+00> : vector<8x512xf32>
    %32 = tpu.matmul %31, %0, %cst_24 {dimension_numbers = #tpu.dot_dimension_numbers<[1], [0], [0], [1], [0, 0, 1, 1], [], []>} : vector<8x384xf32>, vector<384x512xf32>, vector<8x512xf32> -> vector<8x512xf32>
    %33 = arith.addf %27, %30 : vector<8x512xf32>
    %34 = math.tanh %33 : vector<8x512xf32>
    %cst_25 = arith.constant dense<0.000000e+00> : vector<8x512xf32>
    %35 = tpu.matmul %34, %1, %cst_25 {dimension_numbers = #tpu.dot_dimension_numbers<[1], [0], [0], [1], [0, 0, 1, 1], [], []>} : vector<8x512xf32>, vector<512x512xf32>, vector<8x512xf32> -> vector<8x512xf32>
    %c56 = arith.constant 56 : index
    %c0_26 = arith.constant 0 : index
    %36 = vector.load %arg0[%c56, %c0_26] : memref<64x384xf32, #tpu.memory_space<vmem>>, vector<8x384xf32>
    %cst_27 = arith.constant dense<0.000000e+00> : vector<8x512xf32>
    %37 = tpu.matmul %36, %0, %cst_27 {dimension_numbers = #tpu.dot_dimension_numbers<[1], [0], [0], [1], [0, 0, 1, 1], [], []>} : vector<8x384xf32>, vector<384x512xf32>, vector<8x512xf32> -> vector<8x512xf32>
    %38 = arith.addf %32, %35 : vector<8x512xf32>
    %39 = math.tanh %38 : vector<8x512xf32>
    %cst_28 = arith.constant dense<0.000000e+00> : vector<8x512xf32>
    %40 = tpu.matmul %39, %1, %cst_28 {dimension_numbers = #tpu.dot_dimension_numbers<[1], [0], [0], [1], [0, 0, 1, 1], [], []>} : vector<8x512xf32>, vector<512x512xf32>, vector<8x512xf32> -> vector<8x512xf32>
    %41 = arith.addf %37, %40 : vector<8x512xf32>
    %42 = math.tanh %41 : vector<8x512xf32>
    %c0_29 = arith.constant 0 : index
    %c0_30 = arith.constant 0 : index
    %43 = vector.load %arg4[%c0_29, %c0_30] : memref<512x128xf32, #tpu.memory_space<vmem>>, vector<512x128xf32>
    %cst_31 = arith.constant dense<0.000000e+00> : vector<8x128xf32>
    %44 = tpu.matmul %42, %43, %cst_31 {dimension_numbers = #tpu.dot_dimension_numbers<[1], [0], [0], [1], [0, 0, 1, 1], [], []>} : vector<8x512xf32>, vector<512x128xf32>, vector<8x128xf32> -> vector<8x128xf32>
    %c0_32 = arith.constant 0 : index
    %c0_33 = arith.constant 0 : index
    %45 = vector.load %arg5[%c0_32, %c0_33] : memref<8x128xf32, #tpu.memory_space<vmem>>, vector<8x128xf32>
    %46 = arith.addf %44, %45 : vector<8x128xf32>
    %c0_34 = arith.constant 0 : index
    %c0_35 = arith.constant 0 : index
    %47 = vector.load %arg6[%c0_34, %c0_35] : memref<8x128xf32, #tpu.memory_space<vmem>>, vector<8x128xf32>
    tpu.vector_store %arg6[%c0_34, %c0_35], %46 {strides = array<i32>} : memref<8x128xf32, #tpu.memory_space<vmem>>, vector<8x128xf32>,
    return
  }
}

</mosaic_0001>

<llo_original>
// kernel: model_forward.1
$region0: #{model_forward.1}
  #allocation0 [shape = 'u32[]', space=smem, size = 0x4, offset = 0x4, fixed_abs, tag = 'smem constant byte address 0x4 - core index']
  #allocation1 [shape = 'u32[144,128]{1,0:T(1,128)}', space=vmem, size = 0x12000, scoped, tag = 'internal scratch']
  %s0 = inlined_call_operand.vmem [shape: f32[64,384], index: 0, kind: input, shape index: {}]
  %s1 = inlined_call_operand.vmem [shape: f32[8,512], index: 1, kind: input, shape index: {}]
  %s2 = inlined_call_operand.hbm [shape: f32[384,512], index: 2, kind: input, shape index: {}]
  %s3 = inlined_call_operand.hbm [shape: f32[512,512], index: 3, kind: input, shape index: {}]
  %s4 = inlined_call_operand.hbm [shape: f32[512,128], index: 4, kind: input, shape index: {}]
  %s5 = inlined_call_operand.vmem [shape: f32[8,128], index: 5, kind: input, shape index: {}]
  %s6 = inlined_call_operand.vmem [shape: f32[8,128], index: 6, kind: output, shape index: {}]
  %s7 = sld [smem:[#allocation0]]
  $region46: #{model_forward.1} parent=0
    _
  %s9 = ssub.s32 1, %s7
  %s10 = scalar_select 0, %s9, %s7
  $region1: #{model_forward.1} parent=0
    #allocation2 [shape = 'u8[786432]{0}', space=vmem, size = 0xc0000, scoped, tag = 'input window, operand 2, single buffered']
    #allocation3 [shape = 's32[1]{0}', space=sflag, size = 0x4, scoped, tag = 'scoped memory for model_forward.1']
    #allocation4 [shape = 'u8[1048576]{0}', space=vmem, size = 0x100000, scoped, tag = 'input window, operand 3, single buffered']
    #allocation5 [shape = 's32[1]{0}', space=sflag, size = 0x4, scoped, tag = 'scoped memory for model_forward.1']
    #allocation6 [shape = 'u8[262144]{0}', space=vmem, size = 0x40000, scoped, tag = 'input window, operand 4, single buffered']
    %11 = vsyncpa [#allocation3], 0
    %12 = vsyncpa [#allocation5], 0
    // Predicated region
    $region2: #{model_forward.1} parent=1 // pred_check
      _
    $region3: #{model_forward.1} parent=1 // pred_check_branch
      %14 = sbr.rel (0) target = $region5
    $region4: #{model_forward.1} parent=1 // pred_region
      _
    $region5: #{model_forward.1} parent=1 // pred_fallthru
      _
    // Predicated region
    $region6: #{model_forward.1} parent=1 // pred_check
      _
    $region7: #{model_forward.1} parent=1 // pred_check_branch
      %16 = sbr.rel (0) target = $region9
    $region8: #{model_forward.1} parent=1 // pred_region
      _
    $region9: #{model_forward.1} parent=1 // pred_fallthru
      _
    // Predicated region
    $region10: #{model_forward.1} parent=1 // pred_check
      _
    $region11: #{model_forward.1} parent=1 // pred_check_branch
      %18 = sbr.rel (0) target = $region13
    $region12: #{model_forward.1} parent=1 // pred_region
      %s20 = ssub.s32 24576, 24576
      %21 = vsyncadd [#allocation3], %s20
      %s22 = sshll.u32 [#allocation2], 4
      %s23 = int_to_ptr.vmem [resolvable:$true] %s22
      %28 = dma.hbm_to_vmem [thread:$0]  %s2, 24576, %s23, [#allocation3], 512, 512, 32
    $region13: #{model_forward.1} parent=1 // pred_fallthru
      _
    // Predicated region
    $region14: #{model_forward.1} parent=1 // pred_check
      _
    $region15: #{model_forward.1} parent=1 // pred_check_branch
      %30 = sbr.rel (0) target = $region17
    $region16: #{model_forward.1} parent=1 // pred_region
      %s32 = ssub.s32 32768, 32768
      %33 = vsyncadd [#allocation5], %s32
      %s34 = sshll.u32 [#allocation4], 4
      %s35 = int_to_ptr.vmem [resolvable:$true] %s34
      %40 = dma.hbm_to_vmem [thread:$0]  %s3, 32768, %s35, [#allocation5], 512, 512, 32
    $region17: #{model_forward.1} parent=1 // pred_fallthru
      _
    // Predicated region
    $region18: #{model_forward.1} parent=1 // pred_check
      _
    $region19: #{model_forward.1} parent=1 // pred_check_branch
      %42 = sbr.rel (0) target = $region21
    $region20: #{model_forward.1} parent=1 // pred_region
      %s44 = ssub.s32 8192, 8192
      %45 = vsyncadd [#allocation5], %s44
      %s46 = sshll.u32 [#allocation6], 4
      %s47 = int_to_ptr.vmem [resolvable:$true] %s46
      %52 = dma.hbm_to_vmem [thread:$0]  %s4, 8192, %s47, [#allocation5], 128, 128, 8
    $region21: #{model_forward.1} parent=1 // pred_fallthru
      _
    // Predicated region
    $region22: #{model_forward.1} parent=1 // pred_check
      _
    $region23: #{model_forward.1} parent=1 // pred_check_branch
      %54 = sbr.rel (0) target = $region25
    $region24: #{model_forward.1} parent=1 // pred_region
      _
    $region25: #{model_forward.1} parent=1 // pred_fallthru
      _
    // Predicated region
    $region26: #{model_forward.1} parent=1 // pred_check
      _
    $region27: #{model_forward.1} parent=1 // pred_check_branch
      %56 = sbr.rel (0) target = $region29
    $region28: #{model_forward.1} parent=1 // pred_region
      %57 = dma.done [#allocation3], 24576
    $region29: #{model_forward.1} parent=1 // pred_fallthru
      _
    // Predicated region
    $region30: #{model_forward.1} parent=1 // pred_check
      _
    $region31: #{model_forward.1} parent=1 // pred_check_branch
      %59 = sbr.rel (0) target = $region33
    $region32: #{model_forward.1} parent=1 // pred_region
      %60 = dma.done [#allocation5], 32768
    $region33: #{model_forward.1} parent=1 // pred_fallthru
      _
    // Predicated region
    $region34: #{model_forward.1} parent=1 // pred_check
      _
    $region35: #{model_forward.1} parent=1 // pred_check_branch
      %62 = sbr.rel (0) target = $region37
    $region36: #{model_forward.1} parent=1 // pred_region
      %63 = dma.done [#allocation5], 8192
    $region37: #{model_forward.1} parent=1 // pred_fallthru
      _
    %v64 = vld [vmem:[#allocation2] sm:$0xff]
    %v65 = vld [vmem:[#allocation2 + $0x8] sm:$0xff]
    %v66 = vld [vmem:[#allocation2 + $0x10] sm:$0xff]
    %v67 = vld [vmem:[#allocation2 + $0x18] sm:$0xff]
    %v68 = vld [vmem:[#allocation2 + $0x20] sm:$0xff]
    %v69 = vld [vmem:[#allocation2 + $0x28] sm:$0xff]
    %v70 = vld [vmem:[#allocation2 + $0x30] sm:$0xff]
    %v71 = vld [vmem:[#allocation2 + $0x38] sm:$0xff]
    %v72 = vld [vmem:[#allocation2 + $0x40] sm:$0xff]
    %v73 = vld [vmem:[#allocation2 + $0x48] sm:$0xff]
    %v74 = vld [vmem:[#allocation2 + $0x50] sm:$0xff]
    %v75 = vld [vmem:[#allocation2 + $0x58] sm:$0xff]
    %v76 = vld [vmem:[#allocation2 + $0x60] sm:$0xff]
    %v77 = vld [vmem:[#allocation2 + $0x68] sm:$0xff]
    %v78 = vld [vmem:[#allocation2 + $0x70] sm:$0xff]
    %v79 = vld [vmem:[#allocation2 + $0x78] sm:$0xff]
    %v80 = vld [vmem:[#allocation2 + $0x80] sm:$0xff]
    %v81 = vld [vmem:[#allocation2 + $0x88] sm:$0xff]
    %v82 = vld [vmem:[#allocation2 + $0x90] sm:$0xff]
    %v83 = vld [vmem:[#allocation2 + $0x98] sm:$0xff]
    %v84 = vld [vmem:[#allocation2 + $0xa0] sm:$0xff]
    %v85 = vld [vmem:[#allocation2 + $0xa8] sm:$0xff]
    %v86 = vld [vmem:[#allocation2 + $0xb0] sm:$0xff]
    %v87 = vld [vmem:[#allocation2 + $0xb8] sm:$0xff]
    %v88 = vld [vmem:[#allocation2 + $0xc0] sm:$0xff]
    %v89 = vld [vmem:[#allocation2 + $0xc8] sm:$0xff]
    %v90 = vld [vmem:[#allocation2 + $0xd0] sm:$0xff]
    %v91 = vld [vmem:[#allocation2 + $0xd8] sm:$0xff]
    %v92 = vld [vmem:[#allocation2 + $0xe0] sm:$0xff]
    %v93 = vld [vmem:[#allocation2 + $0xe8] sm:$0xff]
    %v94 = vld [vmem:[#allocation2 + $0xf0] sm:$0xff]
    %v95 = vld [vmem:[#allocation2 + $0xf8] sm:$0xff]
    %v96 = vld [vmem:[#allocation2 + $0x100] sm:$0xff]
    %v97 = vld [vmem:[#allocation2 + $0x108] sm:$0xff]
    %v98 = vld [vmem:[#allocation2 + $0x110] sm:$0xff]
    %v99 = vld [vmem:[#allocation2 + $0x118] sm:$0xff]
    %v100 = vld [vmem:[#allocation2 + $0x120] sm:$0xff]
    %v101 = vld [vmem:[#allocation2 + $0x128] sm:$0xff]
    %v102 = vld [vmem:[#allocation2 + $0x130] sm:$0xff]
    %v103 = vld [vmem:[#allocation2 + $0x138] sm:$0xff]
    %v104 = vld [vmem:[#allocation2 + $0x140] sm:$0xff]
    %v105 = vld [vmem:[#allocation2 + $0x148] sm:$0xff]
    %v106 = vld [vmem:[#allocation2 + $0x150] sm:$0xff]
    %v107 = vld [vmem:[#allocation2 + $0x158] sm:$0xff]
    %v108 = vld [vmem:[#allocation2 + $0x160] sm:$0xff]
    %v109 = vld [vmem:[#allocation2 + $0x168] sm:$0xff]
    %v110 = vld [vmem:[#allocation2 + $0x170] sm:$0xff]
    %v111 = vld [vmem:[#allocation2 + $0x178] sm:$0xff]
    %v112 = vld [vmem:[#allocation2 + $0x180] sm:$0xff]
    %v113 = vld [vmem:[#allocation2 + $0x188] sm:$0xff]
    %v114 = vld [vmem:[#allocation2 + $0x190] sm:$0xff]
    %v115 = vld [vmem:[#allocation2 + $0x198] sm:$0xff]
    %v116 = vld [vmem:[#allocation2 + $0x1a0] sm:$0xff]
    %v117 = vld [vmem:[#allocation2 + $0x1a8] sm:$0xff]
    %v118 = vld [vmem:[#allocation2 + $0x1b0] sm:$0xff]
    %v119 = vld [vmem:[#allocation2 + $0x1b8] sm:$0xff]
    %v120 = vld [vmem:[#allocation2 + $0x1c0] sm:$0xff]
    %v121 = vld [vmem:[#allocation2 + $0x1c8] sm:$0xff]
    %v122 = vld [vmem:[#allocation2 + $0x1d0] sm:$0xff]
    %v123 = vld [vmem:[#allocation2 + $0x1d8] sm:$0xff]
    %v124 = vld [vmem:[#allocation2 + $0x1e0] sm:$0xff]
    %v125 = vld [vmem:[#allocation2 + $0x1e8] sm:$0xff]
    %v126 = vld [vmem:[#allocation2 + $0x1f0] sm:$0xff]
    %v127 = vld [vmem:[#allocation2 + $0x1f8] sm:$0xff]
    %v128 = vld [vmem:[#allocation2 + $0x200] sm:$0xff]
    %v129 = vld [vmem:[#allocation2 + $0x208] sm:$0xff]
    %v130 = vld [vmem:[#allocation2 + $0x210] sm:$0xff]
    %v131 = vld [vmem:[#allocation2 + $0x218] sm:$0xff]
    %v132 = vld [vmem:[#allocation2 + $0x220] sm:$0xff]
    %v133 = vld [vmem:[#allocation2 + $0x228] sm:$0xff]
    %v134 = vld [vmem:[#allocation2 + $0x230] sm:$0xff]
    %v135 = vld [vmem:[#allocation2 + $0x238] sm:$0xff]
    %v136 = vld [vmem:[#allocation2 + $0x240] sm:$0xff]
    %v137 = vld [vmem:[#allocation2 + $0x248] sm:$0xff]
    %v138 = vld [vmem:[#allocation2 + $0x250] sm:$0xff]
    %v139 = vld [vmem:[#allocation2 + $0x258] sm:$0xff]
    %v140 = vld [vmem:[#allocation2 + $0x260] sm:$0xff]
    %v141 = vld [vmem:[#allocation2 + $0x268] sm:$0xff]
    %v142 = vld [vmem:[#allocation2 + $0x270] sm:$0xff]
    %v143 = vld [vmem:[#allocation2 + $0x278] sm:$0xff]
    %v144 = vld [vmem:[#allocation2 + $0x280] sm:$0xff]
    %v145 = vld [vmem:[#allocation2 + $0x288] sm:$0xff]
    %v146 = vld [vmem:[#allocation2 + $0x290] sm:$0xff]
    %v147 = vld [vmem:[#allocation2 + $0x298] sm:$0xff]
    %v148 = vld [vmem:[#allocation2 + $0x2a0] sm:$0xff]
    %v149 = vld [vmem:[#allocation2 + $0x2a8] sm:$0xff]
    %v150 = vld [vmem:[#allocation2 + $0x2b0] sm:$0xff]
    %v151 = vld [vmem:[#allocation2 + $0x2b8] sm:$0xff]
    %v152 = vld [vmem:[#allocation2 + $0x2c0] sm:$0xff]
    %v153 = vld [vmem:[#allocation2 + $0x2c8] sm:$0xff]
    %v154 = vld [vmem:[#allocation2 + $0x2d0] sm:$0xff]
    %v155 = vld [vmem:[#allocation2 + $0x2d8] sm:$0xff]
    %v156 = vld [vmem:[#allocation2 + $0x2e0] sm:$0xff]
    %v157 = vld [vmem:[#allocation2 + $0x2e8] sm:$0xff]
    %v158 = vld [vmem:[#allocation2 + $0x2f0] sm:$0xff]
    %v159 = vld [vmem:[#allocation2 + $0x2f8] sm:$0xff]
    %v160 = vld [vmem:[#allocation2 + $0x300] sm:$0xff]
    %v161 = vld [vmem:[#allocation2 + $0x308] sm:$0xff]
    %v162 = vld [vmem:[#allocation2 + $0x310] sm:$0xff]
    %v163 = vld [vmem:[#allocation2 + $0x318] sm:$0xff]
    %v164 = vld [vmem:[#allocation2 + $0x320] sm:$0xff]
    %v165 = vld [vmem:[#allocation2 + $0x328] sm:$0xff]
    %v166 = vld [vmem:[#allocation2 + $0x330] sm:$0xff]
    %v167 = vld [vmem:[#allocation2 + $0x338] sm:$0xff]
    %v168 = vld [vmem:[#allocation2 + $0x340] sm:$0xff]
    %v169 = vld [vmem:[#allocation2 + $0x348] sm:$0xff]
    %v170 = vld [vmem:[#allocation2 + $0x350] sm:$0xff]
    %v171 = vld [vmem:[#allocation2 + $0x358] sm:$0xff]
    %v172 = vld [vmem:[#allocation2 + $0x360] sm:$0xff]
    %v173 = vld [vmem:[#allocation2 + $0x368] sm:$0xff]
    %v174 = vld [vmem:[#allocation2 + $0x370] sm:$0xff]
    %v175 = vld [vmem:[#allocation2 + $0x378] sm:$0xff]
    %v176 = vld [vmem:[#allocation2 + $0x380] sm:$0xff]
    %v177 = vld [vmem:[#allocation2 + $0x388] sm:$0xff]
    %v178 = vld [vmem:[#allocation2 + $0x390] sm:$0xff]
    %v179 = vld [vmem:[#allocation2 + $0x398] sm:$0xff]
    %v180 = vld [vmem:[#allocation2 + $0x3a0] sm:$0xff]
    %v181 = vld [vmem:[#allocation2 + $0x3a8] sm:$0xff]
    %v182 = vld [vmem:[#allocation2 + $0x3b0] sm:$0xff]
    %v183 = vld [vmem:[#allocation2 + $0x3b8] sm:$0xff]
    %v184 = vld [vmem:[#allocation2 + $0x3c0] sm:$0xff]
    %v185 = vld [vmem:[#allocation2 + $0x3c8] sm:$0xff]
    %v186 = vld [vmem:[#allocation2 + $0x3d0] sm:$0xff]
    %v187 = vld [vmem:[#allocation2 + $0x3d8] sm:$0xff]
    %v188 = vld [vmem:[#allocation2 + $0x3e0] sm:$0xff]
    %v189 = vld [vmem:[#allocation2 + $0x3e8] sm:$0xff]
    %v190 = vld [vmem:[#allocation2 + $0x3f0] sm:$0xff]
    %v191 = vld [vmem:[#allocation2 + $0x3f8] sm:$0xff]
    %v192 = vld [vmem:[#allocation2 + $0x400] sm:$0xff]
    %v193 = vld [vmem:[#allocation2 + $0x408] sm:$0xff]
    %v194 = vld [vmem:[#allocation2 + $0x410] sm:$0xff]
    %v195 = vld [vmem:[#allocation2 + $0x418] sm:$0xff]
    %v196 = vld [vmem:[#allocation2 + $0x420] sm:$0xff]
    %v197 = vld [vmem:[#allocation2 + $0x428] sm:$0xff]
    %v198 = vld [vmem:[#allocation2 + $0x430] sm:$0xff]
    %v199 = vld [vmem:[#allocation2 + $0x438] sm:$0xff]
    %v200 = vld [vmem:[#allocation2 + $0x440] sm:$0xff]
    %v201 = vld [vmem:[#allocation2 + $0x448] sm:$0xff]
    %v202 = vld [vmem:[#allocation2 + $0x450] sm:$0xff]
    %v203 = vld [vmem:[#allocation2 + $0x458] sm:$0xff]
    %v204 = vld [vmem:[#allocation2 + $0x460] sm:$0xff]
    %v205 = vld [vmem:[#allocation2 + $0x468] sm:$0xff]
    %v206 = vld [vmem:[#allocation2 + $0x470] sm:$0xff]
    %v207 = vld [vmem:[#allocation2 + $0x478] sm:$0xff]
    %v208 = vld [vmem:[#allocation2 + $0x480] sm:$0xff]
    %v209 = vld [vmem:[#allocation2 + $0x488] sm:$0xff]
    %v210 = vld [vmem:[#allocation2 + $0x490] sm:$0xff]
    %v211 = vld [vmem:[#allocation2 + $0x498] sm:$0xff]
    %v212 = vld [vmem:[#allocation2 + $0x4a0] sm:$0xff]
    %v213 = vld [vmem:[#allocation2 + $0x4a8] sm:$0xff]
    %v214 = vld [vmem:[#allocation2 + $0x4b0] sm:$0xff]
    %v215 = vld [vmem:[#allocation2 + $0x4b8] sm:$0xff]
    %v216 = vld [vmem:[#allocation2 + $0x4c0] sm:$0xff]
    %v217 = vld [vmem:[#allocation2 + $0x4c8] sm:$0xff]
    %v218 = vld [vmem:[#allocation2 + $0x4d0] sm:$0xff]
    %v219 = vld [vmem:[#allocation2 + $0x4d8] sm:$0xff]
    %v220 = vld [vmem:[#allocation2 + $0x4e0] sm:$0xff]
    %v221 = vld [vmem:[#allocation2 + $0x4e8] sm:$0xff]
    %v222 = vld [vmem:[#allocation2 + $0x4f0] sm:$0xff]
    %v223 = vld [vmem:[#allocation2 + $0x4f8] sm:$0xff]
    %v224 = vld [vmem:[#allocation2 + $0x500] sm:$0xff]
    %v225 = vld [vmem:[#allocation2 + $0x508] sm:$0xff]
    %v226 = vld [vmem:[#allocation2 + $0x510] sm:$0xff]
    %v227 = vld [vmem:[#allocation2 + $0x518] sm:$0xff]
    %v228 = vld [vmem:[#allocation2 + $0x520] sm:$0xff]
    %v229 = vld [vmem:[#allocation2 + $0x528] sm:$0xff]
    %v230 = vld [vmem:[#allocation2 + $0x530] sm:$0xff]
    %v231 = vld [vmem:[#allocation2 + $0x538] sm:$0xff]
    %v232 = vld [vmem:[#allocation2 + $0x540] sm:$0xff]
    %v233 = vld [vmem:[#allocation2 + $0x548] sm:$0xff]
    %v234 = vld [vmem:[#allocation2 + $0x550] sm:$0xff]
    %v235 = vld [vmem:[#allocation2 + $0x558] sm:$0xff]
    %v236 = vld [vmem:[#allocation2 + $0x560] sm:$0xff]
    %v237 = vld [vmem:[#allocation2 + $0x568] sm:$0xff]
    %v238 = vld [vmem:[#allocation2 + $0x570] sm:$0xff]
    %v239 = vld [vmem:[#allocation2 + $0x578] sm:$0xff]
    %v240 = vld [vmem:[#allocation2 + $0x580] sm:$0xff]
    %v241 = vld [vmem:[#allocation2 + $0x588] sm:$0xff]
    %v242 = vld [vmem:[#allocation2 + $0x590] sm:$0xff]
    %v243 = vld [vmem:[#allocation2 + $0x598] sm:$0xff]
    %v244 = vld [vmem:[#allocation2 + $0x5a0] sm:$0xff]
    %v245 = vld [vmem:[#allocation2 + $0x5a8] sm:$0xff]
    %v246 = vld [vmem:[#allocation2 + $0x5b0] sm:$0xff]
    %v247 = vld [vmem:[#allocation2 + $0x5b8] sm:$0xff]
    %v248 = vld [vmem:[#allocation2 + $0x5c0] sm:$0xff]
    %v249 = vld [vmem:[#allocation2 + $0x5c8] sm:$0xff]
    %v250 = vld [vmem:[#allocation2 + $0x5d0] sm:$0xff]
    %v251 = vld [vmem:[#allocation2 + $0x5d8] sm:$0xff]
    %v252 = vld [vmem:[#allocation2 + $0x5e0] sm:$0xff]
    %v253 = vld [vmem:[#allocation2 + $0x5e8] sm:$0xff]
    %v254 = vld [vmem:[#allocation2 + $0x5f0] sm:$0xff]
    %v255 = vld [vmem:[#allocation2 + $0x5f8] sm:$0xff]
    %v256 = vld [vmem:[#allocation4] sm:$0xff]
    %v257 = vld [vmem:[#allocation4 + $0x8] sm:$0xff]
    %v258 = vld [vmem:[#allocation4 + $0x10] sm:$0xff]
    %v259 = vld [vmem:[#allocation4 + $0x18] sm:$0xff]
    %v260 = vld [vmem:[#allocation4 + $0x20] sm:$0xff]
    %v261 = vld [vmem:[#allocation4 + $0x28] sm:$0xff]
    %v262 = vld [vmem:[#allocation4 + $0x30] sm:$0xff]
    %v263 = vld [vmem:[#allocation4 + $0x38] sm:$0xff]
    %v264 = vld [vmem:[#allocation4 + $0x40] sm:$0xff]
    %v265 = vld [vmem:[#allocation4 + $0x48] sm:$0xff]
    %v266 = vld [vmem:[#allocation4 + $0x50] sm:$0xff]
    %v267 = vld [vmem:[#allocation4 + $0x58] sm:$0xff]
    %v268 = vld [vmem:[#allocation4 + $0x60] sm:$0xff]
    %v269 = vld [vmem:[#allocation4 + $0x68] sm:$0xff]
    %v270 = vld [vmem:[#allocation4 + $0x70] sm:$0xff]
    %v271 = vld [vmem:[#allocation4 + $0x78] sm:$0xff]
    %v272 = vld [vmem:[#allocation4 + $0x80] sm:$0xff]
    %v273 = vld [vmem:[#allocation4 + $0x88] sm:$0xff]
    %v274 = vld [vmem:[#allocation4 + $0x90] sm:$0xff]
    %v275 = vld [vmem:[#allocation4 + $0x98] sm:$0xff]
    %v276 = vld [vmem:[#allocation4 + $0xa0] sm:$0xff]
    %v277 = vld [vmem:[#allocation4 + $0xa8] sm:$0xff]
    %v278 = vld [vmem:[#allocation4 + $0xb0] sm:$0xff]
    %v279 = vld [vmem:[#allocation4 + $0xb8] sm:$0xff]
    %v280 = vld [vmem:[#allocation4 + $0xc0] sm:$0xff]
    %v281 = vld [vmem:[#allocation4 + $0xc8] sm:$0xff]
    %v282 = vld [vmem:[#allocation4 + $0xd0] sm:$0xff]
    %v283 = vld [vmem:[#allocation4 + $0xd8] sm:$0xff]
    %v284 = vld [vmem:[#allocation4 + $0xe0] sm:$0xff]
    %v285 = vld [vmem:[#allocation4 + $0xe8] sm:$0xff]
    %v286 = vld [vmem:[#allocation4 + $0xf0] sm:$0xff]
    %v287 = vld [vmem:[#allocation4 + $0xf8] sm:$0xff]
    %v288 = vld [vmem:[#allocation4 + $0x100] sm:$0xff]
    %v289 = vld [vmem:[#allocation4 + $0x108] sm:$0xff]
    %v290 = vld [vmem:[#allocation4 + $0x110] sm:$0xff]
    %v291 = vld [vmem:[#allocation4 + $0x118] sm:$0xff]
    %v292 = vld [vmem:[#allocation4 + $0x120] sm:$0xff]
    %v293 = vld [vmem:[#allocation4 + $0x128] sm:$0xff]
    %v294 = vld [vmem:[#allocation4 + $0x130] sm:$0xff]
    %v295 = vld [vmem:[#allocation4 + $0x138] sm:$0xff]
    %v296 = vld [vmem:[#allocation4 + $0x140] sm:$0xff]
    %v297 = vld [vmem:[#allocation4 + $0x148] sm:$0xff]
    %v298 = vld [vmem:[#allocation4 + $0x150] sm:$0xff]
    %v299 = vld [vmem:[#allocation4 + $0x158] sm:$0xff]
    %v300 = vld [vmem:[#allocation4 + $0x160] sm:$0xff]
    %v301 = vld [vmem:[#allocation4 + $0x168] sm:$0xff]
    %v302 = vld [vmem:[#allocation4 + $0x170] sm:$0xff]
    %v303 = vld [vmem:[#allocation4 + $0x178] sm:$0xff]
    %v304 = vld [vmem:[#allocation4 + $0x180] sm:$0xff]
    %v305 = vld [vmem:[#allocation4 + $0x188] sm:$0xff]
    %v306 = vld [vmem:[#allocation4 + $0x190] sm:$0xff]
    %v307 = vld [vmem:[#allocation4 + $0x198] sm:$0xff]
    %v308 = vld [vmem:[#allocation4 + $0x1a0] sm:$0xff]
    %v309 = vld [vmem:[#allocation4 + $0x1a8] sm:$0xff]
    %v310 = vld [vmem:[#allocation4 + $0x1b0] sm:$0xff]
    %v311 = vld [vmem:[#allocation4 + $0x1b8] sm:$0xff]
    %v312 = vld [vmem:[#allocation4 + $0x1c0] sm:$0xff]
    %v313 = vld [vmem:[#allocation4 + $0x1c8] sm:$0xff]
    %v314 = vld [vmem:[#allocation4 + $0x1d0] sm:$0xff]
    %v315 = vld [vmem:[#allocation4 + $0x1d8] sm:$0xff]
    %v316 = vld [vmem:[#allocation4 + $0x1e0] sm:$0xff]
    %v317 = vld [vmem:[#allocation4 + $0x1e8] sm:$0xff]
    %v318 = vld [vmem:[#allocation4 + $0x1f0] sm:$0xff]
    %v319 = vld [vmem:[#allocation4 + $0x1f8] sm:$0xff]
    %v320 = vld [vmem:[#allocation4 + $0x200] sm:$0xff]
    %v321 = vld [vmem:[#allocation4 + $0x208] sm:$0xff]
    %v322 = vld [vmem:[#allocation4 + $0x210] sm:$0xff]
    %v323 = vld [vmem:[#allocation4 + $0x218] sm:$0xff]
    %v324 = vld [vmem:[#allocation4 + $0x220] sm:$0xff]
    %v325 = vld [vmem:[#allocation4 + $0x228] sm:$0xff]
    %v326 = vld [vmem:[#allocation4 + $0x230] sm:$0xff]
    %v327 = vld [vmem:[#allocation4 + $0x238] sm:$0xff]
    %v328 = vld [vmem:[#allocation4 + $0x240] sm:$0xff]
    %v329 = vld [vmem:[#allocation4 + $0x248] sm:$0xff]
    %v330 = vld [vmem:[#allocation4 + $0x250] sm:$0xff]
    %v331 = vld [vmem:[#allocation4 + $0x258] sm:$0xff]
    %v332 = vld [vmem:[#allocation4 + $0x260] sm:$0xff]
    %v333 = vld [vmem:[#allocation4 + $0x268] sm:$0xff]
    %v334 = vld [vmem:[#allocation4 + $0x270] sm:$0xff]
    %v335 = vld [vmem:[#allocation4 + $0x278] sm:$0xff]
    %v336 = vld [vmem:[#allocation4 + $0x280] sm:$0xff]
    %v337 = vld [vmem:[#allocation4 + $0x288] sm:$0xff]
    %v338 = vld [vmem:[#allocation4 + $0x290] sm:$0xff]
    %v339 = vld [vmem:[#allocation4 + $0x298] sm:$0xff]
    %v340 = vld [vmem:[#allocation4 + $0x2a0] sm:$0xff]
    %v341 = vld [vmem:[#allocation4 + $0x2a8] sm:$0xff]
    %v342 = vld [vmem:[#allocation4 + $0x2b0] sm:$0xff]
    %v343 = vld [vmem:[#allocation4 + $0x2b8] sm:$0xff]
    %v344 = vld [vmem:[#allocation4 + $0x2c0] sm:$0xff]
    %v345 = vld [vmem:[#allocation4 + $0x2c8] sm:$0xff]
    %v346 = vld [vmem:[#allocation4 + $0x2d0] sm:$0xff]
    %v347 = vld [vmem:[#allocation4 + $0x2d8] sm:$0xff]
    %v348 = vld [vmem:[#allocation4 + $0x2e0] sm:$0xff]
    %v349 = vld [vmem:[#allocation4 + $0x2e8] sm:$0xff]
    %v350 = vld [vmem:[#allocation4 + $0x2f0] sm:$0xff]
    %v351 = vld [vmem:[#allocation4 + $0x2f8] sm:$0xff]
    %v352 = vld [vmem:[#allocation4 + $0x300] sm:$0xff]
    %v353 = vld [vmem:[#allocation4 + $0x308] sm:$0xff]
    %v354 = vld [vmem:[#allocation4 + $0x310] sm:$0xff]
    %v355 = vld [vmem:[#allocation4 + $0x318] sm:$0xff]
    %v356 = vld [vmem:[#allocation4 + $0x320] sm:$0xff]
    %v357 = vld [vmem:[#allocation4 + $0x328] sm:$0xff]
    %v358 = vld [vmem:[#allocation4 + $0x330] sm:$0xff]
    %v359 = vld [vmem:[#allocation4 + $0x338] sm:$0xff]
    %v360 = vld [vmem:[#allocation4 + $0x340] sm:$0xff]
    %v361 = vld [vmem:[#allocation4 + $0x348] sm:$0xff]
    %v362 = vld [vmem:[#allocation4 + $0x350] sm:$0xff]
    %v363 = vld [vmem:[#allocation4 + $0x358] sm:$0xff]
    %v364 = vld [vmem:[#allocation4 + $0x360] sm:$0xff]
    %v365 = vld [vmem:[#allocation4 + $0x368] sm:$0xff]
    %v366 = vld [vmem:[#allocation4 + $0x370] sm:$0xff]
    %v367 = vld [vmem:[#allocation4 + $0x378] sm:$0xff]
    %v368 = vld [vmem:[#allocation4 + $0x380] sm:$0xff]
    %v369 = vld [vmem:[#allocation4 + $0x388] sm:$0xff]
    %v370 = vld [vmem:[#allocation4 + $0x390] sm:$0xff]
    %v371 = vld [vmem:[#allocation4 + $0x398] sm:$0xff]
    %v372 = vld [vmem:[#allocation4 + $0x3a0] sm:$0xff]
    %v373 = vld [vmem:[#allocation4 + $0x3a8] sm:$0xff]
    %v374 = vld [vmem:[#allocation4 + $0x3b0] sm:$0xff]
    %v375 = vld [vmem:[#allocation4 + $0x3b8] sm:$0xff]
    %v376 = vld [vmem:[#allocation4 + $0x3c0] sm:$0xff]
    %v377 = vld [vmem:[#allocation4 + $0x3c8] sm:$0xff]
    %v378 = vld [vmem:[#allocation4 + $0x3d0] sm:$0xff]
    %v379 = vld [vmem:[#allocation4 + $0x3d8] sm:$0xff]
    %v380 = vld [vmem:[#allocation4 + $0x3e0] sm:$0xff]
    %v381 = vld [vmem:[#allocation4 + $0x3e8] sm:$0xff]
    %v382 = vld [vmem:[#allocation4 + $0x3f0] sm:$0xff]
    %v383 = vld [vmem:[#allocation4 + $0x3f8] sm:$0xff]
    %v384 = vld [vmem:[#allocation4 + $0x400] sm:$0xff]
    %v385 = vld [vmem:[#allocation4 + $0x408] sm:$0xff]
    %v386 = vld [vmem:[#allocation4 + $0x410] sm:$0xff]
    %v387 = vld [vmem:[#allocation4 + $0x418] sm:$0xff]
    %v388 = vld [vmem:[#allocation4 + $0x420] sm:$0xff]
    %v389 = vld [vmem:[#allocation4 + $0x428] sm:$0xff]
    %v390 = vld [vmem:[#allocation4 + $0x430] sm:$0xff]
    %v391 = vld [vmem:[#allocation4 + $0x438] sm:$0xff]
    %v392 = vld [vmem:[#allocation4 + $0x440] sm:$0xff]
    %v393 = vld [vmem:[#allocation4 + $0x448] sm:$0xff]
    %v394 = vld [vmem:[#allocation4 + $0x450] sm:$0xff]
    %v395 = vld [vmem:[#allocation4 + $0x458] sm:$0xff]
    %v396 = vld [vmem:[#allocation4 + $0x460] sm:$0xff]
    %v397 = vld [vmem:[#allocation4 + $0x468] sm:$0xff]
    %v398 = vld [vmem:[#allocation4 + $0x470] sm:$0xff]
    %v399 = vld [vmem:[#allocation4 + $0x478] sm:$0xff]
    %v400 = vld [vmem:[#allocation4 + $0x480] sm:$0xff]
    %v401 = vld [vmem:[#allocation4 + $0x488] sm:$0xff]
    %v402 = vld [vmem:[#allocation4 + $0x490] sm:$0xff]
    %v403 = vld [vmem:[#allocation4 + $0x498] sm:$0xff]
    %v404 = vld [vmem:[#allocation4 + $0x4a0] sm:$0xff]
    %v405 = vld [vmem:[#allocation4 + $0x4a8] sm:$0xff]
    %v406 = vld [vmem:[#allocation4 + $0x4b0] sm:$0xff]
    %v407 = vld [vmem:[#allocation4 + $0x4b8] sm:$0xff]
    %v408 = vld [vmem:[#allocation4 + $0x4c0] sm:$0xff]
    %v409 = vld [vmem:[#allocation4 + $0x4c8] sm:$0xff]
    %v410 = vld [vmem:[#allocation4 + $0x4d0] sm:$0xff]
    %v411 = vld [vmem:[#allocation4 + $0x4d8] sm:$0xff]
    %v412 = vld [vmem:[#allocation4 + $0x4e0] sm:$0xff]
    %v413 = vld [vmem:[#allocation4 + $0x4e8] sm:$0xff]
    %v414 = vld [vmem:[#allocation4 + $0x4f0] sm:$0xff]
    %v415 = vld [vmem:[#allocation4 + $0x4f8] sm:$0xff]
    %v416 = vld [vmem:[#allocation4 + $0x500] sm:$0xff]
    %v417 = vld [vmem:[#allocation4 + $0x508] sm:$0xff]
    %v418 = vld [vmem:[#allocation4 + $0x510] sm:$0xff]
    %v419 = vld [vmem:[#allocation4 + $0x518] sm:$0xff]
    %v420 = vld [vmem:[#allocation4 + $0x520] sm:$0xff]
    %v421 = vld [vmem:[#allocation4 + $0x528] sm:$0xff]
    %v422 = vld [vmem:[#allocation4 + $0x530] sm:$0xff]
    %v423 = vld [vmem:[#allocation4 + $0x538] sm:$0xff]
    %v424 = vld [vmem:[#allocation4 + $0x540] sm:$0xff]
    %v425 = vld [vmem:[#allocation4 + $0x548] sm:$0xff]
    %v426 = vld [vmem:[#allocation4 + $0x550] sm:$0xff]
    %v427 = vld [vmem:[#allocation4 + $0x558] sm:$0xff]
    %v428 = vld [vmem:[#allocation4 + $0x560] sm:$0xff]
    %v429 = vld [vmem:[#allocation4 + $0x568] sm:$0xff]
    %v430 = vld [vmem:[#allocation4 + $0x570] sm:$0xff]
    %v431 = vld [vmem:[#allocation4 + $0x578] sm:$0xff]
    %v432 = vld [vmem:[#allocation4 + $0x580] sm:$0xff]
    %v433 = vld [vmem:[#allocation4 + $0x588] sm:$0xff]
    %v434 = vld [vmem:[#allocation4 + $0x590] sm:$0xff]
    %v435 = vld [vmem:[#allocation4 + $0x598] sm:$0xff]
    %v436 = vld [vmem:[#allocation4 + $0x5a0] sm:$0xff]
    %v437 = vld [vmem:[#allocation4 + $0x5a8] sm:$0xff]
    %v438 = vld [vmem:[#allocation4 + $0x5b0] sm:$0xff]
    %v439 = vld [vmem:[#allocation4 + $0x5b8] sm:$0xff]
    %v440 = vld [vmem:[#allocation4 + $0x5c0] sm:$0xff]
    %v441 = vld [vmem:[#allocation4 + $0x5c8] sm:$0xff]
    %v442 = vld [vmem:[#allocation4 + $0x5d0] sm:$0xff]
    %v443 = vld [vmem:[#allocation4 + $0x5d8] sm:$0xff]
    %v444 = vld [vmem:[#allocation4 + $0x5e0] sm:$0xff]
    %v445 = vld [vmem:[#allocation4 + $0x5e8] sm:$0xff]
    %v446 = vld [vmem:[#allocation4 + $0x5f0] sm:$0xff]
    %v447 = vld [vmem:[#allocation4 + $0x5f8] sm:$0xff]
    %v448 = vld [vmem:[#allocation4 + $0x600] sm:$0xff]
    %v449 = vld [vmem:[#allocation4 + $0x608] sm:$0xff]
    %v450 = vld [vmem:[#allocation4 + $0x610] sm:$0xff]
    %v451 = vld [vmem:[#allocation4 + $0x618] sm:$0xff]
    %v452 = vld [vmem:[#allocation4 + $0x620] sm:$0xff]
    %v453 = vld [vmem:[#allocation4 + $0x628] sm:$0xff]
    %v454 = vld [vmem:[#allocation4 + $0x630] sm:$0xff]
    %v455 = vld [vmem:[#allocation4 + $0x638] sm:$0xff]
    %v456 = vld [vmem:[#allocation4 + $0x640] sm:$0xff]
    %v457 = vld [vmem:[#allocation4 + $0x648] sm:$0xff]
    %v458 = vld [vmem:[#allocation4 + $0x650] sm:$0xff]
    %v459 = vld [vmem:[#allocation4 + $0x658] sm:$0xff]
    %v460 = vld [vmem:[#allocation4 + $0x660] sm:$0xff]
    %v461 = vld [vmem:[#allocation4 + $0x668] sm:$0xff]
    %v462 = vld [vmem:[#allocation4 + $0x670] sm:$0xff]
    %v463 = vld [vmem:[#allocation4 + $0x678] sm:$0xff]
    %v464 = vld [vmem:[#allocation4 + $0x680] sm:$0xff]
    %v465 = vld [vmem:[#allocation4 + $0x688] sm:$0xff]
    %v466 = vld [vmem:[#allocation4 + $0x690] sm:$0xff]
    %v467 = vld [vmem:[#allocation4 + $0x698] sm:$0xff]
    %v468 = vld [vmem:[#allocation4 + $0x6a0] sm:$0xff]
    %v469 = vld [vmem:[#allocation4 + $0x6a8] sm:$0xff]
    %v470 = vld [vmem:[#allocation4 + $0x6b0] sm:$0xff]
    %v471 = vld [vmem:[#allocation4 + $0x6b8] sm:$0xff]
    %v472 = vld [vmem:[#allocation4 + $0x6c0] sm:$0xff]
    %v473 = vld [vmem:[#allocation4 + $0x6c8] sm:$0xff]
    %v474 = vld [vmem:[#allocation4 + $0x6d0] sm:$0xff]
    %v475 = vld [vmem:[#allocation4 + $0x6d8] sm:$0xff]
    %v476 = vld [vmem:[#allocation4 + $0x6e0] sm:$0xff]
    %v477 = vld [vmem:[#allocation4 + $0x6e8] sm:$0xff]
    %v478 = vld [vmem:[#allocation4 + $0x6f0] sm:$0xff]
    %v479 = vld [vmem:[#allocation4 + $0x6f8] sm:$0xff]
    %v480 = vld [vmem:[#allocation4 + $0x700] sm:$0xff]
    %v481 = vld [vmem:[#allocation4 + $0x708] sm:$0xff]
    %v482 = vld [vmem:[#allocation4 + $0x710] sm:$0xff]
    %v483 = vld [vmem:[#allocation4 + $0x718] sm:$0xff]
    %v484 = vld [vmem:[#allocation4 + $0x720] sm:$0xff]
    %v485 = vld [vmem:[#allocation4 + $0x728] sm:$0xff]
    %v486 = vld [vmem:[#allocation4 + $0x730] sm:$0xff]
    %v487 = vld [vmem:[#allocation4 + $0x738] sm:$0xff]
    %v488 = vld [vmem:[#allocation4 + $0x740] sm:$0xff]
    %v489 = vld [vmem:[#allocation4 + $0x748] sm:$0xff]
    %v490 = vld [vmem:[#allocation4 + $0x750] sm:$0xff]
    %v491 = vld [vmem:[#allocation4 + $0x758] sm:$0xff]
    %v492 = vld [vmem:[#allocation4 + $0x760] sm:$0xff]
    %v493 = vld [vmem:[#allocation4 + $0x768] sm:$0xff]
    %v494 = vld [vmem:[#allocation4 + $0x770] sm:$0xff]
    %v495 = vld [vmem:[#allocation4 + $0x778] sm:$0xff]
    %v496 = vld [vmem:[#allocation4 + $0x780] sm:$0xff]
    %v497 = vld [vmem:[#allocation4 + $0x788] sm:$0xff]
    %v498 = vld [vmem:[#allocation4 + $0x790] sm:$0xff]
    %v499 = vld [vmem:[#allocation4 + $0x798] sm:$0xff]
    %v500 = vld [vmem:[#allocation4 + $0x7a0] sm:$0xff]
    %v501 = vld [vmem:[#allocation4 + $0x7a8] sm:$0xff]
    %v502 = vld [vmem:[#allocation4 + $0x7b0] sm:$0xff]
    %v503 = vld [vmem:[#allocation4 + $0x7b8] sm:$0xff]
    %v504 = vld [vmem:[#allocation4 + $0x7c0] sm:$0xff]
    %v505 = vld [vmem:[#allocation4 + $0x7c8] sm:$0xff]
    %v506 = vld [vmem:[#allocation4 + $0x7d0] sm:$0xff]
    %v507 = vld [vmem:[#allocation4 + $0x7d8] sm:$0xff]
    %v508 = vld [vmem:[#allocation4 + $0x7e0] sm:$0xff]
    %v509 = vld [vmem:[#allocation4 + $0x7e8] sm:$0xff]
    %v510 = vld [vmem:[#allocation4 + $0x7f0] sm:$0xff]
    %v511 = vld [vmem:[#allocation4 + $0x7f8] sm:$0xff]
    %v512 = vld [vmem:[%s1] sm:$0xff]
    %v513 = vld [vmem:[%s1 + $0x8] sm:$0xff]
    %v514 = vld [vmem:[%s1 + $0x10] sm:$0xff]
    %v515 = vld [vmem:[%s1 + $0x18] sm:$0xff]
    %v516 = vld [vmem:[%s0] sm:$0xff]
    %v517 = vld [vmem:[%s0 + $0x8] sm:$0xff]
    %v518 = vld [vmem:[%s0 + $0x10] sm:$0xff]
    %519 = vmatprep.subr.mxu0 %v257
    %520 = vmatpush1.msra.mxu0 %v256
    %521 = vmatprep.subr.mxu0 %v261
    %522 = vmatpush1.msra.mxu0 %v260
    %523 = vmatprep.subr.mxu0 %v265
    %524 = vmatpush1.msra.mxu0 %v264
    %525 = vmatprep.subr.mxu0 %v269
    %526 = vmatpush1.msra.mxu0 %v268
    %527 = vmatprep.subr.mxu0 %v273
    %528 = vmatpush1.msra.mxu0 %v272
    %529 = vmatprep.subr.mxu0 %v277
    %530 = vmatpush1.msra.mxu0 %v276
    %531 = vmatprep.subr.mxu0 %v281
    %532 = vmatpush1.msra.mxu0 %v280
    %533 = vmatprep.subr.mxu0 %v285
    %534 = vmatpush1.msra.mxu0 %v284
    %535 = vmatprep.subr.mxu0 %v289
    %536 = vmatpush1.msra.mxu0 %v288
    %537 = vmatprep.subr.mxu0 %v293
    %538 = vmatpush1.msra.mxu0 %v292
    %539 = vmatprep.subr.mxu0 %v297
    %540 = vmatpush1.msra.mxu0 %v296
    %541 = vmatprep.subr.mxu0 %v301
    %542 = vmatpush1.msra.mxu0 %v300
    %543 = vmatprep.subr.mxu0 %v305
    %544 = vmatpush1.msra.mxu0 %v304
    %545 = vmatprep.subr.mxu0 %v309
    %546 = vmatpush1.msra.mxu0 %v308
    %547 = vmatprep.subr.mxu0 %v313
    %548 = vmatpush1.msra.mxu0 %v312
    %549 = vmatprep.subr.mxu0 %v317
    %550 = vmatpush1.msra.mxu0 %v316
    %551 = vmatprep.subr.mxu0 %v321
    %552 = vmatpush1.msra.mxu0 %v320
    %553 = vmatprep.subr.mxu0 %v325
    %554 = vmatpush1.msra.mxu0 %v324
    %555 = vmatprep.subr.mxu0 %v329
    %556 = vmatpush1.msra.mxu0 %v328
    %557 = vmatprep.subr.mxu0 %v333
    %558 = vmatpush1.msra.mxu0 %v332
    %559 = vmatprep.subr.mxu0 %v337
    %560 = vmatpush1.msra.mxu0 %v336
    %561 = vmatprep.subr.mxu0 %v341
    %562 = vmatpush1.msra.mxu0 %v340
    %563 = vmatprep.subr.mxu0 %v345
    %564 = vmatpush1.msra.mxu0 %v344
    %565 = vmatprep.subr.mxu0 %v349
    %566 = vmatpush1.msra.mxu0 %v348
    %567 = vmatprep.subr.mxu0 %v353
    %568 = vmatpush1.msra.mxu0 %v352
    %569 = vmatprep.subr.mxu0 %v357
    %570 = vmatpush1.msra.mxu0 %v356
    %571 = vmatprep.subr.mxu0 %v361
    %572 = vmatpush1.msra.mxu0 %v360
    %573 = vmatprep.subr.mxu0 %v365
    %574 = vmatpush1.msra.mxu0 %v364
    %575 = vmatprep.subr.mxu0 %v369
    %576 = vmatpush1.msra.mxu0 %v368
    %577 = vmatprep.subr.mxu0 %v373
    %578 = vmatpush1.msra.mxu0 %v372
    %579 = vmatprep.subr.mxu0 %v377
    %580 = vmatpush1.msra.mxu0 %v376
    %581 = vmatprep.subr.mxu0 %v381
    %582 = vmatpush1.msra.mxu0 %v380
    %583 = vmatprep.mubr.f32.mxu0 %v513
    %584 = vmatmul.mubr.f32.gmra.mrb[0].mxu0 %v512
    %v585 = vpop.f32.mrb[0].mxu0
    %v586 = vadd.f32 0.0, %v585
    %v587 = vpop.f32.mrb[0].mxu0
    %v588 = vadd.f32 0.0, %v587
    %589 = vdwg.mxu0
    %590 = vmatprep.subr.mxu0 %v385
    %591 = vmatpush1.msra.mxu0 %v384
    %592 = vmatprep.subr.mxu0 %v389
    %593 = vmatpush1.msra.mxu0 %v388
    %594 = vmatprep.subr.mxu0 %v393
    %595 = vmatpush1.msra.mxu0 %v392
    %596 = vmatprep.subr.mxu0 %v397
    %597 = vmatpush1.msra.mxu0 %v396
    %598 = vmatprep.subr.mxu0 %v401
    %599 = vmatpush1.msra.mxu0 %v400
    %600 = vmatprep.subr.mxu0 %v405
    %601 = vmatpush1.msra.mxu0 %v404
    %602 = vmatprep.subr.mxu0 %v409
    %603 = vmatpush1.msra.mxu0 %v408
    %604 = vmatprep.subr.mxu0 %v413
    %605 = vmatpush1.msra.mxu0 %v412
    %606 = vmatprep.subr.mxu0 %v417
    %607 = vmatpush1.msra.mxu0 %v416
    %608 = vmatprep.subr.mxu0 %v421
    %609 = vmatpush1.msra.mxu0 %v420
    %610 = vmatprep.subr.mxu0 %v425
    %611 = vmatpush1.msra.mxu0 %v424
    %612 = vmatprep.subr.mxu0 %v429
    %613 = vmatpush1.msra.mxu0 %v428
    %614 = vmatprep.subr.mxu0 %v433
    %615 = vmatpush1.msra.mxu0 %v432
    %616 = vmatprep.subr.mxu0 %v437
    %617 = vmatpush1.msra.mxu0 %v436
    %618 = vmatprep.subr.mxu0 %v441
    %619 = vmatpush1.msra.mxu0 %v440
    %620 = vmatprep.subr.mxu0 %v445
    %621 = vmatpush1.msra.mxu0 %v444
    %622 = vmatprep.subr.mxu0 %v449
    %623 = vmatpush1.msra.mxu0 %v448
    %624 = vmatprep.subr.mxu0 %v453
    %625 = vmatpush1.msra.mxu0 %v452
    %626 = vmatprep.subr.mxu0 %v457
    %627 = vmatpush1.msra.mxu0 %v456
    %628 = vmatprep.subr.mxu0 %v461
    %629 = vmatpush1.msra.mxu0 %v460
    %630 = vmatprep.subr.mxu0 %v465
    %631 = vmatpush1.msra.mxu0 %v464
    %632 = vmatprep.subr.mxu0 %v469
    %633 = vmatpush1.msra.mxu0 %v468
    %634 = vmatprep.subr.mxu0 %v473
    %635 = vmatpush1.msra.mxu0 %v472
    %636 = vmatprep.subr.mxu0 %v477
    %637 = vmatpush1.msra.mxu0 %v476
    %638 = vmatprep.subr.mxu0 %v481
    %639 = vmatpush1.msra.mxu0 %v480
    %640 = vmatprep.subr.mxu0 %v485
    %641 = vmatpush1.msra.mxu0 %v484
    %642 = vmatprep.subr.mxu0 %v489
    %643 = vmatpush1.msra.mxu0 %v488
    %644 = vmatprep.subr.mxu0 %v493
    %645 = vmatpush1.msra.mxu0 %v492
    %646 = vmatprep.subr.mxu0 %v497
    %647 = vmatpush1.msra.mxu0 %v496
    %648 = vmatprep.subr.mxu0 %v501
    %649 = vmatpush1.msra.mxu0 %v500
    %650 = vmatprep.subr.mxu0 %v505
    %651 = vmatpush1.msra.mxu0 %v504
    %652 = vmatprep.subr.mxu0 %v509
    %653 = vmatpush1.msra.mxu0 %v508
    %654 = vmatprep.mubr.f32.mxu0 %v515
    %655 = vmatmul.mubr.f32.gmra.mrb[0].mxu0 %v514
    %v656 = vpop.f32.mrb[0].mxu0
    %v657 = vadd.f32 %v586, %v656
    %v658 = vpop.f32.mrb[0].mxu0
    %v659 = vadd.f32 %v588, %v658
    %660 = vdwg.mxu0
    %661 = vmatprep.subr.mxu0 %v259
    %662 = vmatpush1.msra.mxu0 %v258
    %663 = vmatprep.subr.mxu0 %v263
    %664 = vmatpush1.msra.mxu0 %v262
    %665 = vmatprep.subr.mxu0 %v267
    %666 = vmatpush1.msra.mxu0 %v266
    %667 = vmatprep.subr.mxu0 %v271
    %668 = vmatpush1.msra.mxu0 %v270
    %669 = vmatprep.subr.mxu0 %v275
    %670 = vmatpush1.msra.mxu0 %v274
    %671 = vmatprep.subr.mxu0 %v279
    %672 = vmatpush1.msra.mxu0 %v278
    %673 = vmatprep.subr.mxu0 %v283
    %674 = vmatpush1.msra.mxu0 %v282
    %675 = vmatprep.subr.mxu0 %v287
    %676 = vmatpush1.msra.mxu0 %v286
    %677 = vmatprep.subr.mxu0 %v291
    %678 = vmatpush1.msra.mxu0 %v290
    %679 = vmatprep.subr.mxu0 %v295
    %680 = vmatpush1.msra.mxu0 %v294
    %681 = vmatprep.subr.mxu0 %v299
    %682 = vmatpush1.msra.mxu0 %v298
    %683 = vmatprep.subr.mxu0 %v303
    %684 = vmatpush1.msra.mxu0 %v302
    %685 = vmatprep.subr.mxu0 %v307
    %686 = vmatpush1.msra.mxu0 %v306
    %687 = vmatprep.subr.mxu0 %v311
    %688 = vmatpush1.msra.mxu0 %v310
    %689 = vmatprep.subr.mxu0 %v315
    %690 = vmatpush1.msra.mxu0 %v314
    %691 = vmatprep.subr.mxu0 %v319
    %692 = vmatpush1.msra.mxu0 %v318
    %693 = vmatprep.subr.mxu0 %v323
    %694 = vmatpush1.msra.mxu0 %v322
    %695 = vmatprep.subr.mxu0 %v327
    %696 = vmatpush1.msra.mxu0 %v326
    %697 = vmatprep.subr.mxu0 %v331
    %698 = vmatpush1.msra.mxu0 %v330
    %699 = vmatprep.subr.mxu0 %v335
    %700 = vmatpush1.msra.mxu0 %v334
    %701 = vmatprep.subr.mxu0 %v339
    %702 = vmatpush1.msra.mxu0 %v338
    %703 = vmatprep.subr.mxu0 %v343
    %704 = vmatpush1.msra.mxu0 %v342
    %705 = vmatprep.subr.mxu0 %v347
    %706 = vmatpush1.msra.mxu0 %v346
    %707 = vmatprep.subr.mxu0 %v351
    %708 = vmatpush1.msra.mxu0 %v350
    %709 = vmatprep.subr.mxu0 %v355
    %710 = vmatpush1.msra.mxu0 %v354
    %711 = vmatprep.subr.mxu0 %v359
    %712 = vmatpush1.msra.mxu0 %v358
    %713 = vmatprep.subr.mxu0 %v363
    %714 = vmatpush1.msra.mxu0 %v362
    %715 = vmatprep.subr.mxu0 %v367
    %716 = vmatpush1.msra.mxu0 %v366
    %717 = vmatprep.subr.mxu0 %v371
    %718 = vmatpush1.msra.mxu0 %v370
    %719 = vmatprep.subr.mxu0 %v375
    %720 = vmatpush1.msra.mxu0 %v374
    %721 = vmatprep.subr.mxu0 %v379
    %722 = vmatpush1.msra.mxu0 %v378
    %723 = vmatprep.subr.mxu0 %v383
    %724 = vmatpush1.msra.mxu0 %v382
    %725 = vmatprep.mubr.f32.mxu0 %v513
    %726 = vmatmul.mubr.f32.gmra.mrb[0].mxu0 %v512
    %v727 = vpop.f32.mrb[0].mxu0
    %v728 = vadd.f32 0.0, %v727
    %v729 = vpop.f32.mrb[0].mxu0
    %v730 = vadd.f32 0.0, %v729
    %731 = vdwg.mxu0
    %732 = vmatprep.subr.mxu0 %v387
    %733 = vmatpush1.msra.mxu0 %v386
    %734 = vmatprep.subr.mxu0 %v391
    %735 = vmatpush1.msra.mxu0 %v390
    %736 = vmatprep.subr.mxu0 %v395
    %737 = vmatpush1.msra.mxu0 %v394
    %738 = vmatprep.subr.mxu0 %v399
    %739 = vmatpush1.msra.mxu0 %v398
    %740 = vmatprep.subr.mxu0 %v403
    %741 = vmatpush1.msra.mxu0 %v402
    %742 = vmatprep.subr.mxu0 %v407
    %743 = vmatpush1.msra.mxu0 %v406
    %744 = vmatprep.subr.mxu0 %v411
    %745 = vmatpush1.msra.mxu0 %v410
    %746 = vmatprep.subr.mxu0 %v415
    %747 = vmatpush1.msra.mxu0 %v414
    %748 = vmatprep.subr.mxu0 %v419
    %749 = vmatpush1.msra.mxu0 %v418
    %750 = vmatprep.subr.mxu0 %v423
    %751 = vmatpush1.msra.mxu0 %v422
    %752 = vmatprep.subr.mxu0 %v427
    %753 = vmatpush1.msra.mxu0 %v426
    %754 = vmatprep.subr.mxu0 %v431
    %755 = vmatpush1.msra.mxu0 %v430
    %756 = vmatprep.subr.mxu0 %v435
    %757 = vmatpush1.msra.mxu0 %v434
    %758 = vmatprep.subr.mxu0 %v439
    %759 = vmatpush1.msra.mxu0 %v438
    %760 = vmatprep.subr.mxu0 %v443
    %761 = vmatpush1.msra.mxu0 %v442
    %762 = vmatprep.subr.mxu0 %v447
    %763 = vmatpush1.msra.mxu0 %v446
    %764 = vmatprep.subr.mxu0 %v451
    %765 = vmatpush1.msra.mxu0 %v450
    %766 = vmatprep.subr.mxu0 %v455
    %767 = vmatpush1.msra.mxu0 %v454
    %768 = vmatprep.subr.mxu0 %v459
    %769 = vmatpush1.msra.mxu0 %v458
    %770 = vmatprep.subr.mxu0 %v463
    %771 = vmatpush1.msra.mxu0 %v462
    %772 = vmatprep.subr.mxu0 %v467
    %773 = vmatpush1.msra.mxu0 %v466
    %774 = vmatprep.subr.mxu0 %v471
    %775 = vmatpush1.msra.mxu0 %v470
    %776 = vmatprep.subr.mxu0 %v475
    %777 = vmatpush1.msra.mxu0 %v474
    %778 = vmatprep.subr.mxu0 %v479
    %779 = vmatpush1.msra.mxu0 %v478
    %780 = vmatprep.subr.mxu0 %v483
    %781 = vmatpush1.msra.mxu0 %v482
    %782 = vmatprep.subr.mxu0 %v487
    %783 = vmatpush1.msra.mxu0 %v486
    %784 = vmatprep.subr.mxu0 %v491
    %785 = vmatpush1.msra.mxu0 %v490
    %786 = vmatprep.subr.mxu0 %v495
    %787 = vmatpush1.msra.mxu0 %v494
    %788 = vmatprep.subr.mxu0 %v499
    %789 = vmatpush1.msra.mxu0 %v498
    %790 = vmatprep.subr.mxu0 %v503
    %791 = vmatpush1.msra.mxu0 %v502
    %792 = vmatprep.subr.mxu0 %v507
    %793 = vmatpush1.msra.mxu0 %v506
    %794 = vmatprep.subr.mxu0 %v511
    %795 = vmatpush1.msra.mxu0 %v510
    %796 = vmatprep.mubr.f32.mxu0 %v515
    %797 = vmatmul.mubr.f32.gmra.mrb[0].mxu0 %v514
    %v798 = vpop.f32.mrb[0].mxu0
    %v799 = vadd.f32 %v728, %v798
    %v800 = vpop.f32.mrb[0].mxu0
    %v801 = vadd.f32 %v730, %v800
    %802 = vdwg.mxu0
    %v803 = vld [vmem:[%s0 + $0x18] sm:$0xff]
    %v804 = vld [vmem:[%s0 + $0x20] sm:$0xff]
    %v805 = vld [vmem:[%s0 + $0x28] sm:$0xff]
    %806 = vmatprep.subr.mxu0 %v65
    %807 = vmatpush1.msra.mxu0 %v64
    %808 = vmatprep.subr.mxu0 %v69
    %809 = vmatpush1.msra.mxu0 %v68
    %810 = vmatprep.subr.mxu0 %v73
    %811 = vmatpush1.msra.mxu0 %v72
    %812 = vmatprep.subr.mxu0 %v77
    %813 = vmatpush1.msra.mxu0 %v76
    %814 = vmatprep.subr.mxu0 %v81
    %815 = vmatpush1.msra.mxu0 %v80
    %816 = vmatprep.subr.mxu0 %v85
    %817 = vmatpush1.msra.mxu0 %v84
    %818 = vmatprep.subr.mxu0 %v89
    %819 = vmatpush1.msra.mxu0 %v88
    %820 = vmatprep.subr.mxu0 %v93
    %821 = vmatpush1.msra.mxu0 %v92
    %822 = vmatprep.subr.mxu0 %v97
    %823 = vmatpush1.msra.mxu0 %v96
    %824 = vmatprep.subr.mxu0 %v101
    %825 = vmatpush1.msra.mxu0 %v100
    %826 = vmatprep.subr.mxu0 %v105
    %827 = vmatpush1.msra.mxu0 %v104
    %828 = vmatprep.subr.mxu0 %v109
    %829 = vmatpush1.msra.mxu0 %v108
    %830 = vmatprep.subr.mxu0 %v113
    %831 = vmatpush1.msra.mxu0 %v112
    %832 = vmatprep.subr.mxu0 %v117
    %833 = vmatpush1.msra.mxu0 %v116
    %834 = vmatprep.subr.mxu0 %v121
    %835 = vmatpush1.msra.mxu0 %v120
    %836 = vmatprep.subr.mxu0 %v125
    %837 = vmatpush1.msra.mxu0 %v124
    %838 = vmatprep.subr.mxu0 %v129
    %839 = vmatpush1.msra.mxu0 %v128
    %840 = vmatprep.subr.mxu0 %v133
    %841 = vmatpush1.msra.mxu0 %v132
    %842 = vmatprep.subr.mxu0 %v137
    %843 = vmatpush1.msra.mxu0 %v136
    %844 = vmatprep.subr.mxu0 %v141
    %845 = vmatpush1.msra.mxu0 %v140
    %846 = vmatprep.subr.mxu0 %v145
    %847 = vmatpush1.msra.mxu0 %v144
    %848 = vmatprep.subr.mxu0 %v149
    %849 = vmatpush1.msra.mxu0 %v148
    %850 = vmatprep.subr.mxu0 %v153
    %851 = vmatpush1.msra.mxu0 %v152
    %852 = vmatprep.subr.mxu0 %v157
    %853 = vmatpush1.msra.mxu0 %v156
    %854 = vmatprep.subr.mxu0 %v161
    %855 = vmatpush1.msra.mxu0 %v160
    %856 = vmatprep.subr.mxu0 %v165
    %857 = vmatpush1.msra.mxu0 %v164
    %858 = vmatprep.subr.mxu0 %v169
    %859 = vmatpush1.msra.mxu0 %v168
    %860 = vmatprep.subr.mxu0 %v173
    %861 = vmatpush1.msra.mxu0 %v172
    %862 = vmatprep.subr.mxu0 %v177
    %863 = vmatpush1.msra.mxu0 %v176
    %864 = vmatprep.subr.mxu0 %v181
    %865 = vmatpush1.msra.mxu0 %v180
    %866 = vmatprep.subr.mxu0 %v185
    %867 = vmatpush1.msra.mxu0 %v184
    %868 = vmatprep.subr.mxu0 %v189
    %869 = vmatpush1.msra.mxu0 %v188
    %870 = vmatprep.mubr.f32.mxu0 %v517
    %871 = vmatmul.mubr.f32.gmra.mrb[0].mxu0 %v516
    %v872 = vpop.f32.mrb[0].mxu0
    %v873 = vadd.f32 %v657, %v872
    %v874 = vpop.f32.mrb[0].mxu0
    %v875 = vadd.f32 %v659, %v874
    %876 = vdwg.mxu0
    %877 = vmatprep.subr.mxu0 %v193
    %878 = vmatpush1.msra.mxu0 %v192
    %879 = vmatprep.subr.mxu0 %v197
    %880 = vmatpush1.msra.mxu0 %v196
    %881 = vmatprep.subr.mxu0 %v201
    %882 = vmatpush1.msra.mxu0 %v200
    %883 = vmatprep.subr.mxu0 %v205
    %884 = vmatpush1.msra.mxu0 %v204
    %885 = vmatprep.subr.mxu0 %v209
    %886 = vmatpush1.msra.mxu0 %v208
    %887 = vmatprep.subr.mxu0 %v213
    %888 = vmatpush1.msra.mxu0 %v212
    %889 = vmatprep.subr.mxu0 %v217
    %890 = vmatpush1.msra.mxu0 %v216
    %891 = vmatprep.subr.mxu0 %v221
    %892 = vmatpush1.msra.mxu0 %v220
    %893 = vmatprep.subr.mxu0 %v225
    %894 = vmatpush1.msra.mxu0 %v224
    %895 = vmatprep.subr.mxu0 %v229
    %896 = vmatpush1.msra.mxu0 %v228
    %897 = vmatprep.subr.mxu0 %v233
    %898 = vmatpush1.msra.mxu0 %v232
    %899 = vmatprep.subr.mxu0 %v237
    %900 = vmatpush1.msra.mxu0 %v236
    %901 = vmatprep.subr.mxu0 %v241
    %902 = vmatpush1.msra.mxu0 %v240
    %903 = vmatprep.subr.mxu0 %v245
    %904 = vmatpush1.msra.mxu0 %v244
    %905 = vmatprep.subr.mxu0 %v249
    %906 = vmatpush1.msra.mxu0 %v248
    %907 = vmatprep.subr.mxu0 %v253
    %908 = vmatpush1.msra.mxu0 %v252
    %909 = vmatprep.subr.mxu0 0.0
    %910 = vmatpush1.msra.mxu0 0.0
    %911 = vmatprep.subr.mxu0 0.0
    %912 = vmatpush1.msra.mxu0 0.0
    %913 = vmatprep.subr.mxu0 0.0
    %914 = vmatpush1.msra.mxu0 0.0
    %915 = vmatprep.subr.mxu0 0.0
    %916 = vmatpush1.msra.mxu0 0.0
    %917 = vmatprep.subr.mxu0 0.0
    %918 = vmatpush1.msra.mxu0 0.0
    %919 = vmatprep.subr.mxu0 0.0
    %920 = vmatpush1.msra.mxu0 0.0
    %921 = vmatprep.subr.mxu0 0.0
    %922 = vmatpush1.msra.mxu0 0.0
    %923 = vmatprep.subr.mxu0 0.0
    %924 = vmatpush1.msra.mxu0 0.0
    %925 = vmatprep.subr.mxu0 0.0
    %926 = vmatpush1.msra.mxu0 0.0
    %927 = vmatprep.subr.mxu0 0.0
    %928 = vmatpush1.msra.mxu0 0.0
    %929 = vmatprep.subr.mxu0 0.0
    %930 = vmatpush1.msra.mxu0 0.0
    %931 = vmatprep.subr.mxu0 0.0
    %932 = vmatpush1.msra.mxu0 0.0
    %933 = vmatprep.subr.mxu0 0.0
    %934 = vmatpush1.msra.mxu0 0.0
    %935 = vmatprep.subr.mxu0 0.0
    %936 = vmatpush1.msra.mxu0 0.0
    %937 = vmatprep.subr.mxu0 0.0
    %938 = vmatpush1.msra.mxu0 0.0
    %939 = vmatprep.subr.mxu0 0.0
    %940 = vmatpush1.msra.mxu0 0.0
    %941 = vmatprep.mubr.f32.mxu0 0.0
    %942 = vmatmul.mubr.f32.gmra.mrb[0].mxu0 %v518
    %v943 = vpop.f32.mrb[0].mxu0
    %v944 = vadd.f32 %v873, %v943
    %v945 = vpop.f32.mrb[0].mxu0
    %v946 = vadd.f32 %v875, %v945
    %947 = vdwg.mxu0
    %948 = vmatprep.subr.mxu0 %v67
    %949 = vmatpush1.msra.mxu0 %v66
    %950 = vmatprep.subr.mxu0 %v71
    %951 = vmatpush1.msra.mxu0 %v70
    %952 = vmatprep.subr.mxu0 %v75
    %953 = vmatpush1.msra.mxu0 %v74
    %954 = vmatprep.subr.mxu0 %v79
    %955 = vmatpush1.msra.mxu0 %v78
    %956 = vmatprep.subr.mxu0 %v83
    %957 = vmatpush1.msra.mxu0 %v82
    %958 = vmatprep.subr.mxu0 %v87
    %959 = vmatpush1.msra.mxu0 %v86
    %960 = vmatprep.subr.mxu0 %v91
    %961 = vmatpush1.msra.mxu0 %v90
    %962 = vmatprep.subr.mxu0 %v95
    %963 = vmatpush1.msra.mxu0 %v94
    %964 = vmatprep.subr.mxu0 %v99
    %965 = vmatpush1.msra.mxu0 %v98
    %966 = vmatprep.subr.mxu0 %v103
    %967 = vmatpush1.msra.mxu0 %v102
    %968 = vmatprep.subr.mxu0 %v107
    %969 = vmatpush1.msra.mxu0 %v106
    %970 = vmatprep.subr.mxu0 %v111
    %971 = vmatpush1.msra.mxu0 %v110
    %972 = vmatprep.subr.mxu0 %v115
    %973 = vmatpush1.msra.mxu0 %v114
    %974 = vmatprep.subr.mxu0 %v119
    %975 = vmatpush1.msra.mxu0 %v118
    %976 = vmatprep.subr.mxu0 %v123
    %977 = vmatpush1.msra.mxu0 %v122
    %978 = vmatprep.subr.mxu0 %v127
    %979 = vmatpush1.msra.mxu0 %v126
    %980 = vmatprep.subr.mxu0 %v131
    %981 = vmatpush1.msra.mxu0 %v130
    %982 = vmatprep.subr.mxu0 %v135
    %983 = vmatpush1.msra.mxu0 %v134
    %984 = vmatprep.subr.mxu0 %v139
    %985 = vmatpush1.msra.mxu0 %v138
    %986 = vmatprep.subr.mxu0 %v143
    %987 = vmatpush1.msra.mxu0 %v142
    %988 = vmatprep.subr.mxu0 %v147
    %989 = vmatpush1.msra.mxu0 %v146
    %990 = vmatprep.subr.mxu0 %v151
    %991 = vmatpush1.msra.mxu0 %v150
    %992 = vmatprep.subr.mxu0 %v155
    %993 = vmatpush1.msra.mxu0 %v154
    %994 = vmatprep.subr.mxu0 %v159
    %995 = vmatpush1.msra.mxu0 %v158
    %996 = vmatprep.subr.mxu0 %v163
    %997 = vmatpush1.msra.mxu0 %v162
    %998 = vmatprep.subr.mxu0 %v167
    %999 = vmatpush1.msra.mxu0 %v166
    %1000 = vmatprep.subr.mxu0 %v171
    %1001 = vmatpush1.msra.mxu0 %v170
    %1002 = vmatprep.subr.mxu0 %v175
    %1003 = vmatpush1.msra.mxu0 %v174
    %1004 = vmatprep.subr.mxu0 %v179
    %1005 = vmatpush1.msra.mxu0 %v178
    %1006 = vmatprep.subr.mxu0 %v183
    %1007 = vmatpush1.msra.mxu0 %v182
    %1008 = vmatprep.subr.mxu0 %v187
    %1009 = vmatpush1.msra.mxu0 %v186
    %1010 = vmatprep.subr.mxu0 %v191
    %1011 = vmatpush1.msra.mxu0 %v190
    %1012 = vmatprep.mubr.f32.mxu0 %v517
    %1013 = vmatmul.mubr.f32.gmra.mrb[0].mxu0 %v516
    %v1014 = vpop.f32.mrb[0].mxu0
    %v1015 = vadd.f32 %v799, %v1014
    %v1016 = vpop.f32.mrb[0].mxu0
    %v1017 = vadd.f32 %v801, %v1016
    %1018 = vdwg.mxu0
    %1019 = vmatprep.subr.mxu0 %v195
    %1020 = vmatpush1.msra.mxu0 %v194
    %1021 = vmatprep.subr.mxu0 %v199
    %1022 = vmatpush1.msra.mxu0 %v198
    %1023 = vmatprep.subr.mxu0 %v203
    %1024 = vmatpush1.msra.mxu0 %v202
    %1025 = vmatprep.subr.mxu0 %v207
    %1026 = vmatpush1.msra.mxu0 %v206
    %1027 = vmatprep.subr.mxu0 %v211
    %1028 = vmatpush1.msra.mxu0 %v210
    %1029 = vmatprep.subr.mxu0 %v215
    %1030 = vmatpush1.msra.mxu0 %v214
    %1031 = vmatprep.subr.mxu0 %v219
    %1032 = vmatpush1.msra.mxu0 %v218
    %1033 = vmatprep.subr.mxu0 %v223
    %1034 = vmatpush1.msra.mxu0 %v222
    %1035 = vmatprep.subr.mxu0 %v227
    %1036 = vmatpush1.msra.mxu0 %v226
    %1037 = vmatprep.subr.mxu0 %v231
    %1038 = vmatpush1.msra.mxu0 %v230
    %1039 = vmatprep.subr.mxu0 %v235
    %1040 = vmatpush1.msra.mxu0 %v234
    %1041 = vmatprep.subr.mxu0 %v239
    %1042 = vmatpush1.msra.mxu0 %v238
    %1043 = vmatprep.subr.mxu0 %v243
    %1044 = vmatpush1.msra.mxu0 %v242
    %1045 = vmatprep.subr.mxu0 %v247
    %1046 = vmatpush1.msra.mxu0 %v246
    %1047 = vmatprep.subr.mxu0 %v251
    %1048 = vmatpush1.msra.mxu0 %v250
    %1049 = vmatprep.subr.mxu0 %v255
    %1050 = vmatpush1.msra.mxu0 %v254
    %1051 = vmatprep.subr.mxu0 0.0
    %1052 = vmatpush1.msra.mxu0 0.0
    %1053 = vmatprep.subr.mxu0 0.0
    %1054 = vmatpush1.msra.mxu0 0.0
    %1055 = vmatprep.subr.mxu0 0.0
    %1056 = vmatpush1.msra.mxu0 0.0
    %1057 = vmatprep.subr.mxu0 0.0
    %1058 = vmatpush1.msra.mxu0 0.0
    %1059 = vmatprep.subr.mxu0 0.0
    %1060 = vmatpush1.msra.mxu0 0.0
    %1061 = vmatprep.subr.mxu0 0.0
    %1062 = vmatpush1.msra.mxu0 0.0
    %1063 = vmatprep.subr.mxu0 0.0
    %1064 = vmatpush1.msra.mxu0 0.0
    %1065 = vmatprep.subr.mxu0 0.0
    %1066 = vmatpush1.msra.mxu0 0.0
    %1067 = vmatprep.subr.mxu0 0.0
    %1068 = vmatpush1.msra.mxu0 0.0
    %1069 = vmatprep.subr.mxu0 0.0
    %1070 = vmatpush1.msra.mxu0 0.0
    %1071 = vmatprep.subr.mxu0 0.0
    %1072 = vmatpush1.msra.mxu0 0.0
    %1073 = vmatprep.subr.mxu0 0.0
    %1074 = vmatpush1.msra.mxu0 0.0
    %1075 = vmatprep.subr.mxu0 0.0
    %1076 = vmatpush1.msra.mxu0 0.0
    %1077 = vmatprep.subr.mxu0 0.0
    %1078 = vmatpush1.msra.mxu0 0.0
    %1079 = vmatprep.subr.mxu0 0.0
    %1080 = vmatpush1.msra.mxu0 0.0
    %1081 = vmatprep.subr.mxu0 0.0
    %1082 = vmatpush1.msra.mxu0 0.0
    %1083 = vmatprep.mubr.f32.mxu0 0.0
    %1084 = vmatmul.mubr.f32.gmra.mrb[0].mxu0 %v518
    %v1085 = vpop.f32.mrb[0].mxu0
    %v1086 = vadd.f32 %v1015, %v1085
    %v1087 = vpop.f32.mrb[0].mxu0
    %v1088 = vadd.f32 %v1017, %v1087
    %1089 = vdwg.mxu0
    %v1090 = vtanh.pop %v944
    %v1091 = vtanh.pop %v946
    %v1092 = vtanh.pop %v1086
    %v1093 = vtanh.pop %v1088
    %1094 = vmatprep.subr.mxu0 %v257
    %1095 = vmatpush1.msra.mxu0 %v256
    %1096 = vmatprep.subr.mxu0 %v261
    %1097 = vmatpush1.msra.mxu0 %v260
    %1098 = vmatprep.subr.mxu0 %v265
    %1099 = vmatpush1.msra.mxu0 %v264
    %1100 = vmatprep.subr.mxu0 %v269
    %1101 = vmatpush1.msra.mxu0 %v268
    %1102 = vmatprep.subr.mxu0 %v273
    %1103 = vmatpush1.msra.mxu0 %v272
    %1104 = vmatprep.subr.mxu0 %v277
    %1105 = vmatpush1.msra.mxu0 %v276
    %1106 = vmatprep.subr.mxu0 %v281
    %1107 = vmatpush1.msra.mxu0 %v280
    %1108 = vmatprep.subr.mxu0 %v285
    %1109 = vmatpush1.msra.mxu0 %v284
    %1110 = vmatprep.subr.mxu0 %v289
    %1111 = vmatpush1.msra.mxu0 %v288
    %1112 = vmatprep.subr.mxu0 %v293
    %1113 = vmatpush1.msra.mxu0 %v292
    %1114 = vmatprep.subr.mxu0 %v297
    %1115 = vmatpush1.msra.mxu0 %v296
    %1116 = vmatprep.subr.mxu0 %v301
    %1117 = vmatpush1.msra.mxu0 %v300
    %1118 = vmatprep.subr.mxu0 %v305
    %1119 = vmatpush1.msra.mxu0 %v304
    %1120 = vmatprep.subr.mxu0 %v309
    %1121 = vmatpush1.msra.mxu0 %v308
    %1122 = vmatprep.subr.mxu0 %v313
    %1123 = vmatpush1.msra.mxu0 %v312
    %1124 = vmatprep.subr.mxu0 %v317
    %1125 = vmatpush1.msra.mxu0 %v316
    %1126 = vmatprep.subr.mxu0 %v321
    %1127 = vmatpush1.msra.mxu0 %v320
    %1128 = vmatprep.subr.mxu0 %v325
    %1129 = vmatpush1.msra.mxu0 %v324
    %1130 = vmatprep.subr.mxu0 %v329
    %1131 = vmatpush1.msra.mxu0 %v328
    %1132 = vmatprep.subr.mxu0 %v333
    %1133 = vmatpush1.msra.mxu0 %v332
    %1134 = vmatprep.subr.mxu0 %v337
    %1135 = vmatpush1.msra.mxu0 %v336
    %1136 = vmatprep.subr.mxu0 %v341
    %1137 = vmatpush1.msra.mxu0 %v340
    %1138 = vmatprep.subr.mxu0 %v345
    %1139 = vmatpush1.msra.mxu0 %v344
    %1140 = vmatprep.subr.mxu0 %v349
    %1141 = vmatpush1.msra.mxu0 %v348
    %1142 = vmatprep.subr.mxu0 %v353
    %1143 = vmatpush1.msra.mxu0 %v352
    %1144 = vmatprep.subr.mxu0 %v357
    %1145 = vmatpush1.msra.mxu0 %v356
    %1146 = vmatprep.subr.mxu0 %v361
    %1147 = vmatpush1.msra.mxu0 %v360
    %1148 = vmatprep.subr.mxu0 %v365
    %1149 = vmatpush1.msra.mxu0 %v364
    %1150 = vmatprep.subr.mxu0 %v369
    %1151 = vmatpush1.msra.mxu0 %v368
    %1152 = vmatprep.subr.mxu0 %v373
    %1153 = vmatpush1.msra.mxu0 %v372
    %1154 = vmatprep.subr.mxu0 %v377
    %1155 = vmatpush1.msra.mxu0 %v376
    %1156 = vmatprep.subr.mxu0 %v381
    %1157 = vmatpush1.msra.mxu0 %v380
    %1158 = vmatprep.mubr.f32.mxu0 %v1091
    %1159 = vmatmul.mubr.f32.gmra.mrb[0].mxu0 %v1090
    %v1160 = vpop.f32.mrb[0].mxu0
    %v1161 = vadd.f32 0.0, %v1160
    %v1162 = vpop.f32.mrb[0].mxu0
    %v1163 = vadd.f32 0.0, %v1162
    %1164 = vdwg.mxu0
    %1165 = vmatprep.subr.mxu0 %v385
    %1166 = vmatpush1.msra.mxu0 %v384
    %1167 = vmatprep.subr.mxu0 %v389
    %1168 = vmatpush1.msra.mxu0 %v388
    %1169 = vmatprep.subr.mxu0 %v393
    %1170 = vmatpush1.msra.mxu0 %v392
    %1171 = vmatprep.subr.mxu0 %v397
    %1172 = vmatpush1.msra.mxu0 %v396
    %1173 = vmatprep.subr.mxu0 %v401
    %1174 = vmatpush1.msra.mxu0 %v400
    %1175 = vmatprep.subr.mxu0 %v405
    %1176 = vmatpush1.msra.mxu0 %v404
    %1177 = vmatprep.subr.mxu0 %v409
    %1178 = vmatpush1.msra.mxu0 %v408
    %1179 = vmatprep.subr.mxu0 %v413
    %1180 = vmatpush1.msra.mxu0 %v412
    %1181 = vmatprep.subr.mxu0 %v417
    %1182 = vmatpush1.msra.mxu0 %v416
    %1183 = vmatprep.subr.mxu0 %v421
    %1184 = vmatpush1.msra.mxu0 %v420
    %1185 = vmatprep.subr.mxu0 %v425
    %1186 = vmatpush1.msra.mxu0 %v424
    %1187 = vmatprep.subr.mxu0 %v429
    %1188 = vmatpush1.msra.mxu0 %v428
    %1189 = vmatprep.subr.mxu0 %v433
    %1190 = vmatpush1.msra.mxu0 %v432
    %1191 = vmatprep.subr.mxu0 %v437
    %1192 = vmatpush1.msra.mxu0 %v436
    %1193 = vmatprep.subr.mxu0 %v441
    %1194 = vmatpush1.msra.mxu0 %v440
    %1195 = vmatprep.subr.mxu0 %v445
    %1196 = vmatpush1.msra.mxu0 %v444
    %1197 = vmatprep.subr.mxu0 %v449
    %1198 = vmatpush1.msra.mxu0 %v448
    %1199 = vmatprep.subr.mxu0 %v453
    %1200 = vmatpush1.msra.mxu0 %v452
    %1201 = vmatprep.subr.mxu0 %v457
    %1202 = vmatpush1.msra.mxu0 %v456
    %1203 = vmatprep.subr.mxu0 %v461
    %1204 = vmatpush1.msra.mxu0 %v460
    %1205 = vmatprep.subr.mxu0 %v465
    %1206 = vmatpush1.msra.mxu0 %v464
    %1207 = vmatprep.subr.mxu0 %v469
    %1208 = vmatpush1.msra.mxu0 %v468
    %1209 = vmatprep.subr.mxu0 %v473
    %1210 = vmatpush1.msra.mxu0 %v472
    %1211 = vmatprep.subr.mxu0 %v477
    %1212 = vmatpush1.msra.mxu0 %v476
    %1213 = vmatprep.subr.mxu0 %v481
    %1214 = vmatpush1.msra.mxu0 %v480
    %1215 = vmatprep.subr.mxu0 %v485
    %1216 = vmatpush1.msra.mxu0 %v484
    %1217 = vmatprep.subr.mxu0 %v489
    %1218 = vmatpush1.msra.mxu0 %v488
    %1219 = vmatprep.subr.mxu0 %v493
    %1220 = vmatpush1.msra.mxu0 %v492
    %1221 = vmatprep.subr.mxu0 %v497
    %1222 = vmatpush1.msra.mxu0 %v496
    %1223 = vmatprep.subr.mxu0 %v501
    %1224 = vmatpush1.msra.mxu0 %v500
    %1225 = vmatprep.subr.mxu0 %v505
    %1226 = vmatpush1.msra.mxu0 %v504
    %1227 = vmatprep.subr.mxu0 %v509
    %1228 = vmatpush1.msra.mxu0 %v508
    %1229 = vmatprep.mubr.f32.mxu0 %v1093
    %1230 = vmatmul.mubr.f32.gmra.mrb[0].mxu0 %v1092
    %v1231 = vpop.f32.mrb[0].mxu0
    %v1232 = vadd.f32 %v1161, %v1231
    %v1233 = vpop.f32.mrb[0].mxu0
    %v1234 = vadd.f32 %v1163, %v1233
    %1235 = vdwg.mxu0
    %1236 = vmatprep.subr.mxu0 %v259
    %1237 = vmatpush1.msra.mxu0 %v258
    %1238 = vmatprep.subr.mxu0 %v263
    %1239 = vmatpush1.msra.mxu0 %v262
    %1240 = vmatprep.subr.mxu0 %v267
    %1241 = vmatpush1.msra.mxu0 %v266
    %1242 = vmatprep.subr.mxu0 %v271
    %1243 = vmatpush1.msra.mxu0 %v270
    %1244 = vmatprep.subr.mxu0 %v275
    %1245 = vmatpush1.msra.mxu0 %v274
    %1246 = vmatprep.subr.mxu0 %v279
    %1247 = vmatpush1.msra.mxu0 %v278
    %1248 = vmatprep.subr.mxu0 %v283
    %1249 = vmatpush1.msra.mxu0 %v282
    %1250 = vmatprep.subr.mxu0 %v287
    %1251 = vmatpush1.msra.mxu0 %v286
    %1252 = vmatprep.subr.mxu0 %v291
    %1253 = vmatpush1.msra.mxu0 %v290
    %1254 = vmatprep.subr.mxu0 %v295
    %1255 = vmatpush1.msra.mxu0 %v294
    %1256 = vmatprep.subr.mxu0 %v299
    %1257 = vmatpush1.msra.mxu0 %v298
    %1258 = vmatprep.subr.mxu0 %v303
    %1259 = vmatpush1.msra.mxu0 %v302
    %1260 = vmatprep.subr.mxu0 %v307
    %1261 = vmatpush1.msra.mxu0 %v306
    %1262 = vmatprep.subr.mxu0 %v311
    %1263 = vmatpush1.msra.mxu0 %v310
    %1264 = vmatprep.subr.mxu0 %v315
    %1265 = vmatpush1.msra.mxu0 %v314
    %1266 = vmatprep.subr.mxu0 %v319
    %1267 = vmatpush1.msra.mxu0 %v318
    %1268 = vmatprep.subr.mxu0 %v323
    %1269 = vmatpush1.msra.mxu0 %v322
    %1270 = vmatprep.subr.mxu0 %v327
    %1271 = vmatpush1.msra.mxu0 %v326
    %1272 = vmatprep.subr.mxu0 %v331
    %1273 = vmatpush1.msra.mxu0 %v330
    %1274 = vmatprep.subr.mxu0 %v335
    %1275 = vmatpush1.msra.mxu0 %v334
    %1276 = vmatprep.subr.mxu0 %v339
    %1277 = vmatpush1.msra.mxu0 %v338
    %1278 = vmatprep.subr.mxu0 %v343
    %1279 = vmatpush1.msra.mxu0 %v342
    %1280 = vmatprep.subr.mxu0 %v347
    %1281 = vmatpush1.msra.mxu0 %v346
    %1282 = vmatprep.subr.mxu0 %v351
    %1283 = vmatpush1.msra.mxu0 %v350
    %1284 = vmatprep.subr.mxu0 %v355
    %1285 = vmatpush1.msra.mxu0 %v354
    %1286 = vmatprep.subr.mxu0 %v359
    %1287 = vmatpush1.msra.mxu0 %v358
    %1288 = vmatprep.subr.mxu0 %v363
    %1289 = vmatpush1.msra.mxu0 %v362
    %1290 = vmatprep.subr.mxu0 %v367
    %1291 = vmatpush1.msra.mxu0 %v366
    %1292 = vmatprep.subr.mxu0 %v371
    %1293 = vmatpush1.msra.mxu0 %v370
    %1294 = vmatprep.subr.mxu0 %v375
    %1295 = vmatpush1.msra.mxu0 %v374
    %1296 = vmatprep.subr.mxu0 %v379
    %1297 = vmatpush1.msra.mxu0 %v378
    %1298 = vmatprep.subr.mxu0 %v383
    %1299 = vmatpush1.msra.mxu0 %v382
    %1300 = vmatprep.mubr.f32.mxu0 %v1091
    %1301 = vmatmul.mubr.f32.gmra.mrb[0].mxu0 %v1090
    %v1302 = vpop.f32.mrb[0].mxu0
    %v1303 = vadd.f32 0.0, %v1302
    %v1304 = vpop.f32.mrb[0].mxu0
    %v1305 = vadd.f32 0.0, %v1304
    %1306 = vdwg.mxu0
    %1307 = vmatprep.subr.mxu0 %v387
    %1308 = vmatpush1.msra.mxu0 %v386
    %1309 = vmatprep.subr.mxu0 %v391
    %1310 = vmatpush1.msra.mxu0 %v390
    %1311 = vmatprep.subr.mxu0 %v395
    %1312 = vmatpush1.msra.mxu0 %v394
    %1313 = vmatprep.subr.mxu0 %v399
    %1314 = vmatpush1.msra.mxu0 %v398
    %1315 = vmatprep.subr.mxu0 %v403
    %1316 = vmatpush1.msra.mxu0 %v402
    %1317 = vmatprep.subr.mxu0 %v407
    %1318 = vmatpush1.msra.mxu0 %v406
    %1319 = vmatprep.subr.mxu0 %v411
    %1320 = vmatpush1.msra.mxu0 %v410
    %1321 = vmatprep.subr.mxu0 %v415
    %1322 = vmatpush1.msra.mxu0 %v414
    %1323 = vmatprep.subr.mxu0 %v419
    %1324 = vmatpush1.msra.mxu0 %v418
    %1325 = vmatprep.subr.mxu0 %v423
    %1326 = vmatpush1.msra.mxu0 %v422
    %1327 = vmatprep.subr.mxu0 %v427
    %1328 = vmatpush1.msra.mxu0 %v426
    %1329 = vmatprep.subr.mxu0 %v431
    %1330 = vmatpush1.msra.mxu0 %v430
    %1331 = vmatprep.subr.mxu0 %v435
    %1332 = vmatpush1.msra.mxu0 %v434
    %1333 = vmatprep.subr.mxu0 %v439
    %1334 = vmatpush1.msra.mxu0 %v438
    %1335 = vmatprep.subr.mxu0 %v443
    %1336 = vmatpush1.msra.mxu0 %v442
    %1337 = vmatprep.subr.mxu0 %v447
    %1338 = vmatpush1.msra.mxu0 %v446
    %1339 = vmatprep.subr.mxu0 %v451
    %1340 = vmatpush1.msra.mxu0 %v450
    %1341 = vmatprep.subr.mxu0 %v455
    %1342 = vmatpush1.msra.mxu0 %v454
    %1343 = vmatprep.subr.mxu0 %v459
    %1344 = vmatpush1.msra.mxu0 %v458
    %1345 = vmatprep.subr.mxu0 %v463
    %1346 = vmatpush1.msra.mxu0 %v462
    %1347 = vmatprep.subr.mxu0 %v467
    %1348 = vmatpush1.msra.mxu0 %v466
    %1349 = vmatprep.subr.mxu0 %v471
    %1350 = vmatpush1.msra.mxu0 %v470
    %1351 = vmatprep.subr.mxu0 %v475
    %1352 = vmatpush1.msra.mxu0 %v474
    %1353 = vmatprep.subr.mxu0 %v479
    %1354 = vmatpush1.msra.mxu0 %v478
    %1355 = vmatprep.subr.mxu0 %v483
    %1356 = vmatpush1.msra.mxu0 %v482
    %1357 = vmatprep.subr.mxu0 %v487
    %1358 = vmatpush1.msra.mxu0 %v486
    %1359 = vmatprep.subr.mxu0 %v491
    %1360 = vmatpush1.msra.mxu0 %v490
    %1361 = vmatprep.subr.mxu0 %v495
    %1362 = vmatpush1.msra.mxu0 %v494
    %1363 = vmatprep.subr.mxu0 %v499
    %1364 = vmatpush1.msra.mxu0 %v498
    %1365 = vmatprep.subr.mxu0 %v503
    %1366 = vmatpush1.msra.mxu0 %v502
    %1367 = vmatprep.subr.mxu0 %v507
    %1368 = vmatpush1.msra.mxu0 %v506
    %1369 = vmatprep.subr.mxu0 %v511
    %1370 = vmatpush1.msra.mxu0 %v510
    %1371 = vmatprep.mubr.f32.mxu0 %v1093
    %1372 = vmatmul.mubr.f32.gmra.mrb[0].mxu0 %v1092
    %v1373 = vpop.f32.mrb[0].mxu0
    %v1374 = vadd.f32 %v1303, %v1373
    %v1375 = vpop.f32.mrb[0].mxu0
    %v1376 = vadd.f32 %v1305, %v1375
    %1377 = vdwg.mxu0
    %v1378 = vld [vmem:[%s0 + $0x30] sm:$0xff]
    %v1379 = vld [vmem:[%s0 + $0x38] sm:$0xff]
    %v1380 = vld [vmem:[%s0 + $0x40] sm:$0xff]
    %1381 = vmatprep.subr.mxu0 %v65
    %1382 = vmatpush1.msra.mxu0 %v64
    %1383 = vmatprep.subr.mxu0 %v69
    %1384 = vmatpush1.msra.mxu0 %v68
    %1385 = vmatprep.subr.mxu0 %v73
    %1386 = vmatpush1.msra.mxu0 %v72
    %1387 = vmatprep.subr.mxu0 %v77
    %1388 = vmatpush1.msra.mxu0 %v76
    %1389 = vmatprep.subr.mxu0 %v81
    %1390 = vmatpush1.msra.mxu0 %v80
    %1391 = vmatprep.subr.mxu0 %v85
    %1392 = vmatpush1.msra.mxu0 %v84
    %1393 = vmatprep.subr.mxu0 %v89
    %1394 = vmatpush1.msra.mxu0 %v88
    %1395 = vmatprep.subr.mxu0 %v93
    %1396 = vmatpush1.msra.mxu0 %v92
    %1397 = vmatprep.subr.mxu0 %v97
    %1398 = vmatpush1.msra.mxu0 %v96
    %1399 = vmatprep.subr.mxu0 %v101
    %1400 = vmatpush1.msra.mxu0 %v100
    %1401 = vmatprep.subr.mxu0 %v105
    %1402 = vmatpush1.msra.mxu0 %v104
    %1403 = vmatprep.subr.mxu0 %v109
    %1404 = vmatpush1.msra.mxu0 %v108
    %1405 = vmatprep.subr.mxu0 %v113
    %1406 = vmatpush1.msra.mxu0 %v112
    %1407 = vmatprep.subr.mxu0 %v117
    %1408 = vmatpush1.msra.mxu0 %v116
    %1409 = vmatprep.subr.mxu0 %v121
    %1410 = vmatpush1.msra.mxu0 %v120
    %1411 = vmatprep.subr.mxu0 %v125
    %1412 = vmatpush1.msra.mxu0 %v124
    %1413 = vmatprep.subr.mxu0 %v129
    %1414 = vmatpush1.msra.mxu0 %v128
    %1415 = vmatprep.subr.mxu0 %v133
    %1416 = vmatpush1.msra.mxu0 %v132
    %1417 = vmatprep.subr.mxu0 %v137
    %1418 = vmatpush1.msra.mxu0 %v136
    %1419 = vmatprep.subr.mxu0 %v141
    %1420 = vmatpush1.msra.mxu0 %v140
    %1421 = vmatprep.subr.mxu0 %v145
    %1422 = vmatpush1.msra.mxu0 %v144
    %1423 = vmatprep.subr.mxu0 %v149
    %1424 = vmatpush1.msra.mxu0 %v148
    %1425 = vmatprep.subr.mxu0 %v153
    %1426 = vmatpush1.msra.mxu0 %v152
    %1427 = vmatprep.subr.mxu0 %v157
    %1428 = vmatpush1.msra.mxu0 %v156
    %1429 = vmatprep.subr.mxu0 %v161
    %1430 = vmatpush1.msra.mxu0 %v160
    %1431 = vmatprep.subr.mxu0 %v165
    %1432 = vmatpush1.msra.mxu0 %v164
    %1433 = vmatprep.subr.mxu0 %v169
    %1434 = vmatpush1.msra.mxu0 %v168
    %1435 = vmatprep.subr.mxu0 %v173
    %1436 = vmatpush1.msra.mxu0 %v172
    %1437 = vmatprep.subr.mxu0 %v177
    %1438 = vmatpush1.msra.mxu0 %v176
    %1439 = vmatprep.subr.mxu0 %v181
    %1440 = vmatpush1.msra.mxu0 %v180
    %1441 = vmatprep.subr.mxu0 %v185
    %1442 = vmatpush1.msra.mxu0 %v184
    %1443 = vmatprep.subr.mxu0 %v189
    %1444 = vmatpush1.msra.mxu0 %v188
    %1445 = vmatprep.mubr.f32.mxu0 %v804
    %1446 = vmatmul.mubr.f32.gmra.mrb[0].mxu0 %v803
    %v1447 = vpop.f32.mrb[0].mxu0
    %v1448 = vadd.f32 %v1232, %v1447
    %v1449 = vpop.f32.mrb[0].mxu0
    %v1450 = vadd.f32 %v1234, %v1449
    %1451 = vdwg.mxu0
    %1452 = vmatprep.subr.mxu0 %v193
    %1453 = vmatpush1.msra.mxu0 %v192
    %1454 = vmatprep.subr.mxu0 %v197
    %1455 = vmatpush1.msra.mxu0 %v196
    %1456 = vmatprep.subr.mxu0 %v201
    %1457 = vmatpush1.msra.mxu0 %v200
    %1458 = vmatprep.subr.mxu0 %v205
    %1459 = vmatpush1.msra.mxu0 %v204
    %1460 = vmatprep.subr.mxu0 %v209
    %1461 = vmatpush1.msra.mxu0 %v208
    %1462 = vmatprep.subr.mxu0 %v213
    %1463 = vmatpush1.msra.mxu0 %v212
    %1464 = vmatprep.subr.mxu0 %v217
    %1465 = vmatpush1.msra.mxu0 %v216
    %1466 = vmatprep.subr.mxu0 %v221
    %1467 = vmatpush1.msra.mxu0 %v220
    %1468 = vmatprep.subr.mxu0 %v225
    %1469 = vmatpush1.msra.mxu0 %v224
    %1470 = vmatprep.subr.mxu0 %v229
    %1471 = vmatpush1.msra.mxu0 %v228
    %1472 = vmatprep.subr.mxu0 %v233
    %1473 = vmatpush1.msra.mxu0 %v232
    %1474 = vmatprep.subr.mxu0 %v237
    %1475 = vmatpush1.msra.mxu0 %v236
    %1476 = vmatprep.subr.mxu0 %v241
    %1477 = vmatpush1.msra.mxu0 %v240
    %1478 = vmatprep.subr.mxu0 %v245
    %1479 = vmatpush1.msra.mxu0 %v244
    %1480 = vmatprep.subr.mxu0 %v249
    %1481 = vmatpush1.msra.mxu0 %v248
    %1482 = vmatprep.subr.mxu0 %v253
    %1483 = vmatpush1.msra.mxu0 %v252
    %1484 = vmatprep.subr.mxu0 0.0
    %1485 = vmatpush1.msra.mxu0 0.0
    %1486 = vmatprep.subr.mxu0 0.0
    %1487 = vmatpush1.msra.mxu0 0.0
    %1488 = vmatprep.subr.mxu0 0.0
    %1489 = vmatpush1.msra.mxu0 0.0
    %1490 = vmatprep.subr.mxu0 0.0
    %1491 = vmatpush1.msra.mxu0 0.0
    %1492 = vmatprep.subr.mxu0 0.0
    %1493 = vmatpush1.msra.mxu0 0.0
    %1494 = vmatprep.subr.mxu0 0.0
    %1495 = vmatpush1.msra.mxu0 0.0
    %1496 = vmatprep.subr.mxu0 0.0
    %1497 = vmatpush1.msra.mxu0 0.0
    %1498 = vmatprep.subr.mxu0 0.0
    %1499 = vmatpush1.msra.mxu0 0.0
    %1500 = vmatprep.subr.mxu0 0.0
    %1501 = vmatpush1.msra.mxu0 0.0
    %1502 = vmatprep.subr.mxu0 0.0
    %1503 = vmatpush1.msra.mxu0 0.0
    %1504 = vmatprep.subr.mxu0 0.0
    %1505 = vmatpush1.msra.mxu0 0.0
    %1506 = vmatprep.subr.mxu0 0.0
    %1507 = vmatpush1.msra.mxu0 0.0
    %1508 = vmatprep.subr.mxu0 0.0
    %1509 = vmatpush1.msra.mxu0 0.0
    %1510 = vmatprep.subr.mxu0 0.0
    %1511 = vmatpush1.msra.mxu0 0.0
    %1512 = vmatprep.subr.mxu0 0.0
    %1513 = vmatpush1.msra.mxu0 0.0
    %1514 = vmatprep.subr.mxu0 0.0
    %1515 = vmatpush1.msra.mxu0 0.0
    %1516 = vmatprep.mubr.f32.mxu0 0.0
    %1517 = vmatmul.mubr.f32.gmra.mrb[0].mxu0 %v805
    %v1518 = vpop.f32.mrb[0].mxu0
    %v1519 = vadd.f32 %v1448, %v1518
    %v1520 = vpop.f32.mrb[0].mxu0
    %v1521 = vadd.f32 %v1450, %v1520
    %1522 = vdwg.mxu0
    %1523 = vmatprep.subr.mxu0 %v67
    %1524 = vmatpush1.msra.mxu0 %v66
    %1525 = vmatprep.subr.mxu0 %v71
    %1526 = vmatpush1.msra.mxu0 %v70
    %1527 = vmatprep.subr.mxu0 %v75
    %1528 = vmatpush1.msra.mxu0 %v74
    %1529 = vmatprep.subr.mxu0 %v79
    %1530 = vmatpush1.msra.mxu0 %v78
    %1531 = vmatprep.subr.mxu0 %v83
    %1532 = vmatpush1.msra.mxu0 %v82
    %1533 = vmatprep.subr.mxu0 %v87
    %1534 = vmatpush1.msra.mxu0 %v86
    %1535 = vmatprep.subr.mxu0 %v91
    %1536 = vmatpush1.msra.mxu0 %v90
    %1537 = vmatprep.subr.mxu0 %v95
    %1538 = vmatpush1.msra.mxu0 %v94
    %1539 = vmatprep.subr.mxu0 %v99
    %1540 = vmatpush1.msra.mxu0 %v98
    %1541 = vmatprep.subr.mxu0 %v103
    %1542 = vmatpush1.msra.mxu0 %v102
    %1543 = vmatprep.subr.mxu0 %v107
    %1544 = vmatpush1.msra.mxu0 %v106
    %1545 = vmatprep.subr.mxu0 %v111
    %1546 = vmatpush1.msra.mxu0 %v110
    %1547 = vmatprep.subr.mxu0 %v115
    %1548 = vmatpush1.msra.mxu0 %v114
    %1549 = vmatprep.subr.mxu0 %v119
    %1550 = vmatpush1.msra.mxu0 %v118
    %1551 = vmatprep.subr.mxu0 %v123
    %1552 = vmatpush1.msra.mxu0 %v122
    %1553 = vmatprep.subr.mxu0 %v127
    %1554 = vmatpush1.msra.mxu0 %v126
    %1555 = vmatprep.subr.mxu0 %v131
    %1556 = vmatpush1.msra.mxu0 %v130
    %1557 = vmatprep.subr.mxu0 %v135
    %1558 = vmatpush1.msra.mxu0 %v134
    %1559 = vmatprep.subr.mxu0 %v139
    %1560 = vmatpush1.msra.mxu0 %v138
    %1561 = vmatprep.subr.mxu0 %v143
    %1562 = vmatpush1.msra.mxu0 %v142
    %1563 = vmatprep.subr.mxu0 %v147
    %1564 = vmatpush1.msra.mxu0 %v146
    %1565 = vmatprep.subr.mxu0 %v151
    %1566 = vmatpush1.msra.mxu0 %v150
    %1567 = vmatprep.subr.mxu0 %v155
    %1568 = vmatpush1.msra.mxu0 %v154
    %1569 = vmatprep.subr.mxu0 %v159
    %1570 = vmatpush1.msra.mxu0 %v158
    %1571 = vmatprep.subr.mxu0 %v163
    %1572 = vmatpush1.msra.mxu0 %v162
    %1573 = vmatprep.subr.mxu0 %v167
    %1574 = vmatpush1.msra.mxu0 %v166
    %1575 = vmatprep.subr.mxu0 %v171
    %1576 = vmatpush1.msra.mxu0 %v170
    %1577 = vmatprep.subr.mxu0 %v175
    %1578 = vmatpush1.msra.mxu0 %v174
    %1579 = vmatprep.subr.mxu0 %v179
    %1580 = vmatpush1.msra.mxu0 %v178
    %1581 = vmatprep.subr.mxu0 %v183
    %1582 = vmatpush1.msra.mxu0 %v182
    %1583 = vmatprep.subr.mxu0 %v187
    %1584 = vmatpush1.msra.mxu0 %v186
    %1585 = vmatprep.subr.mxu0 %v191
    %1586 = vmatpush1.msra.mxu0 %v190
    %1587 = vmatprep.mubr.f32.mxu0 %v804
    %1588 = vmatmul.mubr.f32.gmra.mrb[0].mxu0 %v803
    %v1589 = vpop.f32.mrb[0].mxu0
    %v1590 = vadd.f32 %v1374, %v1589
    %v1591 = vpop.f32.mrb[0].mxu0
    %v1592 = vadd.f32 %v1376, %v1591
    %1593 = vdwg.mxu0
    %1594 = vmatprep.subr.mxu0 %v195
    %1595 = vmatpush1.msra.mxu0 %v194
    %1596 = vmatprep.subr.mxu0 %v199
    %1597 = vmatpush1.msra.mxu0 %v198
    %1598 = vmatprep.subr.mxu0 %v203
    %1599 = vmatpush1.msra.mxu0 %v202
    %1600 = vmatprep.subr.mxu0 %v207
    %1601 = vmatpush1.msra.mxu0 %v206
    %1602 = vmatprep.subr.mxu0 %v211
    %1603 = vmatpush1.msra.mxu0 %v210
    %1604 = vmatprep.subr.mxu0 %v215
    %1605 = vmatpush1.msra.mxu0 %v214
    %1606 = vmatprep.subr.mxu0 %v219
    %1607 = vmatpush1.msra.mxu0 %v218
    %1608 = vmatprep.subr.mxu0 %v223
    %1609 = vmatpush1.msra.mxu0 %v222
    %1610 = vmatprep.subr.mxu0 %v227
    %1611 = vmatpush1.msra.mxu0 %v226
    %1612 = vmatprep.subr.mxu0 %v231
    %1613 = vmatpush1.msra.mxu0 %v230
    %1614 = vmatprep.subr.mxu0 %v235
    %1615 = vmatpush1.msra.mxu0 %v234
    %1616 = vmatprep.subr.mxu0 %v239
    %1617 = vmatpush1.msra.mxu0 %v238
    %1618 = vmatprep.subr.mxu0 %v243
    %1619 = vmatpush1.msra.mxu0 %v242
    %1620 = vmatprep.subr.mxu0 %v247
    %1621 = vmatpush1.msra.mxu0 %v246
    %1622 = vmatprep.subr.mxu0 %v251
    %1623 = vmatpush1.msra.mxu0 %v250
    %1624 = vmatprep.subr.mxu0 %v255
    %1625 = vmatpush1.msra.mxu0 %v254
    %1626 = vmatprep.subr.mxu0 0.0
    %1627 = vmatpush1.msra.mxu0 0.0
    %1628 = vmatprep.subr.mxu0 0.0
    %1629 = vmatpush1.msra.mxu0 0.0
    %1630 = vmatprep.subr.mxu0 0.0
    %1631 = vmatpush1.msra.mxu0 0.0
    %1632 = vmatprep.subr.mxu0 0.0
    %1633 = vmatpush1.msra.mxu0 0.0
    %1634 = vmatprep.subr.mxu0 0.0
    %1635 = vmatpush1.msra.mxu0 0.0
    %1636 = vmatprep.subr.mxu0 0.0
    %1637 = vmatpush1.msra.mxu0 0.0
    %1638 = vmatprep.subr.mxu0 0.0
    %1639 = vmatpush1.msra.mxu0 0.0
    %1640 = vmatprep.subr.mxu0 0.0
    %1641 = vmatpush1.msra.mxu0 0.0
    %1642 = vmatprep.subr.mxu0 0.0
    %1643 = vmatpush1.msra.mxu0 0.0
    %1644 = vmatprep.subr.mxu0 0.0
    %1645 = vmatpush1.msra.mxu0 0.0
    %1646 = vmatprep.subr.mxu0 0.0
    %1647 = vmatpush1.msra.mxu0 0.0
    %1648 = vmatprep.subr.mxu0 0.0
    %1649 = vmatpush1.msra.mxu0 0.0
    %1650 = vmatprep.subr.mxu0 0.0
    %1651 = vmatpush1.msra.mxu0 0.0
    %1652 = vmatprep.subr.mxu0 0.0
    %1653 = vmatpush1.msra.mxu0 0.0
    %1654 = vmatprep.subr.mxu0 0.0
    %1655 = vmatpush1.msra.mxu0 0.0
    %1656 = vmatprep.subr.mxu0 0.0
    %1657 = vmatpush1.msra.mxu0 0.0
    %1658 = vmatprep.mubr.f32.mxu0 0.0
    %1659 = vmatmul.mubr.f32.gmra.mrb[0].mxu0 %v805
    %v1660 = vpop.f32.mrb[0].mxu0
    %v1661 = vadd.f32 %v1590, %v1660
    %v1662 = vpop.f32.mrb[0].mxu0
    %v1663 = vadd.f32 %v1592, %v1662
    %1664 = vdwg.mxu0
    %v1665 = vtanh.pop %v1519
    %v1666 = vtanh.pop %v1521
    %v1667 = vtanh.pop %v1661
    %v1668 = vtanh.pop %v1663
    %1669 = vmatprep.subr.mxu0 %v257
    %1670 = vmatpush1.msra.mxu0 %v256
    %1671 = vmatprep.subr.mxu0 %v261
    %1672 = vmatpush1.msra.mxu0 %v260
    %1673 = vmatprep.subr.mxu0 %v265
    %1674 = vmatpush1.msra.mxu0 %v264
    %1675 = vmatprep.subr.mxu0 %v269
    %1676 = vmatpush1.msra.mxu0 %v268
    %1677 = vmatprep.subr.mxu0 %v273
    %1678 = vmatpush1.msra.mxu0 %v272
    %1679 = vmatprep.subr.mxu0 %v277
    %1680 = vmatpush1.msra.mxu0 %v276
    %1681 = vmatprep.subr.mxu0 %v281
    %1682 = vmatpush1.msra.mxu0 %v280
    %1683 = vmatprep.subr.mxu0 %v285
    %1684 = vmatpush1.msra.mxu0 %v284
    %1685 = vmatprep.subr.mxu0 %v289
    %1686 = vmatpush1.msra.mxu0 %v288
    %1687 = vmatprep.subr.mxu0 %v293
    %1688 = vmatpush1.msra.mxu0 %v292
    %1689 = vmatprep.subr.mxu0 %v297
    %1690 = vmatpush1.msra.mxu0 %v296
    %1691 = vmatprep.subr.mxu0 %v301
    %1692 = vmatpush1.msra.mxu0 %v300
    %1693 = vmatprep.subr.mxu0 %v305
    %1694 = vmatpush1.msra.mxu0 %v304
    %1695 = vmatprep.subr.mxu0 %v309
    %1696 = vmatpush1.msra.mxu0 %v308
    %1697 = vmatprep.subr.mxu0 %v313
    %1698 = vmatpush1.msra.mxu0 %v312
    %1699 = vmatprep.subr.mxu0 %v317
    %1700 = vmatpush1.msra.mxu0 %v316
    %1701 = vmatprep.subr.mxu0 %v321
    %1702 = vmatpush1.msra.mxu0 %v320
    %1703 = vmatprep.subr.mxu0 %v325
    %1704 = vmatpush1.msra.mxu0 %v324
    %1705 = vmatprep.subr.mxu0 %v329
    %1706 = vmatpush1.msra.mxu0 %v328
    %1707 = vmatprep.subr.mxu0 %v333
    %1708 = vmatpush1.msra.mxu0 %v332
    %1709 = vmatprep.subr.mxu0 %v337
    %1710 = vmatpush1.msra.mxu0 %v336
    %1711 = vmatprep.subr.mxu0 %v341
    %1712 = vmatpush1.msra.mxu0 %v340
    %1713 = vmatprep.subr.mxu0 %v345
    %1714 = vmatpush1.msra.mxu0 %v344
    %1715 = vmatprep.subr.mxu0 %v349
    %1716 = vmatpush1.msra.mxu0 %v348
    %1717 = vmatprep.subr.mxu0 %v353
    %1718 = vmatpush1.msra.mxu0 %v352
    %1719 = vmatprep.subr.mxu0 %v357
    %1720 = vmatpush1.msra.mxu0 %v356
    %1721 = vmatprep.subr.mxu0 %v361
    %1722 = vmatpush1.msra.mxu0 %v360
    %1723 = vmatprep.subr.mxu0 %v365
    %1724 = vmatpush1.msra.mxu0 %v364
    %1725 = vmatprep.subr.mxu0 %v369
    %1726 = vmatpush1.msra.mxu0 %v368
    %1727 = vmatprep.subr.mxu0 %v373
    %1728 = vmatpush1.msra.mxu0 %v372
    %1729 = vmatprep.subr.mxu0 %v377
    %1730 = vmatpush1.msra.mxu0 %v376
    %1731 = vmatprep.subr.mxu0 %v381
    %1732 = vmatpush1.msra.mxu0 %v380
    %1733 = vmatprep.mubr.f32.mxu0 %v1666
    %1734 = vmatmul.mubr.f32.gmra.mrb[0].mxu0 %v1665
    %v1735 = vpop.f32.mrb[0].mxu0
    %v1736 = vadd.f32 0.0, %v1735
    %v1737 = vpop.f32.mrb[0].mxu0
    %v1738 = vadd.f32 0.0, %v1737
    %1739 = vdwg.mxu0
    %1740 = vmatprep.subr.mxu0 %v385
    %1741 = vmatpush1.msra.mxu0 %v384
    %1742 = vmatprep.subr.mxu0 %v389
    %1743 = vmatpush1.msra.mxu0 %v388
    %1744 = vmatprep.subr.mxu0 %v393
    %1745 = vmatpush1.msra.mxu0 %v392
    %1746 = vmatprep.subr.mxu0 %v397
    %1747 = vmatpush1.msra.mxu0 %v396
    %1748 = vmatprep.subr.mxu0 %v401
    %1749 = vmatpush1.msra.mxu0 %v400
    %1750 = vmatprep.subr.mxu0 %v405
    %1751 = vmatpush1.msra.mxu0 %v404
    %1752 = vmatprep.subr.mxu0 %v409
    %1753 = vmatpush1.msra.mxu0 %v408
    %1754 = vmatprep.subr.mxu0 %v413
    %1755 = vmatpush1.msra.mxu0 %v412
    %1756 = vmatprep.subr.mxu0 %v417
    %1757 = vmatpush1.msra.mxu0 %v416
    %1758 = vmatprep.subr.mxu0 %v421
    %1759 = vmatpush1.msra.mxu0 %v420
    %1760 = vmatprep.subr.mxu0 %v425
    %1761 = vmatpush1.msra.mxu0 %v424
    %1762 = vmatprep.subr.mxu0 %v429
    %1763 = vmatpush1.msra.mxu0 %v428
    %1764 = vmatprep.subr.mxu0 %v433
    %1765 = vmatpush1.msra.mxu0 %v432
    %1766 = vmatprep.subr.mxu0 %v437
    %1767 = vmatpush1.msra.mxu0 %v436
    %1768 = vmatprep.subr.mxu0 %v441
    %1769 = vmatpush1.msra.mxu0 %v440
    %1770 = vmatprep.subr.mxu0 %v445
    %1771 = vmatpush1.msra.mxu0 %v444
    %1772 = vmatprep.subr.mxu0 %v449
    %1773 = vmatpush1.msra.mxu0 %v448
    %1774 = vmatprep.subr.mxu0 %v453
    %1775 = vmatpush1.msra.mxu0 %v452
    %1776 = vmatprep.subr.mxu0 %v457
    %1777 = vmatpush1.msra.mxu0 %v456
    %1778 = vmatprep.subr.mxu0 %v461
    %1779 = vmatpush1.msra.mxu0 %v460
    %1780 = vmatprep.subr.mxu0 %v465
    %1781 = vmatpush1.msra.mxu0 %v464
    %1782 = vmatprep.subr.mxu0 %v469
    %1783 = vmatpush1.msra.mxu0 %v468
    %1784 = vmatprep.subr.mxu0 %v473
    %1785 = vmatpush1.msra.mxu0 %v472
    %1786 = vmatprep.subr.mxu0 %v477
    %1787 = vmatpush1.msra.mxu0 %v476
    %1788 = vmatprep.subr.mxu0 %v481
    %1789 = vmatpush1.msra.mxu0 %v480
    %1790 = vmatprep.subr.mxu0 %v485
    %1791 = vmatpush1.msra.mxu0 %v484
    %1792 = vmatprep.subr.mxu0 %v489
    %1793 = vmatpush1.msra.mxu0 %v488
    %1794 = vmatprep.subr.mxu0 %v493
    %1795 = vmatpush1.msra.mxu0 %v492
    %1796 = vmatprep.subr.mxu0 %v497
    %1797 = vmatpush1.msra.mxu0 %v496
    %1798 = vmatprep.subr.mxu0 %v501
    %1799 = vmatpush1.msra.mxu0 %v500
    %1800 = vmatprep.subr.mxu0 %v505
    %1801 = vmatpush1.msra.mxu0 %v504
    %1802 = vmatprep.subr.mxu0 %v509
    %1803 = vmatpush1.msra.mxu0 %v508
    %1804 = vmatprep.mubr.f32.mxu0 %v1668
    %1805 = vmatmul.mubr.f32.gmra.mrb[0].mxu0 %v1667
    %v1806 = vpop.f32.mrb[0].mxu0
    %v1807 = vadd.f32 %v1736, %v1806
    %v1808 = vpop.f32.mrb[0].mxu0
    %v1809 = vadd.f32 %v1738, %v1808
    %1810 = vdwg.mxu0
    %1811 = vmatprep.subr.mxu0 %v259
    %1812 = vmatpush1.msra.mxu0 %v258
    %1813 = vmatprep.subr.mxu0 %v263
    %1814 = vmatpush1.msra.mxu0 %v262
    %1815 = vmatprep.subr.mxu0 %v267
    %1816 = vmatpush1.msra.mxu0 %v266
    %1817 = vmatprep.subr.mxu0 %v271
    %1818 = vmatpush1.msra.mxu0 %v270
    %1819 = vmatprep.subr.mxu0 %v275
    %1820 = vmatpush1.msra.mxu0 %v274
    %1821 = vmatprep.subr.mxu0 %v279
    %1822 = vmatpush1.msra.mxu0 %v278
    %1823 = vmatprep.subr.mxu0 %v283
    %1824 = vmatpush1.msra.mxu0 %v282
    %1825 = vmatprep.subr.mxu0 %v287
    %1826 = vmatpush1.msra.mxu0 %v286
    %1827 = vmatprep.subr.mxu0 %v291
    %1828 = vmatpush1.msra.mxu0 %v290
    %1829 = vmatprep.subr.mxu0 %v295
    %1830 = vmatpush1.msra.mxu0 %v294
    %1831 = vmatprep.subr.mxu0 %v299
    %1832 = vmatpush1.msra.mxu0 %v298
    %1833 = vmatprep.subr.mxu0 %v303
    %1834 = vmatpush1.msra.mxu0 %v302
    %1835 = vmatprep.subr.mxu0 %v307
    %1836 = vmatpush1.msra.mxu0 %v306
    %1837 = vmatprep.subr.mxu0 %v311
    %1838 = vmatpush1.msra.mxu0 %v310
    %1839 = vmatprep.subr.mxu0 %v315
    %1840 = vmatpush1.msra.mxu0 %v314
    %1841 = vmatprep.subr.mxu0 %v319
    %1842 = vmatpush1.msra.mxu0 %v318
    %1843 = vmatprep.subr.mxu0 %v323
    %1844 = vmatpush1.msra.mxu0 %v322
    %1845 = vmatprep.subr.mxu0 %v327
    %1846 = vmatpush1.msra.mxu0 %v326
    %1847 = vmatprep.subr.mxu0 %v331
    %1848 = vmatpush1.msra.mxu0 %v330
    %1849 = vmatprep.subr.mxu0 %v335
    %1850 = vmatpush1.msra.mxu0 %v334
    %1851 = vmatprep.subr.mxu0 %v339
    %1852 = vmatpush1.msra.mxu0 %v338
    %1853 = vmatprep.subr.mxu0 %v343
    %1854 = vmatpush1.msra.mxu0 %v342
    %1855 = vmatprep.subr.mxu0 %v347
    %1856 = vmatpush1.msra.mxu0 %v346
    %1857 = vmatprep.subr.mxu0 %v351
    %1858 = vmatpush1.msra.mxu0 %v350
    %1859 = vmatprep.subr.mxu0 %v355
    %1860 = vmatpush1.msra.mxu0 %v354
    %1861 = vmatprep.subr.mxu0 %v359
    %1862 = vmatpush1.msra.mxu0 %v358
    %1863 = vmatprep.subr.mxu0 %v363
    %1864 = vmatpush1.msra.mxu0 %v362
    %1865 = vmatprep.subr.mxu0 %v367
    %1866 = vmatpush1.msra.mxu0 %v366
    %1867 = vmatprep.subr.mxu0 %v371
    %1868 = vmatpush1.msra.mxu0 %v370
    %1869 = vmatprep.subr.mxu0 %v375
    %1870 = vmatpush1.msra.mxu0 %v374
    %1871 = vmatprep.subr.mxu0 %v379
    %1872 = vmatpush1.msra.mxu0 %v378
    %1873 = vmatprep.subr.mxu0 %v383
    %1874 = vmatpush1.msra.mxu0 %v382
    %1875 = vmatprep.mubr.f32.mxu0 %v1666
    %1876 = vmatmul.mubr.f32.gmra.mrb[0].mxu0 %v1665
    %v1877 = vpop.f32.mrb[0].mxu0
    %v1878 = vadd.f32 0.0, %v1877
    %v1879 = vpop.f32.mrb[0].mxu0
    %v1880 = vadd.f32 0.0, %v1879
    %1881 = vdwg.mxu0
    %1882 = vmatprep.subr.mxu0 %v387
    %1883 = vmatpush1.msra.mxu0 %v386
    %1884 = vmatprep.subr.mxu0 %v391
    %1885 = vmatpush1.msra.mxu0 %v390
    %1886 = vmatprep.subr.mxu0 %v395
    %1887 = vmatpush1.msra.mxu0 %v394
    %1888 = vmatprep.subr.mxu0 %v399
    %1889 = vmatpush1.msra.mxu0 %v398
    %1890 = vmatprep.subr.mxu0 %v403
    %1891 = vmatpush1.msra.mxu0 %v402
    %1892 = vmatprep.subr.mxu0 %v407
    %1893 = vmatpush1.msra.mxu0 %v406
    %1894 = vmatprep.subr.mxu0 %v411
    %1895 = vmatpush1.msra.mxu0 %v410
    %1896 = vmatprep.subr.mxu0 %v415
    %1897 = vmatpush1.msra.mxu0 %v414
    %1898 = vmatprep.subr.mxu0 %v419
    %1899 = vmatpush1.msra.mxu0 %v418
    %1900 = vmatprep.subr.mxu0 %v423
    %1901 = vmatpush1.msra.mxu0 %v422
    %1902 = vmatprep.subr.mxu0 %v427
    %1903 = vmatpush1.msra.mxu0 %v426
    %1904 = vmatprep.subr.mxu0 %v431
    %1905 = vmatpush1.msra.mxu0 %v430
    %1906 = vmatprep.subr.mxu0 %v435
    %1907 = vmatpush1.msra.mxu0 %v434
    %1908 = vmatprep.subr.mxu0 %v439
    %1909 = vmatpush1.msra.mxu0 %v438
    %1910 = vmatprep.subr.mxu0 %v443
    %1911 = vmatpush1.msra.mxu0 %v442
    %1912 = vmatprep.subr.mxu0 %v447
    %1913 = vmatpush1.msra.mxu0 %v446
    %1914 = vmatprep.subr.mxu0 %v451
    %1915 = vmatpush1.msra.mxu0 %v450
    %1916 = vmatprep.subr.mxu0 %v455
    %1917 = vmatpush1.msra.mxu0 %v454
    %1918 = vmatprep.subr.mxu0 %v459
    %1919 = vmatpush1.msra.mxu0 %v458
    %1920 = vmatprep.subr.mxu0 %v463
    %1921 = vmatpush1.msra.mxu0 %v462
    %1922 = vmatprep.subr.mxu0 %v467
    %1923 = vmatpush1.msra.mxu0 %v466
    %1924 = vmatprep.subr.mxu0 %v471
    %1925 = vmatpush1.msra.mxu0 %v470
    %1926 = vmatprep.subr.mxu0 %v475
    %1927 = vmatpush1.msra.mxu0 %v474
    %1928 = vmatprep.subr.mxu0 %v479
    %1929 = vmatpush1.msra.mxu0 %v478
    %1930 = vmatprep.subr.mxu0 %v483
    %1931 = vmatpush1.msra.mxu0 %v482
    %1932 = vmatprep.subr.mxu0 %v487
    %1933 = vmatpush1.msra.mxu0 %v486
    %1934 = vmatprep.subr.mxu0 %v491
    %1935 = vmatpush1.msra.mxu0 %v490
    %1936 = vmatprep.subr.mxu0 %v495
    %1937 = vmatpush1.msra.mxu0 %v494
    %1938 = vmatprep.subr.mxu0 %v499
    %1939 = vmatpush1.msra.mxu0 %v498
    %1940 = vmatprep.subr.mxu0 %v503
    %1941 = vmatpush1.msra.mxu0 %v502
    %1942 = vmatprep.subr.mxu0 %v507
    %1943 = vmatpush1.msra.mxu0 %v506
    %1944 = vmatprep.subr.mxu0 %v511
    %1945 = vmatpush1.msra.mxu0 %v510
    %1946 = vmatprep.mubr.f32.mxu0 %v1668
    %1947 = vmatmul.mubr.f32.gmra.mrb[0].mxu0 %v1667
    %v1948 = vpop.f32.mrb[0].mxu0
    %v1949 = vadd.f32 %v1878, %v1948
    %v1950 = vpop.f32.mrb[0].mxu0
    %v1951 = vadd.f32 %v1880, %v1950
    %1952 = vdwg.mxu0
    %v1953 = vld [vmem:[%s0 + $0x48] sm:$0xff]
    %v1954 = vld [vmem:[%s0 + $0x50] sm:$0xff]
    %v1955 = vld [vmem:[%s0 + $0x58] sm:$0xff]
    %1956 = vmatprep.subr.mxu0 %v65
    %1957 = vmatpush1.msra.mxu0 %v64
    %1958 = vmatprep.subr.mxu0 %v69
    %1959 = vmatpush1.msra.mxu0 %v68
    %1960 = vmatprep.subr.mxu0 %v73
    %1961 = vmatpush1.msra.mxu0 %v72
    %1962 = vmatprep.subr.mxu0 %v77
    %1963 = vmatpush1.msra.mxu0 %v76
    %1964 = vmatprep.subr.mxu0 %v81
    %1965 = vmatpush1.msra.mxu0 %v80
    %1966 = vmatprep.subr.mxu0 %v85
    %1967 = vmatpush1.msra.mxu0 %v84
    %1968 = vmatprep.subr.mxu0 %v89
    %1969 = vmatpush1.msra.mxu0 %v88
    %1970 = vmatprep.subr.mxu0 %v93
    %1971 = vmatpush1.msra.mxu0 %v92
    %1972 = vmatprep.subr.mxu0 %v97
    %1973 = vmatpush1.msra.mxu0 %v96
    %1974 = vmatprep.subr.mxu0 %v101
    %1975 = vmatpush1.msra.mxu0 %v100
    %1976 = vmatprep.subr.mxu0 %v105
    %1977 = vmatpush1.msra.mxu0 %v104
    %1978 = vmatprep.subr.mxu0 %v109
    %1979 = vmatpush1.msra.mxu0 %v108
    %1980 = vmatprep.subr.mxu0 %v113
    %1981 = vmatpush1.msra.mxu0 %v112
    %1982 = vmatprep.subr.mxu0 %v117
    %1983 = vmatpush1.msra.mxu0 %v116
    %1984 = vmatprep.subr.mxu0 %v121
    %1985 = vmatpush1.msra.mxu0 %v120
    %1986 = vmatprep.subr.mxu0 %v125
    %1987 = vmatpush1.msra.mxu0 %v124
    %1988 = vmatprep.subr.mxu0 %v129
    %1989 = vmatpush1.msra.mxu0 %v128
    %1990 = vmatprep.subr.mxu0 %v133
    %1991 = vmatpush1.msra.mxu0 %v132
    %1992 = vmatprep.subr.mxu0 %v137
    %1993 = vmatpush1.msra.mxu0 %v136
    %1994 = vmatprep.subr.mxu0 %v141
    %1995 = vmatpush1.msra.mxu0 %v140
    %1996 = vmatprep.subr.mxu0 %v145
    %1997 = vmatpush1.msra.mxu0 %v144
    %1998 = vmatprep.subr.mxu0 %v149
    %1999 = vmatpush1.msra.mxu0 %v148
    %2000 = vmatprep.subr.mxu0 %v153
    %2001 = vmatpush1.msra.mxu0 %v152
    %2002 = vmatprep.subr.mxu0 %v157
    %2003 = vmatpush1.msra.mxu0 %v156
    %2004 = vmatprep.subr.mxu0 %v161
    %2005 = vmatpush1.msra.mxu0 %v160
    %2006 = vmatprep.subr.mxu0 %v165
    %2007 = vmatpush1.msra.mxu0 %v164
    %2008 = vmatprep.subr.mxu0 %v169
    %2009 = vmatpush1.msra.mxu0 %v168
    %2010 = vmatprep.subr.mxu0 %v173
    %2011 = vmatpush1.msra.mxu0 %v172
    %2012 = vmatprep.subr.mxu0 %v177
    %2013 = vmatpush1.msra.mxu0 %v176
    %2014 = vmatprep.subr.mxu0 %v181
    %2015 = vmatpush1.msra.mxu0 %v180
    %2016 = vmatprep.subr.mxu0 %v185
    %2017 = vmatpush1.msra.mxu0 %v184
    %2018 = vmatprep.subr.mxu0 %v189
    %2019 = vmatpush1.msra.mxu0 %v188
    %2020 = vmatprep.mubr.f32.mxu0 %v1379
    %2021 = vmatmul.mubr.f32.gmra.mrb[0].mxu0 %v1378
    %v2022 = vpop.f32.mrb[0].mxu0
    %v2023 = vadd.f32 %v1807, %v2022
    %v2024 = vpop.f32.mrb[0].mxu0
    %v2025 = vadd.f32 %v1809, %v2024
    %2026 = vdwg.mxu0
    %2027 = vmatprep.subr.mxu0 %v193
    %2028 = vmatpush1.msra.mxu0 %v192
    %2029 = vmatprep.subr.mxu0 %v197
    %2030 = vmatpush1.msra.mxu0 %v196
    %2031 = vmatprep.subr.mxu0 %v201
    %2032 = vmatpush1.msra.mxu0 %v200
    %2033 = vmatprep.subr.mxu0 %v205
    %2034 = vmatpush1.msra.mxu0 %v204
    %2035 = vmatprep.subr.mxu0 %v209
    %2036 = vmatpush1.msra.mxu0 %v208
    %2037 = vmatprep.subr.mxu0 %v213
    %2038 = vmatpush1.msra.mxu0 %v212
    %2039 = vmatprep.subr.mxu0 %v217
    %2040 = vmatpush1.msra.mxu0 %v216
    %2041 = vmatprep.subr.mxu0 %v221
    %2042 = vmatpush1.msra.mxu0 %v220
    %2043 = vmatprep.subr.mxu0 %v225
    %2044 = vmatpush1.msra.mxu0 %v224
    %2045 = vmatprep.subr.mxu0 %v229
    %2046 = vmatpush1.msra.mxu0 %v228
    %2047 = vmatprep.subr.mxu0 %v233
    %2048 = vmatpush1.msra.mxu0 %v232
    %2049 = vmatprep.subr.mxu0 %v237
    %2050 = vmatpush1.msra.mxu0 %v236
    %2051 = vmatprep.subr.mxu0 %v241
    %2052 = vmatpush1.msra.mxu0 %v240
    %2053 = vmatprep.subr.mxu0 %v245
    %2054 = vmatpush1.msra.mxu0 %v244
    %2055 = vmatprep.subr.mxu0 %v249
    %2056 = vmatpush1.msra.mxu0 %v248
    %2057 = vmatprep.subr.mxu0 %v253
    %2058 = vmatpush1.msra.mxu0 %v252
    %2059 = vmatprep.subr.mxu0 0.0
    %2060 = vmatpush1.msra.mxu0 0.0
    %2061 = vmatprep.subr.mxu0 0.0
    %2062 = vmatpush1.msra.mxu0 0.0
    %2063 = vmatprep.subr.mxu0 0.0
    %2064 = vmatpush1.msra.mxu0 0.0
    %2065 = vmatprep.subr.mxu0 0.0
    %2066 = vmatpush1.msra.mxu0 0.0
    %2067 = vmatprep.subr.mxu0 0.0
    %2068 = vmatpush1.msra.mxu0 0.0
    %2069 = vmatprep.subr.mxu0 0.0
    %2070 = vmatpush1.msra.mxu0 0.0
    %2071 = vmatprep.subr.mxu0 0.0
    %2072 = vmatpush1.msra.mxu0 0.0
    %2073 = vmatprep.subr.mxu0 0.0
    %2074 = vmatpush1.msra.mxu0 0.0
    %2075 = vmatprep.subr.mxu0 0.0
    %2076 = vmatpush1.msra.mxu0 0.0
    %2077 = vmatprep.subr.mxu0 0.0
    %2078 = vmatpush1.msra.mxu0 0.0
    %2079 = vmatprep.subr.mxu0 0.0
    %2080 = vmatpush1.msra.mxu0 0.0
    %2081 = vmatprep.subr.mxu0 0.0
    %2082 = vmatpush1.msra.mxu0 0.0
    %2083 = vmatprep.subr.mxu0 0.0
    %2084 = vmatpush1.msra.mxu0 0.0
    %2085 = vmatprep.subr.mxu0 0.0
    %2086 = vmatpush1.msra.mxu0 0.0
    %2087 = vmatprep.subr.mxu0 0.0
    %2088 = vmatpush1.msra.mxu0 0.0
    %2089 = vmatprep.subr.mxu0 0.0
    %2090 = vmatpush1.msra.mxu0 0.0
    %2091 = vmatprep.mubr.f32.mxu0 0.0
    %2092 = vmatmul.mubr.f32.gmra.mrb[0].mxu0 %v1380
    %v2093 = vpop.f32.mrb[0].mxu0
    %v2094 = vadd.f32 %v2023, %v2093
    %v2095 = vpop.f32.mrb[0].mxu0
    %v2096 = vadd.f32 %v2025, %v2095
    %2097 = vdwg.mxu0
    %2098 = vmatprep.subr.mxu0 %v67
    %2099 = vmatpush1.msra.mxu0 %v66
    %2100 = vmatprep.subr.mxu0 %v71
    %2101 = vmatpush1.msra.mxu0 %v70
    %2102 = vmatprep.subr.mxu0 %v75
    %2103 = vmatpush1.msra.mxu0 %v74
    %2104 = vmatprep.subr.mxu0 %v79
    %2105 = vmatpush1.msra.mxu0 %v78
    %2106 = vmatprep.subr.mxu0 %v83
    %2107 = vmatpush1.msra.mxu0 %v82
    %2108 = vmatprep.subr.mxu0 %v87
    %2109 = vmatpush1.msra.mxu0 %v86
    %2110 = vmatprep.subr.mxu0 %v91
    %2111 = vmatpush1.msra.mxu0 %v90
    %2112 = vmatprep.subr.mxu0 %v95
    %2113 = vmatpush1.msra.mxu0 %v94
    %2114 = vmatprep.subr.mxu0 %v99
    %2115 = vmatpush1.msra.mxu0 %v98
    %2116 = vmatprep.subr.mxu0 %v103
    %2117 = vmatpush1.msra.mxu0 %v102
    %2118 = vmatprep.subr.mxu0 %v107
    %2119 = vmatpush1.msra.mxu0 %v106
    %2120 = vmatprep.subr.mxu0 %v111
    %2121 = vmatpush1.msra.mxu0 %v110
    %2122 = vmatprep.subr.mxu0 %v115
    %2123 = vmatpush1.msra.mxu0 %v114
    %2124 = vmatprep.subr.mxu0 %v119
    %2125 = vmatpush1.msra.mxu0 %v118
    %2126 = vmatprep.subr.mxu0 %v123
    %2127 = vmatpush1.msra.mxu0 %v122
    %2128 = vmatprep.subr.mxu0 %v127
    %2129 = vmatpush1.msra.mxu0 %v126
    %2130 = vmatprep.subr.mxu0 %v131
    %2131 = vmatpush1.msra.mxu0 %v130
    %2132 = vmatprep.subr.mxu0 %v135
    %2133 = vmatpush1.msra.mxu0 %v134
    %2134 = vmatprep.subr.mxu0 %v139
    %2135 = vmatpush1.msra.mxu0 %v138
    %2136 = vmatprep.subr.mxu0 %v143
    %2137 = vmatpush1.msra.mxu0 %v142
    %2138 = vmatprep.subr.mxu0 %v147
    %2139 = vmatpush1.msra.mxu0 %v146
    %2140 = vmatprep.subr.mxu0 %v151
    %2141 = vmatpush1.msra.mxu0 %v150
    %2142 = vmatprep.subr.mxu0 %v155
    %2143 = vmatpush1.msra.mxu0 %v154
    %2144 = vmatprep.subr.mxu0 %v159
    %2145 = vmatpush1.msra.mxu0 %v158
    %2146 = vmatprep.subr.mxu0 %v163
    %2147 = vmatpush1.msra.mxu0 %v162
    %2148 = vmatprep.subr.mxu0 %v167
    %2149 = vmatpush1.msra.mxu0 %v166
    %2150 = vmatprep.subr.mxu0 %v171
    %2151 = vmatpush1.msra.mxu0 %v170
    %2152 = vmatprep.subr.mxu0 %v175
    %2153 = vmatpush1.msra.mxu0 %v174
    %2154 = vmatprep.subr.mxu0 %v179
    %2155 = vmatpush1.msra.mxu0 %v178
    %2156 = vmatprep.subr.mxu0 %v183
    %2157 = vmatpush1.msra.mxu0 %v182
    %2158 = vmatprep.subr.mxu0 %v187
    %2159 = vmatpush1.msra.mxu0 %v186
    %2160 = vmatprep.subr.mxu0 %v191
    %2161 = vmatpush1.msra.mxu0 %v190
    %2162 = vmatprep.mubr.f32.mxu0 %v1379
    %2163 = vmatmul.mubr.f32.gmra.mrb[0].mxu0 %v1378
    %v2164 = vpop.f32.mrb[0].mxu0
    %v2165 = vadd.f32 %v1949, %v2164
    %v2166 = vpop.f32.mrb[0].mxu0
    %v2167 = vadd.f32 %v1951, %v2166
    %2168 = vdwg.mxu0
    %2169 = vmatprep.subr.mxu0 %v195
    %2170 = vmatpush1.msra.mxu0 %v194
    %2171 = vmatprep.subr.mxu0 %v199
    %2172 = vmatpush1.msra.mxu0 %v198
    %2173 = vmatprep.subr.mxu0 %v203
    %2174 = vmatpush1.msra.mxu0 %v202
    %2175 = vmatprep.subr.mxu0 %v207
    %2176 = vmatpush1.msra.mxu0 %v206
    %2177 = vmatprep.subr.mxu0 %v211
    %2178 = vmatpush1.msra.mxu0 %v210
    %2179 = vmatprep.subr.mxu0 %v215
    %2180 = vmatpush1.msra.mxu0 %v214
    %2181 = vmatprep.subr.mxu0 %v219
    %2182 = vmatpush1.msra.mxu0 %v218
    %2183 = vmatprep.subr.mxu0 %v223
    %2184 = vmatpush1.msra.mxu0 %v222
    %2185 = vmatprep.subr.mxu0 %v227
    %2186 = vmatpush1.msra.mxu0 %v226
    %2187 = vmatprep.subr.mxu0 %v231
    %2188 = vmatpush1.msra.mxu0 %v230
    %2189 = vmatprep.subr.mxu0 %v235
    %2190 = vmatpush1.msra.mxu0 %v234
    %2191 = vmatprep.subr.mxu0 %v239
    %2192 = vmatpush1.msra.mxu0 %v238
    %2193 = vmatprep.subr.mxu0 %v243
    %2194 = vmatpush1.msra.mxu0 %v242
    %2195 = vmatprep.subr.mxu0 %v247
    %2196 = vmatpush1.msra.mxu0 %v246
    %2197 = vmatprep.subr.mxu0 %v251
    %2198 = vmatpush1.msra.mxu0 %v250
    %2199 = vmatprep.subr.mxu0 %v255
    %2200 = vmatpush1.msra.mxu0 %v254
    %2201 = vmatprep.subr.mxu0 0.0
    %2202 = vmatpush1.msra.mxu0 0.0
    %2203 = vmatprep.subr.mxu0 0.0
    %2204 = vmatpush1.msra.mxu0 0.0
    %2205 = vmatprep.subr.mxu0 0.0
    %2206 = vmatpush1.msra.mxu0 0.0
    %2207 = vmatprep.subr.mxu0 0.0
    %2208 = vmatpush1.msra.mxu0 0.0
    %2209 = vmatprep.subr.mxu0 0.0
    %2210 = vmatpush1.msra.mxu0 0.0
    %2211 = vmatprep.subr.mxu0 0.0
    %2212 = vmatpush1.msra.mxu0 0.0
    %2213 = vmatprep.subr.mxu0 0.0
    %2214 = vmatpush1.msra.mxu0 0.0
    %2215 = vmatprep.subr.mxu0 0.0
    %2216 = vmatpush1.msra.mxu0 0.0
    %2217 = vmatprep.subr.mxu0 0.0
    %2218 = vmatpush1.msra.mxu0 0.0
    %2219 = vmatprep.subr.mxu0 0.0
    %2220 = vmatpush1.msra.mxu0 0.0
    %2221 = vmatprep.subr.mxu0 0.0
    %2222 = vmatpush1.msra.mxu0 0.0
    %2223 = vmatprep.subr.mxu0 0.0
    %2224 = vmatpush1.msra.mxu0 0.0
    %2225 = vmatprep.subr.mxu0 0.0
    %2226 = vmatpush1.msra.mxu0 0.0
    %2227 = vmatprep.subr.mxu0 0.0
    %2228 = vmatpush1.msra.mxu0 0.0
    %2229 = vmatprep.subr.mxu0 0.0
    %2230 = vmatpush1.msra.mxu0 0.0
    %2231 = vmatprep.subr.mxu0 0.0
    %2232 = vmatpush1.msra.mxu0 0.0
    %2233 = vmatprep.mubr.f32.mxu0 0.0
    %2234 = vmatmul.mubr.f32.gmra.mrb[0].mxu0 %v1380
    %v2235 = vpop.f32.mrb[0].mxu0
    %v2236 = vadd.f32 %v2165, %v2235
    %v2237 = vpop.f32.mrb[0].mxu0
    %v2238 = vadd.f32 %v2167, %v2237
    %2239 = vdwg.mxu0
    %v2240 = vtanh.pop %v2094
    %v2241 = vtanh.pop %v2096
    %v2242 = vtanh.pop %v2236
    %v2243 = vtanh.pop %v2238
    %2244 = vmatprep.subr.mxu0 %v257
    %2245 = vmatpush1.msra.mxu0 %v256
    %2246 = vmatprep.subr.mxu0 %v261
    %2247 = vmatpush1.msra.mxu0 %v260
    %2248 = vmatprep.subr.mxu0 %v265
    %2249 = vmatpush1.msra.mxu0 %v264
    %2250 = vmatprep.subr.mxu0 %v269
    %2251 = vmatpush1.msra.mxu0 %v268
    %2252 = vmatprep.subr.mxu0 %v273
    %2253 = vmatpush1.msra.mxu0 %v272
    %2254 = vmatprep.subr.mxu0 %v277
    %2255 = vmatpush1.msra.mxu0 %v276
    %2256 = vmatprep.subr.mxu0 %v281
    %2257 = vmatpush1.msra.mxu0 %v280
    %2258 = vmatprep.subr.mxu0 %v285
    %2259 = vmatpush1.msra.mxu0 %v284
    %2260 = vmatprep.subr.mxu0 %v289
    %2261 = vmatpush1.msra.mxu0 %v288
    %2262 = vmatprep.subr.mxu0 %v293
    %2263 = vmatpush1.msra.mxu0 %v292
    %2264 = vmatprep.subr.mxu0 %v297
    %2265 = vmatpush1.msra.mxu0 %v296
    %2266 = vmatprep.subr.mxu0 %v301
    %2267 = vmatpush1.msra.mxu0 %v300
    %2268 = vmatprep.subr.mxu0 %v305
    %2269 = vmatpush1.msra.mxu0 %v304
    %2270 = vmatprep.subr.mxu0 %v309
    %2271 = vmatpush1.msra.mxu0 %v308
    %2272 = vmatprep.subr.mxu0 %v313
    %2273 = vmatpush1.msra.mxu0 %v312
    %2274 = vmatprep.subr.mxu0 %v317
    %2275 = vmatpush1.msra.mxu0 %v316
    %2276 = vmatprep.subr.mxu0 %v321
    %2277 = vmatpush1.msra.mxu0 %v320
    %2278 = vmatprep.subr.mxu0 %v325
    %2279 = vmatpush1.msra.mxu0 %v324
    %2280 = vmatprep.subr.mxu0 %v329
    %2281 = vmatpush1.msra.mxu0 %v328
    %2282 = vmatprep.subr.mxu0 %v333
    %2283 = vmatpush1.msra.mxu0 %v332
    %2284 = vmatprep.subr.mxu0 %v337
    %2285 = vmatpush1.msra.mxu0 %v336
    %2286 = vmatprep.subr.mxu0 %v341
    %2287 = vmatpush1.msra.mxu0 %v340
    %2288 = vmatprep.subr.mxu0 %v345
    %2289 = vmatpush1.msra.mxu0 %v344
    %2290 = vmatprep.subr.mxu0 %v349
    %2291 = vmatpush1.msra.mxu0 %v348
    %2292 = vmatprep.subr.mxu0 %v353
    %2293 = vmatpush1.msra.mxu0 %v352
    %2294 = vmatprep.subr.mxu0 %v357
    %2295 = vmatpush1.msra.mxu0 %v356
    %2296 = vmatprep.subr.mxu0 %v361
    %2297 = vmatpush1.msra.mxu0 %v360
    %2298 = vmatprep.subr.mxu0 %v365
    %2299 = vmatpush1.msra.mxu0 %v364
    %2300 = vmatprep.subr.mxu0 %v369
    %2301 = vmatpush1.msra.mxu0 %v368
    %2302 = vmatprep.subr.mxu0 %v373
    %2303 = vmatpush1.msra.mxu0 %v372
    %2304 = vmatprep.subr.mxu0 %v377
    %2305 = vmatpush1.msra.mxu0 %v376
    %2306 = vmatprep.subr.mxu0 %v381
    %2307 = vmatpush1.msra.mxu0 %v380
    %2308 = vmatprep.mubr.f32.mxu0 %v2241
    %2309 = vmatmul.mubr.f32.gmra.mrb[0].mxu0 %v2240
    %v2310 = vpop.f32.mrb[0].mxu0
    %v2311 = vadd.f32 0.0, %v2310
    %v2312 = vpop.f32.mrb[0].mxu0
    %v2313 = vadd.f32 0.0, %v2312
    %2314 = vdwg.mxu0
    %2315 = vmatprep.subr.mxu0 %v385
    %2316 = vmatpush1.msra.mxu0 %v384
    %2317 = vmatprep.subr.mxu0 %v389
    %2318 = vmatpush1.msra.mxu0 %v388
    %2319 = vmatprep.subr.mxu0 %v393
    %2320 = vmatpush1.msra.mxu0 %v392
    %2321 = vmatprep.subr.mxu0 %v397
    %2322 = vmatpush1.msra.mxu0 %v396
    %2323 = vmatprep.subr.mxu0 %v401
    %2324 = vmatpush1.msra.mxu0 %v400
    %2325 = vmatprep.subr.mxu0 %v405
    %2326 = vmatpush1.msra.mxu0 %v404
    %2327 = vmatprep.subr.mxu0 %v409
    %2328 = vmatpush1.msra.mxu0 %v408
    %2329 = vmatprep.subr.mxu0 %v413
    %2330 = vmatpush1.msra.mxu0 %v412
    %2331 = vmatprep.subr.mxu0 %v417
    %2332 = vmatpush1.msra.mxu0 %v416
    %2333 = vmatprep.subr.mxu0 %v421
    %2334 = vmatpush1.msra.mxu0 %v420
    %2335 = vmatprep.subr.mxu0 %v425
    %2336 = vmatpush1.msra.mxu0 %v424
    %2337 = vmatprep.subr.mxu0 %v429
    %2338 = vmatpush1.msra.mxu0 %v428
    %2339 = vmatprep.subr.mxu0 %v433
    %2340 = vmatpush1.msra.mxu0 %v432
    %2341 = vmatprep.subr.mxu0 %v437
    %2342 = vmatpush1.msra.mxu0 %v436
    %2343 = vmatprep.subr.mxu0 %v441
    %2344 = vmatpush1.msra.mxu0 %v440
    %2345 = vmatprep.subr.mxu0 %v445
    %2346 = vmatpush1.msra.mxu0 %v444
    %2347 = vmatprep.subr.mxu0 %v449
    %2348 = vmatpush1.msra.mxu0 %v448
    %2349 = vmatprep.subr.mxu0 %v453
    %2350 = vmatpush1.msra.mxu0 %v452
    %2351 = vmatprep.subr.mxu0 %v457
    %2352 = vmatpush1.msra.mxu0 %v456
    %2353 = vmatprep.subr.mxu0 %v461
    %2354 = vmatpush1.msra.mxu0 %v460
    %2355 = vmatprep.subr.mxu0 %v465
    %2356 = vmatpush1.msra.mxu0 %v464
    %2357 = vmatprep.subr.mxu0 %v469
    %2358 = vmatpush1.msra.mxu0 %v468
    %2359 = vmatprep.subr.mxu0 %v473
    %2360 = vmatpush1.msra.mxu0 %v472
    %2361 = vmatprep.subr.mxu0 %v477
    %2362 = vmatpush1.msra.mxu0 %v476
    %2363 = vmatprep.subr.mxu0 %v481
    %2364 = vmatpush1.msra.mxu0 %v480
    %2365 = vmatprep.subr.mxu0 %v485
    %2366 = vmatpush1.msra.mxu0 %v484
    %2367 = vmatprep.subr.mxu0 %v489
    %2368 = vmatpush1.msra.mxu0 %v488
    %2369 = vmatprep.subr.mxu0 %v493
    %2370 = vmatpush1.msra.mxu0 %v492
    %2371 = vmatprep.subr.mxu0 %v497
    %2372 = vmatpush1.msra.mxu0 %v496
    %2373 = vmatprep.subr.mxu0 %v501
    %2374 = vmatpush1.msra.mxu0 %v500
    %2375 = vmatprep.subr.mxu0 %v505
    %2376 = vmatpush1.msra.mxu0 %v504
    %2377 = vmatprep.subr.mxu0 %v509
    %2378 = vmatpush1.msra.mxu0 %v508
    %2379 = vmatprep.mubr.f32.mxu0 %v2243
    %2380 = vmatmul.mubr.f32.gmra.mrb[0].mxu0 %v2242
    %v2381 = vpop.f32.mrb[0].mxu0
    %v2382 = vadd.f32 %v2311, %v2381
    %v2383 = vpop.f32.mrb[0].mxu0
    %v2384 = vadd.f32 %v2313, %v2383
    %2385 = vdwg.mxu0
    %2386 = vmatprep.subr.mxu0 %v259
    %2387 = vmatpush1.msra.mxu0 %v258
    %2388 = vmatprep.subr.mxu0 %v263
    %2389 = vmatpush1.msra.mxu0 %v262
    %2390 = vmatprep.subr.mxu0 %v267
    %2391 = vmatpush1.msra.mxu0 %v266
    %2392 = vmatprep.subr.mxu0 %v271
    %2393 = vmatpush1.msra.mxu0 %v270
    %2394 = vmatprep.subr.mxu0 %v275
    %2395 = vmatpush1.msra.mxu0 %v274
    %2396 = vmatprep.subr.mxu0 %v279
    %2397 = vmatpush1.msra.mxu0 %v278
    %2398 = vmatprep.subr.mxu0 %v283
    %2399 = vmatpush1.msra.mxu0 %v282
    %2400 = vmatprep.subr.mxu0 %v287
    %2401 = vmatpush1.msra.mxu0 %v286
    %2402 = vmatprep.subr.mxu0 %v291
    %2403 = vmatpush1.msra.mxu0 %v290
    %2404 = vmatprep.subr.mxu0 %v295
    %2405 = vmatpush1.msra.mxu0 %v294
    %2406 = vmatprep.subr.mxu0 %v299
    %2407 = vmatpush1.msra.mxu0 %v298
    %2408 = vmatprep.subr.mxu0 %v303
    %2409 = vmatpush1.msra.mxu0 %v302
    %2410 = vmatprep.subr.mxu0 %v307
    %2411 = vmatpush1.msra.mxu0 %v306
    %2412 = vmatprep.subr.mxu0 %v311
    %2413 = vmatpush1.msra.mxu0 %v310
    %2414 = vmatprep.subr.mxu0 %v315
    %2415 = vmatpush1.msra.mxu0 %v314
    %2416 = vmatprep.subr.mxu0 %v319
    %2417 = vmatpush1.msra.mxu0 %v318
    %2418 = vmatprep.subr.mxu0 %v323
    %2419 = vmatpush1.msra.mxu0 %v322
    %2420 = vmatprep.subr.mxu0 %v327
    %2421 = vmatpush1.msra.mxu0 %v326
    %2422 = vmatprep.subr.mxu0 %v331
    %2423 = vmatpush1.msra.mxu0 %v330
    %2424 = vmatprep.subr.mxu0 %v335
    %2425 = vmatpush1.msra.mxu0 %v334
    %2426 = vmatprep.subr.mxu0 %v339
    %2427 = vmatpush1.msra.mxu0 %v338
    %2428 = vmatprep.subr.mxu0 %v343
    %2429 = vmatpush1.msra.mxu0 %v342
    %2430 = vmatprep.subr.mxu0 %v347
    %2431 = vmatpush1.msra.mxu0 %v346
    %2432 = vmatprep.subr.mxu0 %v351
    %2433 = vmatpush1.msra.mxu0 %v350
    %2434 = vmatprep.subr.mxu0 %v355
    %2435 = vmatpush1.msra.mxu0 %v354
    %2436 = vmatprep.subr.mxu0 %v359
    %2437 = vmatpush1.msra.mxu0 %v358
    %2438 = vmatprep.subr.mxu0 %v363
    %2439 = vmatpush1.msra.mxu0 %v362
    %2440 = vmatprep.subr.mxu0 %v367
    %2441 = vmatpush1.msra.mxu0 %v366
    %2442 = vmatprep.subr.mxu0 %v371
    %2443 = vmatpush1.msra.mxu0 %v370
    %2444 = vmatprep.subr.mxu0 %v375
    %2445 = vmatpush1.msra.mxu0 %v374
    %2446 = vmatprep.subr.mxu0 %v379
    %2447 = vmatpush1.msra.mxu0 %v378
    %2448 = vmatprep.subr.mxu0 %v383
    %2449 = vmatpush1.msra.mxu0 %v382
    %2450 = vmatprep.mubr.f32.mxu0 %v2241
    %2451 = vmatmul.mubr.f32.gmra.mrb[0].mxu0 %v2240
    %v2452 = vpop.f32.mrb[0].mxu0
    %v2453 = vadd.f32 0.0, %v2452
    %v2454 = vpop.f32.mrb[0].mxu0
    %v2455 = vadd.f32 0.0, %v2454
    %2456 = vdwg.mxu0
    %2457 = vmatprep.subr.mxu0 %v387
    %2458 = vmatpush1.msra.mxu0 %v386
    %2459 = vmatprep.subr.mxu0 %v391
    %2460 = vmatpush1.msra.mxu0 %v390
    %2461 = vmatprep.subr.mxu0 %v395
    %2462 = vmatpush1.msra.mxu0 %v394
    %2463 = vmatprep.subr.mxu0 %v399
    %2464 = vmatpush1.msra.mxu0 %v398
    %2465 = vmatprep.subr.mxu0 %v403
    %2466 = vmatpush1.msra.mxu0 %v402
    %2467 = vmatprep.subr.mxu0 %v407
    %2468 = vmatpush1.msra.mxu0 %v406
    %2469 = vmatprep.subr.mxu0 %v411
    %2470 = vmatpush1.msra.mxu0 %v410
    %2471 = vmatprep.subr.mxu0 %v415
    %2472 = vmatpush1.msra.mxu0 %v414
    %2473 = vmatprep.subr.mxu0 %v419
    %2474 = vmatpush1.msra.mxu0 %v418
    %2475 = vmatprep.subr.mxu0 %v423
    %2476 = vmatpush1.msra.mxu0 %v422
    %2477 = vmatprep.subr.mxu0 %v427
    %2478 = vmatpush1.msra.mxu0 %v426
    %2479 = vmatprep.subr.mxu0 %v431
    %2480 = vmatpush1.msra.mxu0 %v430
    %2481 = vmatprep.subr.mxu0 %v435
    %2482 = vmatpush1.msra.mxu0 %v434
    %2483 = vmatprep.subr.mxu0 %v439
    %2484 = vmatpush1.msra.mxu0 %v438
    %2485 = vmatprep.subr.mxu0 %v443
    %2486 = vmatpush1.msra.mxu0 %v442
    %2487 = vmatprep.subr.mxu0 %v447
    %2488 = vmatpush1.msra.mxu0 %v446
    %2489 = vmatprep.subr.mxu0 %v451
    %2490 = vmatpush1.msra.mxu0 %v450
    %2491 = vmatprep.subr.mxu0 %v455
    %2492 = vmatpush1.msra.mxu0 %v454
    %2493 = vmatprep.subr.mxu0 %v459
    %2494 = vmatpush1.msra.mxu0 %v458
    %2495 = vmatprep.subr.mxu0 %v463
    %2496 = vmatpush1.msra.mxu0 %v462
    %2497 = vmatprep.subr.mxu0 %v467
    %2498 = vmatpush1.msra.mxu0 %v466
    %2499 = vmatprep.subr.mxu0 %v471
    %2500 = vmatpush1.msra.mxu0 %v470
    %2501 = vmatprep.subr.mxu0 %v475
    %2502 = vmatpush1.msra.mxu0 %v474
    %2503 = vmatprep.subr.mxu0 %v479
    %2504 = vmatpush1.msra.mxu0 %v478
    %2505 = vmatprep.subr.mxu0 %v483
    %2506 = vmatpush1.msra.mxu0 %v482
    %2507 = vmatprep.subr.mxu0 %v487
    %2508 = vmatpush1.msra.mxu0 %v486
    %2509 = vmatprep.subr.mxu0 %v491
    %2510 = vmatpush1.msra.mxu0 %v490
    %2511 = vmatprep.subr.mxu0 %v495
    %2512 = vmatpush1.msra.mxu0 %v494
    %2513 = vmatprep.subr.mxu0 %v499
    %2514 = vmatpush1.msra.mxu0 %v498
    %2515 = vmatprep.subr.mxu0 %v503
    %2516 = vmatpush1.msra.mxu0 %v502
    %2517 = vmatprep.subr.mxu0 %v507
    %2518 = vmatpush1.msra.mxu0 %v506
    %2519 = vmatprep.subr.mxu0 %v511
    %2520 = vmatpush1.msra.mxu0 %v510
    %2521 = vmatprep.mubr.f32.mxu0 %v2243
    %2522 = vmatmul.mubr.f32.gmra.mrb[0].mxu0 %v2242
    %v2523 = vpop.f32.mrb[0].mxu0
    %v2524 = vadd.f32 %v2453, %v2523
    %v2525 = vpop.f32.mrb[0].mxu0
    %v2526 = vadd.f32 %v2455, %v2525
    %2527 = vdwg.mxu0
    %v2528 = vld [vmem:[%s0 + $0x60] sm:$0xff]
    %v2529 = vld [vmem:[%s0 + $0x68] sm:$0xff]
    %v2530 = vld [vmem:[%s0 + $0x70] sm:$0xff]
    %2531 = vmatprep.subr.mxu0 %v65
    %2532 = vmatpush1.msra.mxu0 %v64
    %2533 = vmatprep.subr.mxu0 %v69
    %2534 = vmatpush1.msra.mxu0 %v68
    %2535 = vmatprep.subr.mxu0 %v73
    %2536 = vmatpush1.msra.mxu0 %v72
    %2537 = vmatprep.subr.mxu0 %v77
    %2538 = vmatpush1.msra.mxu0 %v76
    %2539 = vmatprep.subr.mxu0 %v81
    %2540 = vmatpush1.msra.mxu0 %v80
    %2541 = vmatprep.subr.mxu0 %v85
    %2542 = vmatpush1.msra.mxu0 %v84
    %2543 = vmatprep.subr.mxu0 %v89
    %2544 = vmatpush1.msra.mxu0 %v88
    %2545 = vmatprep.subr.mxu0 %v93
    %2546 = vmatpush1.msra.mxu0 %v92
    %2547 = vmatprep.subr.mxu0 %v97
    %2548 = vmatpush1.msra.mxu0 %v96
    %2549 = vmatprep.subr.mxu0 %v101
    %2550 = vmatpush1.msra.mxu0 %v100
    %2551 = vmatprep.subr.mxu0 %v105
    %2552 = vmatpush1.msra.mxu0 %v104
    %2553 = vmatprep.subr.mxu0 %v109
    %2554 = vmatpush1.msra.mxu0 %v108
    %2555 = vmatprep.subr.mxu0 %v113
    %2556 = vmatpush1.msra.mxu0 %v112
    %2557 = vmatprep.subr.mxu0 %v117
    %2558 = vmatpush1.msra.mxu0 %v116
    %2559 = vmatprep.subr.mxu0 %v121
    %2560 = vmatpush1.msra.mxu0 %v120
    %2561 = vmatprep.subr.mxu0 %v125
    %2562 = vmatpush1.msra.mxu0 %v124
    %2563 = vmatprep.subr.mxu0 %v129
    %2564 = vmatpush1.msra.mxu0 %v128
    %2565 = vmatprep.subr.mxu0 %v133
    %2566 = vmatpush1.msra.mxu0 %v132
    %2567 = vmatprep.subr.mxu0 %v137
    %2568 = vmatpush1.msra.mxu0 %v136
    %2569 = vmatprep.subr.mxu0 %v141
    %2570 = vmatpush1.msra.mxu0 %v140
    %2571 = vmatprep.subr.mxu0 %v145
    %2572 = vmatpush1.msra.mxu0 %v144
    %2573 = vmatprep.subr.mxu0 %v149
    %2574 = vmatpush1.msra.mxu0 %v148
    %2575 = vmatprep.subr.mxu0 %v153
    %2576 = vmatpush1.msra.mxu0 %v152
    %2577 = vmatprep.subr.mxu0 %v157
    %2578 = vmatpush1.msra.mxu0 %v156
    %2579 = vmatprep.subr.mxu0 %v161
    %2580 = vmatpush1.msra.mxu0 %v160
    %2581 = vmatprep.subr.mxu0 %v165
    %2582 = vmatpush1.msra.mxu0 %v164
    %2583 = vmatprep.subr.mxu0 %v169
    %2584 = vmatpush1.msra.mxu0 %v168
    %2585 = vmatprep.subr.mxu0 %v173
    %2586 = vmatpush1.msra.mxu0 %v172
    %2587 = vmatprep.subr.mxu0 %v177
    %2588 = vmatpush1.msra.mxu0 %v176
    %2589 = vmatprep.subr.mxu0 %v181
    %2590 = vmatpush1.msra.mxu0 %v180
    %2591 = vmatprep.subr.mxu0 %v185
    %2592 = vmatpush1.msra.mxu0 %v184
    %2593 = vmatprep.subr.mxu0 %v189
    %2594 = vmatpush1.msra.mxu0 %v188
    %2595 = vmatprep.mubr.f32.mxu0 %v1954
    %2596 = vmatmul.mubr.f32.gmra.mrb[0].mxu0 %v1953
    %v2597 = vpop.f32.mrb[0].mxu0
    %v2598 = vadd.f32 %v2382, %v2597
    %v2599 = vpop.f32.mrb[0].mxu0
    %v2600 = vadd.f32 %v2384, %v2599
    %2601 = vdwg.mxu0
    %2602 = vmatprep.subr.mxu0 %v193
    %2603 = vmatpush1.msra.mxu0 %v192
    %2604 = vmatprep.subr.mxu0 %v197
    %2605 = vmatpush1.msra.mxu0 %v196
    %2606 = vmatprep.subr.mxu0 %v201
    %2607 = vmatpush1.msra.mxu0 %v200
    %2608 = vmatprep.subr.mxu0 %v205
    %2609 = vmatpush1.msra.mxu0 %v204
    %2610 = vmatprep.subr.mxu0 %v209
    %2611 = vmatpush1.msra.mxu0 %v208
    %2612 = vmatprep.subr.mxu0 %v213
    %2613 = vmatpush1.msra.mxu0 %v212
    %2614 = vmatprep.subr.mxu0 %v217
    %2615 = vmatpush1.msra.mxu0 %v216
    %2616 = vmatprep.subr.mxu0 %v221
    %2617 = vmatpush1.msra.mxu0 %v220
    %2618 = vmatprep.subr.mxu0 %v225
    %2619 = vmatpush1.msra.mxu0 %v224
    %2620 = vmatprep.subr.mxu0 %v229
    %2621 = vmatpush1.msra.mxu0 %v228
    %2622 = vmatprep.subr.mxu0 %v233
    %2623 = vmatpush1.msra.mxu0 %v232
    %2624 = vmatprep.subr.mxu0 %v237
    %2625 = vmatpush1.msra.mxu0 %v236
    %2626 = vmatprep.subr.mxu0 %v241
    %2627 = vmatpush1.msra.mxu0 %v240
    %2628 = vmatprep.subr.mxu0 %v245
    %2629 = vmatpush1.msra.mxu0 %v244
    %2630 = vmatprep.subr.mxu0 %v249
    %2631 = vmatpush1.msra.mxu0 %v248
    %2632 = vmatprep.subr.mxu0 %v253
    %2633 = vmatpush1.msra.mxu0 %v252
    %2634 = vmatprep.subr.mxu0 0.0
    %2635 = vmatpush1.msra.mxu0 0.0
    %2636 = vmatprep.subr.mxu0 0.0
    %2637 = vmatpush1.msra.mxu0 0.0
    %2638 = vmatprep.subr.mxu0 0.0
    %2639 = vmatpush1.msra.mxu0 0.0
    %2640 = vmatprep.subr.mxu0 0.0
    %2641 = vmatpush1.msra.mxu0 0.0
    %2642 = vmatprep.subr.mxu0 0.0
    %2643 = vmatpush1.msra.mxu0 0.0
    %2644 = vmatprep.subr.mxu0 0.0
    %2645 = vmatpush1.msra.mxu0 0.0
    %2646 = vmatprep.subr.mxu0 0.0
    %2647 = vmatpush1.msra.mxu0 0.0
    %2648 = vmatprep.subr.mxu0 0.0
    %2649 = vmatpush1.msra.mxu0 0.0
    %2650 = vmatprep.subr.mxu0 0.0
    %2651 = vmatpush1.msra.mxu0 0.0
    %2652 = vmatprep.subr.mxu0 0.0
    %2653 = vmatpush1.msra.mxu0 0.0
    %2654 = vmatprep.subr.mxu0 0.0
    %2655 = vmatpush1.msra.mxu0 0.0
    %2656 = vmatprep.subr.mxu0 0.0
    %2657 = vmatpush1.msra.mxu0 0.0
    %2658 = vmatprep.subr.mxu0 0.0
    %2659 = vmatpush1.msra.mxu0 0.0
    %2660 = vmatprep.subr.mxu0 0.0
    %2661 = vmatpush1.msra.mxu0 0.0
    %2662 = vmatprep.subr.mxu0 0.0
    %2663 = vmatpush1.msra.mxu0 0.0
    %2664 = vmatprep.subr.mxu0 0.0
    %2665 = vmatpush1.msra.mxu0 0.0
    %2666 = vmatprep.mubr.f32.mxu0 0.0
    %2667 = vmatmul.mubr.f32.gmra.mrb[0].mxu0 %v1955
    %v2668 = vpop.f32.mrb[0].mxu0
    %v2669 = vadd.f32 %v2598, %v2668
    %v2670 = vpop.f32.mrb[0].mxu0
    %v2671 = vadd.f32 %v2600, %v2670
    %2672 = vdwg.mxu0
    %2673 = vmatprep.subr.mxu0 %v67
    %2674 = vmatpush1.msra.mxu0 %v66
    %2675 = vmatprep.subr.mxu0 %v71
    %2676 = vmatpush1.msra.mxu0 %v70
    %2677 = vmatprep.subr.mxu0 %v75
    %2678 = vmatpush1.msra.mxu0 %v74
    %2679 = vmatprep.subr.mxu0 %v79
    %2680 = vmatpush1.msra.mxu0 %v78
    %2681 = vmatprep.subr.mxu0 %v83
    %2682 = vmatpush1.msra.mxu0 %v82
    %2683 = vmatprep.subr.mxu0 %v87
    %2684 = vmatpush1.msra.mxu0 %v86
    %2685 = vmatprep.subr.mxu0 %v91
    %2686 = vmatpush1.msra.mxu0 %v90
    %2687 = vmatprep.subr.mxu0 %v95
    %2688 = vmatpush1.msra.mxu0 %v94
    %2689 = vmatprep.subr.mxu0 %v99
    %2690 = vmatpush1.msra.mxu0 %v98
    %2691 = vmatprep.subr.mxu0 %v103
    %2692 = vmatpush1.msra.mxu0 %v102
    %2693 = vmatprep.subr.mxu0 %v107
    %2694 = vmatpush1.msra.mxu0 %v106
    %2695 = vmatprep.subr.mxu0 %v111
    %2696 = vmatpush1.msra.mxu0 %v110
    %2697 = vmatprep.subr.mxu0 %v115
    %2698 = vmatpush1.msra.mxu0 %v114
    %2699 = vmatprep.subr.mxu0 %v119
    %2700 = vmatpush1.msra.mxu0 %v118
    %2701 = vmatprep.subr.mxu0 %v123
    %2702 = vmatpush1.msra.mxu0 %v122
    %2703 = vmatprep.subr.mxu0 %v127
    %2704 = vmatpush1.msra.mxu0 %v126
    %2705 = vmatprep.subr.mxu0 %v131
    %2706 = vmatpush1.msra.mxu0 %v130
    %2707 = vmatprep.subr.mxu0 %v135
    %2708 = vmatpush1.msra.mxu0 %v134
    %2709 = vmatprep.subr.mxu0 %v139
    %2710 = vmatpush1.msra.mxu0 %v138
    %2711 = vmatprep.subr.mxu0 %v143
    %2712 = vmatpush1.msra.mxu0 %v142
    %2713 = vmatprep.subr.mxu0 %v147
    %2714 = vmatpush1.msra.mxu0 %v146
    %2715 = vmatprep.subr.mxu0 %v151
    %2716 = vmatpush1.msra.mxu0 %v150
    %2717 = vmatprep.subr.mxu0 %v155
    %2718 = vmatpush1.msra.mxu0 %v154
    %2719 = vmatprep.subr.mxu0 %v159
    %2720 = vmatpush1.msra.mxu0 %v158
    %2721 = vmatprep.subr.mxu0 %v163
    %2722 = vmatpush1.msra.mxu0 %v162
    %2723 = vmatprep.subr.mxu0 %v167
    %2724 = vmatpush1.msra.mxu0 %v166
    %2725 = vmatprep.subr.mxu0 %v171
    %2726 = vmatpush1.msra.mxu0 %v170
    %2727 = vmatprep.subr.mxu0 %v175
    %2728 = vmatpush1.msra.mxu0 %v174
    %2729 = vmatprep.subr.mxu0 %v179
    %2730 = vmatpush1.msra.mxu0 %v178
    %2731 = vmatprep.subr.mxu0 %v183
    %2732 = vmatpush1.msra.mxu0 %v182
    %2733 = vmatprep.subr.mxu0 %v187
    %2734 = vmatpush1.msra.mxu0 %v186
    %2735 = vmatprep.subr.mxu0 %v191
    %2736 = vmatpush1.msra.mxu0 %v190
    %2737 = vmatprep.mubr.f32.mxu0 %v1954
    %2738 = vmatmul.mubr.f32.gmra.mrb[0].mxu0 %v1953
    %v2739 = vpop.f32.mrb[0].mxu0
    %v2740 = vadd.f32 %v2524, %v2739
    %v2741 = vpop.f32.mrb[0].mxu0
    %v2742 = vadd.f32 %v2526, %v2741
    %2743 = vdwg.mxu0
    %2744 = vmatprep.subr.mxu0 %v195
    %2745 = vmatpush1.msra.mxu0 %v194
    %2746 = vmatprep.subr.mxu0 %v199
    %2747 = vmatpush1.msra.mxu0 %v198
    %2748 = vmatprep.subr.mxu0 %v203
    %2749 = vmatpush1.msra.mxu0 %v202
    %2750 = vmatprep.subr.mxu0 %v207
    %2751 = vmatpush1.msra.mxu0 %v206
    %2752 = vmatprep.subr.mxu0 %v211
    %2753 = vmatpush1.msra.mxu0 %v210
    %2754 = vmatprep.subr.mxu0 %v215
    %2755 = vmatpush1.msra.mxu0 %v214
    %2756 = vmatprep.subr.mxu0 %v219
    %2757 = vmatpush1.msra.mxu0 %v218
    %2758 = vmatprep.subr.mxu0 %v223
    %2759 = vmatpush1.msra.mxu0 %v222
    %2760 = vmatprep.subr.mxu0 %v227
    %2761 = vmatpush1.msra.mxu0 %v226
    %2762 = vmatprep.subr.mxu0 %v231
    %2763 = vmatpush1.msra.mxu0 %v230
    %2764 = vmatprep.subr.mxu0 %v235
    %2765 = vmatpush1.msra.mxu0 %v234
    %2766 = vmatprep.subr.mxu0 %v239
    %2767 = vmatpush1.msra.mxu0 %v238
    %2768 = vmatprep.subr.mxu0 %v243
    %2769 = vmatpush1.msra.mxu0 %v242
    %2770 = vmatprep.subr.mxu0 %v247
    %2771 = vmatpush1.msra.mxu0 %v246
    %2772 = vmatprep.subr.mxu0 %v251
    %2773 = vmatpush1.msra.mxu0 %v250
    %2774 = vmatprep.subr.mxu0 %v255
    %2775 = vmatpush1.msra.mxu0 %v254
    %2776 = vmatprep.subr.mxu0 0.0
    %2777 = vmatpush1.msra.mxu0 0.0
    %2778 = vmatprep.subr.mxu0 0.0
    %2779 = vmatpush1.msra.mxu0 0.0
    %2780 = vmatprep.subr.mxu0 0.0
    %2781 = vmatpush1.msra.mxu0 0.0
    %2782 = vmatprep.subr.mxu0 0.0
    %2783 = vmatpush1.msra.mxu0 0.0
    %2784 = vmatprep.subr.mxu0 0.0
    %2785 = vmatpush1.msra.mxu0 0.0
    %2786 = vmatprep.subr.mxu0 0.0
    %2787 = vmatpush1.msra.mxu0 0.0
    %2788 = vmatprep.subr.mxu0 0.0
    %2789 = vmatpush1.msra.mxu0 0.0
    %2790 = vmatprep.subr.mxu0 0.0
    %2791 = vmatpush1.msra.mxu0 0.0
    %2792 = vmatprep.subr.mxu0 0.0
    %2793 = vmatpush1.msra.mxu0 0.0
    %2794 = vmatprep.subr.mxu0 0.0
    %2795 = vmatpush1.msra.mxu0 0.0
    %2796 = vmatprep.subr.mxu0 0.0
    %2797 = vmatpush1.msra.mxu0 0.0
    %2798 = vmatprep.subr.mxu0 0.0
    %2799 = vmatpush1.msra.mxu0 0.0
    %2800 = vmatprep.subr.mxu0 0.0
    %2801 = vmatpush1.msra.mxu0 0.0
    %2802 = vmatprep.subr.mxu0 0.0
    %2803 = vmatpush1.msra.mxu0 0.0
    %2804 = vmatprep.subr.mxu0 0.0
    %2805 = vmatpush1.msra.mxu0 0.0
    %2806 = vmatprep.subr.mxu0 0.0
    %2807 = vmatpush1.msra.mxu0 0.0
    %2808 = vmatprep.mubr.f32.mxu0 0.0
    %2809 = vmatmul.mubr.f32.gmra.mrb[0].mxu0 %v1955
    %v2810 = vpop.f32.mrb[0].mxu0
    %v2811 = vadd.f32 %v2740, %v2810
    %v2812 = vpop.f32.mrb[0].mxu0
    %v2813 = vadd.f32 %v2742, %v2812
    %2814 = vdwg.mxu0
    %v2815 = vtanh.pop %v2669
    %v2816 = vtanh.pop %v2671
    %v2817 = vtanh.pop %v2811
    %v2818 = vtanh.pop %v2813
    %2819 = vmatprep.subr.mxu0 %v257
    %2820 = vmatpush1.msra.mxu0 %v256
    %2821 = vmatprep.subr.mxu0 %v261
    %2822 = vmatpush1.msra.mxu0 %v260
    %2823 = vmatprep.subr.mxu0 %v265
    %2824 = vmatpush1.msra.mxu0 %v264
    %2825 = vmatprep.subr.mxu0 %v269
    %2826 = vmatpush1.msra.mxu0 %v268
    %2827 = vmatprep.subr.mxu0 %v273
    %2828 = vmatpush1.msra.mxu0 %v272
    %2829 = vmatprep.subr.mxu0 %v277
    %2830 = vmatpush1.msra.mxu0 %v276
    %2831 = vmatprep.subr.mxu0 %v281
    %2832 = vmatpush1.msra.mxu0 %v280
    %2833 = vmatprep.subr.mxu0 %v285
    %2834 = vmatpush1.msra.mxu0 %v284
    %2835 = vmatprep.subr.mxu0 %v289
    %2836 = vmatpush1.msra.mxu0 %v288
    %2837 = vmatprep.subr.mxu0 %v293
    %2838 = vmatpush1.msra.mxu0 %v292
    %2839 = vmatprep.subr.mxu0 %v297
    %2840 = vmatpush1.msra.mxu0 %v296
    %2841 = vmatprep.subr.mxu0 %v301
    %2842 = vmatpush1.msra.mxu0 %v300
    %2843 = vmatprep.subr.mxu0 %v305
    %2844 = vmatpush1.msra.mxu0 %v304
    %2845 = vmatprep.subr.mxu0 %v309
    %2846 = vmatpush1.msra.mxu0 %v308
    %2847 = vmatprep.subr.mxu0 %v313
    %2848 = vmatpush1.msra.mxu0 %v312
    %2849 = vmatprep.subr.mxu0 %v317
    %2850 = vmatpush1.msra.mxu0 %v316
    %2851 = vmatprep.subr.mxu0 %v321
    %2852 = vmatpush1.msra.mxu0 %v320
    %2853 = vmatprep.subr.mxu0 %v325
    %2854 = vmatpush1.msra.mxu0 %v324
    %2855 = vmatprep.subr.mxu0 %v329
    %2856 = vmatpush1.msra.mxu0 %v328
    %2857 = vmatprep.subr.mxu0 %v333
    %2858 = vmatpush1.msra.mxu0 %v332
    %2859 = vmatprep.subr.mxu0 %v337
    %2860 = vmatpush1.msra.mxu0 %v336
    %2861 = vmatprep.subr.mxu0 %v341
    %2862 = vmatpush1.msra.mxu0 %v340
    %2863 = vmatprep.subr.mxu0 %v345
    %2864 = vmatpush1.msra.mxu0 %v344
    %2865 = vmatprep.subr.mxu0 %v349
    %2866 = vmatpush1.msra.mxu0 %v348
    %2867 = vmatprep.subr.mxu0 %v353
    %2868 = vmatpush1.msra.mxu0 %v352
    %2869 = vmatprep.subr.mxu0 %v357
    %2870 = vmatpush1.msra.mxu0 %v356
    %2871 = vmatprep.subr.mxu0 %v361
    %2872 = vmatpush1.msra.mxu0 %v360
    %2873 = vmatprep.subr.mxu0 %v365
    %2874 = vmatpush1.msra.mxu0 %v364
    %2875 = vmatprep.subr.mxu0 %v369
    %2876 = vmatpush1.msra.mxu0 %v368
    %2877 = vmatprep.subr.mxu0 %v373
    %2878 = vmatpush1.msra.mxu0 %v372
    %2879 = vmatprep.subr.mxu0 %v377
    %2880 = vmatpush1.msra.mxu0 %v376
    %2881 = vmatprep.subr.mxu0 %v381
    %2882 = vmatpush1.msra.mxu0 %v380
    %2883 = vmatprep.mubr.f32.mxu0 %v2816
    %2884 = vmatmul.mubr.f32.gmra.mrb[0].mxu0 %v2815
    %v2885 = vpop.f32.mrb[0].mxu0
    %v2886 = vadd.f32 0.0, %v2885
    %v2887 = vpop.f32.mrb[0].mxu0
    %v2888 = vadd.f32 0.0, %v2887
    %2889 = vdwg.mxu0
    %2890 = vmatprep.subr.mxu0 %v385
    %2891 = vmatpush1.msra.mxu0 %v384
    %2892 = vmatprep.subr.mxu0 %v389
    %2893 = vmatpush1.msra.mxu0 %v388
    %2894 = vmatprep.subr.mxu0 %v393
    %2895 = vmatpush1.msra.mxu0 %v392
    %2896 = vmatprep.subr.mxu0 %v397
    %2897 = vmatpush1.msra.mxu0 %v396
    %2898 = vmatprep.subr.mxu0 %v401
    %2899 = vmatpush1.msra.mxu0 %v400
    %2900 = vmatprep.subr.mxu0 %v405
    %2901 = vmatpush1.msra.mxu0 %v404
    %2902 = vmatprep.subr.mxu0 %v409
    %2903 = vmatpush1.msra.mxu0 %v408
    %2904 = vmatprep.subr.mxu0 %v413
    %2905 = vmatpush1.msra.mxu0 %v412
    %2906 = vmatprep.subr.mxu0 %v417
    %2907 = vmatpush1.msra.mxu0 %v416
    %2908 = vmatprep.subr.mxu0 %v421
    %2909 = vmatpush1.msra.mxu0 %v420
    %2910 = vmatprep.subr.mxu0 %v425
    %2911 = vmatpush1.msra.mxu0 %v424
    %2912 = vmatprep.subr.mxu0 %v429
    %2913 = vmatpush1.msra.mxu0 %v428
    %2914 = vmatprep.subr.mxu0 %v433
    %2915 = vmatpush1.msra.mxu0 %v432
    %2916 = vmatprep.subr.mxu0 %v437
    %2917 = vmatpush1.msra.mxu0 %v436
    %2918 = vmatprep.subr.mxu0 %v441
    %2919 = vmatpush1.msra.mxu0 %v440
    %2920 = vmatprep.subr.mxu0 %v445
    %2921 = vmatpush1.msra.mxu0 %v444
    %2922 = vmatprep.subr.mxu0 %v449
    %2923 = vmatpush1.msra.mxu0 %v448
    %2924 = vmatprep.subr.mxu0 %v453
    %2925 = vmatpush1.msra.mxu0 %v452
    %2926 = vmatprep.subr.mxu0 %v457
    %2927 = vmatpush1.msra.mxu0 %v456
    %2928 = vmatprep.subr.mxu0 %v461
    %2929 = vmatpush1.msra.mxu0 %v460
    %2930 = vmatprep.subr.mxu0 %v465
    %2931 = vmatpush1.msra.mxu0 %v464
    %2932 = vmatprep.subr.mxu0 %v469
    %2933 = vmatpush1.msra.mxu0 %v468
    %2934 = vmatprep.subr.mxu0 %v473
    %2935 = vmatpush1.msra.mxu0 %v472
    %2936 = vmatprep.subr.mxu0 %v477
    %2937 = vmatpush1.msra.mxu0 %v476
    %2938 = vmatprep.subr.mxu0 %v481
    %2939 = vmatpush1.msra.mxu0 %v480
    %2940 = vmatprep.subr.mxu0 %v485
    %2941 = vmatpush1.msra.mxu0 %v484
    %2942 = vmatprep.subr.mxu0 %v489
    %2943 = vmatpush1.msra.mxu0 %v488
    %2944 = vmatprep.subr.mxu0 %v493
    %2945 = vmatpush1.msra.mxu0 %v492
    %2946 = vmatprep.subr.mxu0 %v497
    %2947 = vmatpush1.msra.mxu0 %v496
    %2948 = vmatprep.subr.mxu0 %v501
    %2949 = vmatpush1.msra.mxu0 %v500
    %2950 = vmatprep.subr.mxu0 %v505
    %2951 = vmatpush1.msra.mxu0 %v504
    %2952 = vmatprep.subr.mxu0 %v509
    %2953 = vmatpush1.msra.mxu0 %v508
    %2954 = vmatprep.mubr.f32.mxu0 %v2818
    %2955 = vmatmul.mubr.f32.gmra.mrb[0].mxu0 %v2817
    %v2956 = vpop.f32.mrb[0].mxu0
    %v2957 = vadd.f32 %v2886, %v2956
    %v2958 = vpop.f32.mrb[0].mxu0
    %v2959 = vadd.f32 %v2888, %v2958
    %2960 = vdwg.mxu0
    %2961 = vmatprep.subr.mxu0 %v259
    %2962 = vmatpush1.msra.mxu0 %v258
    %2963 = vmatprep.subr.mxu0 %v263
    %2964 = vmatpush1.msra.mxu0 %v262
    %2965 = vmatprep.subr.mxu0 %v267
    %2966 = vmatpush1.msra.mxu0 %v266
    %2967 = vmatprep.subr.mxu0 %v271
    %2968 = vmatpush1.msra.mxu0 %v270
    %2969 = vmatprep.subr.mxu0 %v275
    %2970 = vmatpush1.msra.mxu0 %v274
    %2971 = vmatprep.subr.mxu0 %v279
    %2972 = vmatpush1.msra.mxu0 %v278
    %2973 = vmatprep.subr.mxu0 %v283
    %2974 = vmatpush1.msra.mxu0 %v282
    %2975 = vmatprep.subr.mxu0 %v287
    %2976 = vmatpush1.msra.mxu0 %v286
    %2977 = vmatprep.subr.mxu0 %v291
    %2978 = vmatpush1.msra.mxu0 %v290
    %2979 = vmatprep.subr.mxu0 %v295
    %2980 = vmatpush1.msra.mxu0 %v294
    %2981 = vmatprep.subr.mxu0 %v299
    %2982 = vmatpush1.msra.mxu0 %v298
    %2983 = vmatprep.subr.mxu0 %v303
    %2984 = vmatpush1.msra.mxu0 %v302
    %2985 = vmatprep.subr.mxu0 %v307
    %2986 = vmatpush1.msra.mxu0 %v306
    %2987 = vmatprep.subr.mxu0 %v311
    %2988 = vmatpush1.msra.mxu0 %v310
    %2989 = vmatprep.subr.mxu0 %v315
    %2990 = vmatpush1.msra.mxu0 %v314
    %2991 = vmatprep.subr.mxu0 %v319
    %2992 = vmatpush1.msra.mxu0 %v318
    %2993 = vmatprep.subr.mxu0 %v323
    %2994 = vmatpush1.msra.mxu0 %v322
    %2995 = vmatprep.subr.mxu0 %v327
    %2996 = vmatpush1.msra.mxu0 %v326
    %2997 = vmatprep.subr.mxu0 %v331
    %2998 = vmatpush1.msra.mxu0 %v330
    %2999 = vmatprep.subr.mxu0 %v335
    %3000 = vmatpush1.msra.mxu0 %v334
    %3001 = vmatprep.subr.mxu0 %v339
    %3002 = vmatpush1.msra.mxu0 %v338
    %3003 = vmatprep.subr.mxu0 %v343
    %3004 = vmatpush1.msra.mxu0 %v342
    %3005 = vmatprep.subr.mxu0 %v347
    %3006 = vmatpush1.msra.mxu0 %v346
    %3007 = vmatprep.subr.mxu0 %v351
    %3008 = vmatpush1.msra.mxu0 %v350
    %3009 = vmatprep.subr.mxu0 %v355
    %3010 = vmatpush1.msra.mxu0 %v354
    %3011 = vmatprep.subr.mxu0 %v359
    %3012 = vmatpush1.msra.mxu0 %v358
    %3013 = vmatprep.subr.mxu0 %v363
    %3014 = vmatpush1.msra.mxu0 %v362
    %3015 = vmatprep.subr.mxu0 %v367
    %3016 = vmatpush1.msra.mxu0 %v366
    %3017 = vmatprep.subr.mxu0 %v371
    %3018 = vmatpush1.msra.mxu0 %v370
    %3019 = vmatprep.subr.mxu0 %v375
    %3020 = vmatpush1.msra.mxu0 %v374
    %3021 = vmatprep.subr.mxu0 %v379
    %3022 = vmatpush1.msra.mxu0 %v378
    %3023 = vmatprep.subr.mxu0 %v383
    %3024 = vmatpush1.msra.mxu0 %v382
    %3025 = vmatprep.mubr.f32.mxu0 %v2816
    %3026 = vmatmul.mubr.f32.gmra.mrb[0].mxu0 %v2815
    %v3027 = vpop.f32.mrb[0].mxu0
    %v3028 = vadd.f32 0.0, %v3027
    %v3029 = vpop.f32.mrb[0].mxu0
    %v3030 = vadd.f32 0.0, %v3029
    %3031 = vdwg.mxu0
    %3032 = vmatprep.subr.mxu0 %v387
    %3033 = vmatpush1.msra.mxu0 %v386
    %3034 = vmatprep.subr.mxu0 %v391
    %3035 = vmatpush1.msra.mxu0 %v390
    %3036 = vmatprep.subr.mxu0 %v395
    %3037 = vmatpush1.msra.mxu0 %v394
    %3038 = vmatprep.subr.mxu0 %v399
    %3039 = vmatpush1.msra.mxu0 %v398
    %3040 = vmatprep.subr.mxu0 %v403
    %3041 = vmatpush1.msra.mxu0 %v402
    %3042 = vmatprep.subr.mxu0 %v407
    %3043 = vmatpush1.msra.mxu0 %v406
    %3044 = vmatprep.subr.mxu0 %v411
    %3045 = vmatpush1.msra.mxu0 %v410
    %3046 = vmatprep.subr.mxu0 %v415
    %3047 = vmatpush1.msra.mxu0 %v414
    %3048 = vmatprep.subr.mxu0 %v419
    %3049 = vmatpush1.msra.mxu0 %v418
    %3050 = vmatprep.subr.mxu0 %v423
    %3051 = vmatpush1.msra.mxu0 %v422
    %3052 = vmatprep.subr.mxu0 %v427
    %3053 = vmatpush1.msra.mxu0 %v426
    %3054 = vmatprep.subr.mxu0 %v431
    %3055 = vmatpush1.msra.mxu0 %v430
    %3056 = vmatprep.subr.mxu0 %v435
    %3057 = vmatpush1.msra.mxu0 %v434
    %3058 = vmatprep.subr.mxu0 %v439
    %3059 = vmatpush1.msra.mxu0 %v438
    %3060 = vmatprep.subr.mxu0 %v443
    %3061 = vmatpush1.msra.mxu0 %v442
    %3062 = vmatprep.subr.mxu0 %v447
    %3063 = vmatpush1.msra.mxu0 %v446
    %3064 = vmatprep.subr.mxu0 %v451
    %3065 = vmatpush1.msra.mxu0 %v450
    %3066 = vmatprep.subr.mxu0 %v455
    %3067 = vmatpush1.msra.mxu0 %v454
    %3068 = vmatprep.subr.mxu0 %v459
    %3069 = vmatpush1.msra.mxu0 %v458
    %3070 = vmatprep.subr.mxu0 %v463
    %3071 = vmatpush1.msra.mxu0 %v462
    %3072 = vmatprep.subr.mxu0 %v467
    %3073 = vmatpush1.msra.mxu0 %v466
    %3074 = vmatprep.subr.mxu0 %v471
    %3075 = vmatpush1.msra.mxu0 %v470
    %3076 = vmatprep.subr.mxu0 %v475
    %3077 = vmatpush1.msra.mxu0 %v474
    %3078 = vmatprep.subr.mxu0 %v479
    %3079 = vmatpush1.msra.mxu0 %v478
    %3080 = vmatprep.subr.mxu0 %v483
    %3081 = vmatpush1.msra.mxu0 %v482
    %3082 = vmatprep.subr.mxu0 %v487
    %3083 = vmatpush1.msra.mxu0 %v486
    %3084 = vmatprep.subr.mxu0 %v491
    %3085 = vmatpush1.msra.mxu0 %v490
    %3086 = vmatprep.subr.mxu0 %v495
    %3087 = vmatpush1.msra.mxu0 %v494
    %3088 = vmatprep.subr.mxu0 %v499
    %3089 = vmatpush1.msra.mxu0 %v498
    %3090 = vmatprep.subr.mxu0 %v503
    %3091 = vmatpush1.msra.mxu0 %v502
    %3092 = vmatprep.subr.mxu0 %v507
    %3093 = vmatpush1.msra.mxu0 %v506
    %3094 = vmatprep.subr.mxu0 %v511
    %3095 = vmatpush1.msra.mxu0 %v510
    %3096 = vmatprep.mubr.f32.mxu0 %v2818
    %3097 = vmatmul.mubr.f32.gmra.mrb[0].mxu0 %v2817
    %v3098 = vpop.f32.mrb[0].mxu0
    %v3099 = vadd.f32 %v3028, %v3098
    %v3100 = vpop.f32.mrb[0].mxu0
    %v3101 = vadd.f32 %v3030, %v3100
    %3102 = vdwg.mxu0
    %v3103 = vld [vmem:[%s0 + $0x78] sm:$0xff]
    %v3104 = vld [vmem:[%s0 + $0x80] sm:$0xff]
    %v3105 = vld [vmem:[%s0 + $0x88] sm:$0xff]
    %3106 = vmatprep.subr.mxu0 %v65
    %3107 = vmatpush1.msra.mxu0 %v64
    %3108 = vmatprep.subr.mxu0 %v69
    %3109 = vmatpush1.msra.mxu0 %v68
    %3110 = vmatprep.subr.mxu0 %v73
    %3111 = vmatpush1.msra.mxu0 %v72
    %3112 = vmatprep.subr.mxu0 %v77
    %3113 = vmatpush1.msra.mxu0 %v76
    %3114 = vmatprep.subr.mxu0 %v81
    %3115 = vmatpush1.msra.mxu0 %v80
    %3116 = vmatprep.subr.mxu0 %v85
    %3117 = vmatpush1.msra.mxu0 %v84
    %3118 = vmatprep.subr.mxu0 %v89
    %3119 = vmatpush1.msra.mxu0 %v88
    %3120 = vmatprep.subr.mxu0 %v93
    %3121 = vmatpush1.msra.mxu0 %v92
    %3122 = vmatprep.subr.mxu0 %v97
    %3123 = vmatpush1.msra.mxu0 %v96
    %3124 = vmatprep.subr.mxu0 %v101
    %3125 = vmatpush1.msra.mxu0 %v100
    %3126 = vmatprep.subr.mxu0 %v105
    %3127 = vmatpush1.msra.mxu0 %v104
    %3128 = vmatprep.subr.mxu0 %v109
    %3129 = vmatpush1.msra.mxu0 %v108
    %3130 = vmatprep.subr.mxu0 %v113
    %3131 = vmatpush1.msra.mxu0 %v112
    %3132 = vmatprep.subr.mxu0 %v117
    %3133 = vmatpush1.msra.mxu0 %v116
    %3134 = vmatprep.subr.mxu0 %v121
    %3135 = vmatpush1.msra.mxu0 %v120
    %3136 = vmatprep.subr.mxu0 %v125
    %3137 = vmatpush1.msra.mxu0 %v124
    %3138 = vmatprep.subr.mxu0 %v129
    %3139 = vmatpush1.msra.mxu0 %v128
    %3140 = vmatprep.subr.mxu0 %v133
    %3141 = vmatpush1.msra.mxu0 %v132
    %3142 = vmatprep.subr.mxu0 %v137
    %3143 = vmatpush1.msra.mxu0 %v136
    %3144 = vmatprep.subr.mxu0 %v141
    %3145 = vmatpush1.msra.mxu0 %v140
    %3146 = vmatprep.subr.mxu0 %v145
    %3147 = vmatpush1.msra.mxu0 %v144
    %3148 = vmatprep.subr.mxu0 %v149
    %3149 = vmatpush1.msra.mxu0 %v148
    %3150 = vmatprep.subr.mxu0 %v153
    %3151 = vmatpush1.msra.mxu0 %v152
    %3152 = vmatprep.subr.mxu0 %v157
    %3153 = vmatpush1.msra.mxu0 %v156
    %3154 = vmatprep.subr.mxu0 %v161
    %3155 = vmatpush1.msra.mxu0 %v160
    %3156 = vmatprep.subr.mxu0 %v165
    %3157 = vmatpush1.msra.mxu0 %v164
    %3158 = vmatprep.subr.mxu0 %v169
    %3159 = vmatpush1.msra.mxu0 %v168
    %3160 = vmatprep.subr.mxu0 %v173
    %3161 = vmatpush1.msra.mxu0 %v172
    %3162 = vmatprep.subr.mxu0 %v177
    %3163 = vmatpush1.msra.mxu0 %v176
    %3164 = vmatprep.subr.mxu0 %v181
    %3165 = vmatpush1.msra.mxu0 %v180
    %3166 = vmatprep.subr.mxu0 %v185
    %3167 = vmatpush1.msra.mxu0 %v184
    %3168 = vmatprep.subr.mxu0 %v189
    %3169 = vmatpush1.msra.mxu0 %v188
    %3170 = vmatprep.mubr.f32.mxu0 %v2529
    %3171 = vmatmul.mubr.f32.gmra.mrb[0].mxu0 %v2528
    %v3172 = vpop.f32.mrb[0].mxu0
    %v3173 = vadd.f32 %v2957, %v3172
    %v3174 = vpop.f32.mrb[0].mxu0
    %v3175 = vadd.f32 %v2959, %v3174
    %3176 = vdwg.mxu0
    %3177 = vmatprep.subr.mxu0 %v193
    %3178 = vmatpush1.msra.mxu0 %v192
    %3179 = vmatprep.subr.mxu0 %v197
    %3180 = vmatpush1.msra.mxu0 %v196
    %3181 = vmatprep.subr.mxu0 %v201
    %3182 = vmatpush1.msra.mxu0 %v200
    %3183 = vmatprep.subr.mxu0 %v205
    %3184 = vmatpush1.msra.mxu0 %v204
    %3185 = vmatprep.subr.mxu0 %v209
    %3186 = vmatpush1.msra.mxu0 %v208
    %3187 = vmatprep.subr.mxu0 %v213
    %3188 = vmatpush1.msra.mxu0 %v212
    %3189 = vmatprep.subr.mxu0 %v217
    %3190 = vmatpush1.msra.mxu0 %v216
    %3191 = vmatprep.subr.mxu0 %v221
    %3192 = vmatpush1.msra.mxu0 %v220
    %3193 = vmatprep.subr.mxu0 %v225
    %3194 = vmatpush1.msra.mxu0 %v224
    %3195 = vmatprep.subr.mxu0 %v229
    %3196 = vmatpush1.msra.mxu0 %v228
    %3197 = vmatprep.subr.mxu0 %v233
    %3198 = vmatpush1.msra.mxu0 %v232
    %3199 = vmatprep.subr.mxu0 %v237
    %3200 = vmatpush1.msra.mxu0 %v236
    %3201 = vmatprep.subr.mxu0 %v241
    %3202 = vmatpush1.msra.mxu0 %v240
    %3203 = vmatprep.subr.mxu0 %v245
    %3204 = vmatpush1.msra.mxu0 %v244
    %3205 = vmatprep.subr.mxu0 %v249
    %3206 = vmatpush1.msra.mxu0 %v248
    %3207 = vmatprep.subr.mxu0 %v253
    %3208 = vmatpush1.msra.mxu0 %v252
    %3209 = vmatprep.subr.mxu0 0.0
    %3210 = vmatpush1.msra.mxu0 0.0
    %3211 = vmatprep.subr.mxu0 0.0
    %3212 = vmatpush1.msra.mxu0 0.0
    %3213 = vmatprep.subr.mxu0 0.0
    %3214 = vmatpush1.msra.mxu0 0.0
    %3215 = vmatprep.subr.mxu0 0.0
    %3216 = vmatpush1.msra.mxu0 0.0
    %3217 = vmatprep.subr.mxu0 0.0
    %3218 = vmatpush1.msra.mxu0 0.0
    %3219 = vmatprep.subr.mxu0 0.0
    %3220 = vmatpush1.msra.mxu0 0.0
    %3221 = vmatprep.subr.mxu0 0.0
    %3222 = vmatpush1.msra.mxu0 0.0
    %3223 = vmatprep.subr.mxu0 0.0
    %3224 = vmatpush1.msra.mxu0 0.0
    %3225 = vmatprep.subr.mxu0 0.0
    %3226 = vmatpush1.msra.mxu0 0.0
    %3227 = vmatprep.subr.mxu0 0.0
    %3228 = vmatpush1.msra.mxu0 0.0
    %3229 = vmatprep.subr.mxu0 0.0
    %3230 = vmatpush1.msra.mxu0 0.0
    %3231 = vmatprep.subr.mxu0 0.0
    %3232 = vmatpush1.msra.mxu0 0.0
    %3233 = vmatprep.subr.mxu0 0.0
    %3234 = vmatpush1.msra.mxu0 0.0
    %3235 = vmatprep.subr.mxu0 0.0
    %3236 = vmatpush1.msra.mxu0 0.0
    %3237 = vmatprep.subr.mxu0 0.0
    %3238 = vmatpush1.msra.mxu0 0.0
    %3239 = vmatprep.subr.mxu0 0.0
    %3240 = vmatpush1.msra.mxu0 0.0
    %3241 = vmatprep.mubr.f32.mxu0 0.0
    %3242 = vmatmul.mubr.f32.gmra.mrb[0].mxu0 %v2530
    %v3243 = vpop.f32.mrb[0].mxu0
    %v3244 = vadd.f32 %v3173, %v3243
    %v3245 = vpop.f32.mrb[0].mxu0
    %v3246 = vadd.f32 %v3175, %v3245
    %3247 = vdwg.mxu0
    %3248 = vmatprep.subr.mxu0 %v67
    %3249 = vmatpush1.msra.mxu0 %v66
    %3250 = vmatprep.subr.mxu0 %v71
    %3251 = vmatpush1.msra.mxu0 %v70
    %3252 = vmatprep.subr.mxu0 %v75
    %3253 = vmatpush1.msra.mxu0 %v74
    %3254 = vmatprep.subr.mxu0 %v79
    %3255 = vmatpush1.msra.mxu0 %v78
    %3256 = vmatprep.subr.mxu0 %v83
    %3257 = vmatpush1.msra.mxu0 %v82
    %3258 = vmatprep.subr.mxu0 %v87
    %3259 = vmatpush1.msra.mxu0 %v86
    %3260 = vmatprep.subr.mxu0 %v91
    %3261 = vmatpush1.msra.mxu0 %v90
    %3262 = vmatprep.subr.mxu0 %v95
    %3263 = vmatpush1.msra.mxu0 %v94
    %3264 = vmatprep.subr.mxu0 %v99
    %3265 = vmatpush1.msra.mxu0 %v98
    %3266 = vmatprep.subr.mxu0 %v103
    %3267 = vmatpush1.msra.mxu0 %v102
    %3268 = vmatprep.subr.mxu0 %v107
    %3269 = vmatpush1.msra.mxu0 %v106
    %3270 = vmatprep.subr.mxu0 %v111
    %3271 = vmatpush1.msra.mxu0 %v110
    %3272 = vmatprep.subr.mxu0 %v115
    %3273 = vmatpush1.msra.mxu0 %v114
    %3274 = vmatprep.subr.mxu0 %v119
    %3275 = vmatpush1.msra.mxu0 %v118
    %3276 = vmatprep.subr.mxu0 %v123
    %3277 = vmatpush1.msra.mxu0 %v122
    %3278 = vmatprep.subr.mxu0 %v127
    %3279 = vmatpush1.msra.mxu0 %v126
    %3280 = vmatprep.subr.mxu0 %v131
    %3281 = vmatpush1.msra.mxu0 %v130
    %3282 = vmatprep.subr.mxu0 %v135
    %3283 = vmatpush1.msra.mxu0 %v134
    %3284 = vmatprep.subr.mxu0 %v139
    %3285 = vmatpush1.msra.mxu0 %v138
    %3286 = vmatprep.subr.mxu0 %v143
    %3287 = vmatpush1.msra.mxu0 %v142
    %3288 = vmatprep.subr.mxu0 %v147
    %3289 = vmatpush1.msra.mxu0 %v146
    %3290 = vmatprep.subr.mxu0 %v151
    %3291 = vmatpush1.msra.mxu0 %v150
    %3292 = vmatprep.subr.mxu0 %v155
    %3293 = vmatpush1.msra.mxu0 %v154
    %3294 = vmatprep.subr.mxu0 %v159
    %3295 = vmatpush1.msra.mxu0 %v158
    %3296 = vmatprep.subr.mxu0 %v163
    %3297 = vmatpush1.msra.mxu0 %v162
    %3298 = vmatprep.subr.mxu0 %v167
    %3299 = vmatpush1.msra.mxu0 %v166
    %3300 = vmatprep.subr.mxu0 %v171
    %3301 = vmatpush1.msra.mxu0 %v170
    %3302 = vmatprep.subr.mxu0 %v175
    %3303 = vmatpush1.msra.mxu0 %v174
    %3304 = vmatprep.subr.mxu0 %v179
    %3305 = vmatpush1.msra.mxu0 %v178
    %3306 = vmatprep.subr.mxu0 %v183
    %3307 = vmatpush1.msra.mxu0 %v182
    %3308 = vmatprep.subr.mxu0 %v187
    %3309 = vmatpush1.msra.mxu0 %v186
    %3310 = vmatprep.subr.mxu0 %v191
    %3311 = vmatpush1.msra.mxu0 %v190
    %3312 = vmatprep.mubr.f32.mxu0 %v2529
    %3313 = vmatmul.mubr.f32.gmra.mrb[0].mxu0 %v2528
    %v3314 = vpop.f32.mrb[0].mxu0
    %v3315 = vadd.f32 %v3099, %v3314
    %v3316 = vpop.f32.mrb[0].mxu0
    %v3317 = vadd.f32 %v3101, %v3316
    %3318 = vdwg.mxu0
    %3319 = vmatprep.subr.mxu0 %v195
    %3320 = vmatpush1.msra.mxu0 %v194
    %3321 = vmatprep.subr.mxu0 %v199
    %3322 = vmatpush1.msra.mxu0 %v198
    %3323 = vmatprep.subr.mxu0 %v203
    %3324 = vmatpush1.msra.mxu0 %v202
    %3325 = vmatprep.subr.mxu0 %v207
    %3326 = vmatpush1.msra.mxu0 %v206
    %3327 = vmatprep.subr.mxu0 %v211
    %3328 = vmatpush1.msra.mxu0 %v210
    %3329 = vmatprep.subr.mxu0 %v215
    %3330 = vmatpush1.msra.mxu0 %v214
    %3331 = vmatprep.subr.mxu0 %v219
    %3332 = vmatpush1.msra.mxu0 %v218
    %3333 = vmatprep.subr.mxu0 %v223
    %3334 = vmatpush1.msra.mxu0 %v222
    %3335 = vmatprep.subr.mxu0 %v227
    %3336 = vmatpush1.msra.mxu0 %v226
    %3337 = vmatprep.subr.mxu0 %v231
    %3338 = vmatpush1.msra.mxu0 %v230
    %3339 = vmatprep.subr.mxu0 %v235
    %3340 = vmatpush1.msra.mxu0 %v234
    %3341 = vmatprep.subr.mxu0 %v239
    %3342 = vmatpush1.msra.mxu0 %v238
    %3343 = vmatprep.subr.mxu0 %v243
    %3344 = vmatpush1.msra.mxu0 %v242
    %3345 = vmatprep.subr.mxu0 %v247
    %3346 = vmatpush1.msra.mxu0 %v246
    %3347 = vmatprep.subr.mxu0 %v251
    %3348 = vmatpush1.msra.mxu0 %v250
    %3349 = vmatprep.subr.mxu0 %v255
    %3350 = vmatpush1.msra.mxu0 %v254
    %3351 = vmatprep.subr.mxu0 0.0
    %3352 = vmatpush1.msra.mxu0 0.0
    %3353 = vmatprep.subr.mxu0 0.0
    %3354 = vmatpush1.msra.mxu0 0.0
    %3355 = vmatprep.subr.mxu0 0.0
    %3356 = vmatpush1.msra.mxu0 0.0
    %3357 = vmatprep.subr.mxu0 0.0
    %3358 = vmatpush1.msra.mxu0 0.0
    %3359 = vmatprep.subr.mxu0 0.0
    %3360 = vmatpush1.msra.mxu0 0.0
    %3361 = vmatprep.subr.mxu0 0.0
    %3362 = vmatpush1.msra.mxu0 0.0
    %3363 = vmatprep.subr.mxu0 0.0
    %3364 = vmatpush1.msra.mxu0 0.0
    %3365 = vmatprep.subr.mxu0 0.0
    %3366 = vmatpush1.msra.mxu0 0.0
    %3367 = vmatprep.subr.mxu0 0.0
    %3368 = vmatpush1.msra.mxu0 0.0
    %3369 = vmatprep.subr.mxu0 0.0
    %3370 = vmatpush1.msra.mxu0 0.0
    %3371 = vmatprep.subr.mxu0 0.0
    %3372 = vmatpush1.msra.mxu0 0.0
    %3373 = vmatprep.subr.mxu0 0.0
    %3374 = vmatpush1.msra.mxu0 0.0
    %3375 = vmatprep.subr.mxu0 0.0
    %3376 = vmatpush1.msra.mxu0 0.0
    %3377 = vmatprep.subr.mxu0 0.0
    %3378 = vmatpush1.msra.mxu0 0.0
    %3379 = vmatprep.subr.mxu0 0.0
    %3380 = vmatpush1.msra.mxu0 0.0
    %3381 = vmatprep.subr.mxu0 0.0
    %3382 = vmatpush1.msra.mxu0 0.0
    %3383 = vmatprep.mubr.f32.mxu0 0.0
    %3384 = vmatmul.mubr.f32.gmra.mrb[0].mxu0 %v2530
    %v3385 = vpop.f32.mrb[0].mxu0
    %v3386 = vadd.f32 %v3315, %v3385
    %v3387 = vpop.f32.mrb[0].mxu0
    %v3388 = vadd.f32 %v3317, %v3387
    %3389 = vdwg.mxu0
    %v3390 = vtanh.pop %v3244
    %v3391 = vtanh.pop %v3246
    %v3392 = vtanh.pop %v3386
    %v3393 = vtanh.pop %v3388
    %3394 = vmatprep.subr.mxu0 %v257
    %3395 = vmatpush1.msra.mxu0 %v256
    %3396 = vmatprep.subr.mxu0 %v261
    %3397 = vmatpush1.msra.mxu0 %v260
    %3398 = vmatprep.subr.mxu0 %v265
    %3399 = vmatpush1.msra.mxu0 %v264
    %3400 = vmatprep.subr.mxu0 %v269
    %3401 = vmatpush1.msra.mxu0 %v268
    %3402 = vmatprep.subr.mxu0 %v273
    %3403 = vmatpush1.msra.mxu0 %v272
    %3404 = vmatprep.subr.mxu0 %v277
    %3405 = vmatpush1.msra.mxu0 %v276
    %3406 = vmatprep.subr.mxu0 %v281
    %3407 = vmatpush1.msra.mxu0 %v280
    %3408 = vmatprep.subr.mxu0 %v285
    %3409 = vmatpush1.msra.mxu0 %v284
    %3410 = vmatprep.subr.mxu0 %v289
    %3411 = vmatpush1.msra.mxu0 %v288
    %3412 = vmatprep.subr.mxu0 %v293
    %3413 = vmatpush1.msra.mxu0 %v292
    %3414 = vmatprep.subr.mxu0 %v297
    %3415 = vmatpush1.msra.mxu0 %v296
    %3416 = vmatprep.subr.mxu0 %v301
    %3417 = vmatpush1.msra.mxu0 %v300
    %3418 = vmatprep.subr.mxu0 %v305
    %3419 = vmatpush1.msra.mxu0 %v304
    %3420 = vmatprep.subr.mxu0 %v309
    %3421 = vmatpush1.msra.mxu0 %v308
    %3422 = vmatprep.subr.mxu0 %v313
    %3423 = vmatpush1.msra.mxu0 %v312
    %3424 = vmatprep.subr.mxu0 %v317
    %3425 = vmatpush1.msra.mxu0 %v316
    %3426 = vmatprep.subr.mxu0 %v321
    %3427 = vmatpush1.msra.mxu0 %v320
    %3428 = vmatprep.subr.mxu0 %v325
    %3429 = vmatpush1.msra.mxu0 %v324
    %3430 = vmatprep.subr.mxu0 %v329
    %3431 = vmatpush1.msra.mxu0 %v328
    %3432 = vmatprep.subr.mxu0 %v333
    %3433 = vmatpush1.msra.mxu0 %v332
    %3434 = vmatprep.subr.mxu0 %v337
    %3435 = vmatpush1.msra.mxu0 %v336
    %3436 = vmatprep.subr.mxu0 %v341
    %3437 = vmatpush1.msra.mxu0 %v340
    %3438 = vmatprep.subr.mxu0 %v345
    %3439 = vmatpush1.msra.mxu0 %v344
    %3440 = vmatprep.subr.mxu0 %v349
    %3441 = vmatpush1.msra.mxu0 %v348
    %3442 = vmatprep.subr.mxu0 %v353
    %3443 = vmatpush1.msra.mxu0 %v352
    %3444 = vmatprep.subr.mxu0 %v357
    %3445 = vmatpush1.msra.mxu0 %v356
    %3446 = vmatprep.subr.mxu0 %v361
    %3447 = vmatpush1.msra.mxu0 %v360
    %3448 = vmatprep.subr.mxu0 %v365
    %3449 = vmatpush1.msra.mxu0 %v364
    %3450 = vmatprep.subr.mxu0 %v369
    %3451 = vmatpush1.msra.mxu0 %v368
    %3452 = vmatprep.subr.mxu0 %v373
    %3453 = vmatpush1.msra.mxu0 %v372
    %3454 = vmatprep.subr.mxu0 %v377
    %3455 = vmatpush1.msra.mxu0 %v376
    %3456 = vmatprep.subr.mxu0 %v381
    %3457 = vmatpush1.msra.mxu0 %v380
    %3458 = vmatprep.mubr.f32.mxu0 %v3391
    %3459 = vmatmul.mubr.f32.gmra.mrb[0].mxu0 %v3390
    %v3460 = vpop.f32.mrb[0].mxu0
    %v3461 = vadd.f32 0.0, %v3460
    %v3462 = vpop.f32.mrb[0].mxu0
    %v3463 = vadd.f32 0.0, %v3462
    %3464 = vdwg.mxu0
    %3465 = vmatprep.subr.mxu0 %v385
    %3466 = vmatpush1.msra.mxu0 %v384
    %3467 = vmatprep.subr.mxu0 %v389
    %3468 = vmatpush1.msra.mxu0 %v388
    %3469 = vmatprep.subr.mxu0 %v393
    %3470 = vmatpush1.msra.mxu0 %v392
    %3471 = vmatprep.subr.mxu0 %v397
    %3472 = vmatpush1.msra.mxu0 %v396
    %3473 = vmatprep.subr.mxu0 %v401
    %3474 = vmatpush1.msra.mxu0 %v400
    %3475 = vmatprep.subr.mxu0 %v405
    %3476 = vmatpush1.msra.mxu0 %v404
    %3477 = vmatprep.subr.mxu0 %v409
    %3478 = vmatpush1.msra.mxu0 %v408
    %3479 = vmatprep.subr.mxu0 %v413
    %3480 = vmatpush1.msra.mxu0 %v412
    %3481 = vmatprep.subr.mxu0 %v417
    %3482 = vmatpush1.msra.mxu0 %v416
    %3483 = vmatprep.subr.mxu0 %v421
    %3484 = vmatpush1.msra.mxu0 %v420
    %3485 = vmatprep.subr.mxu0 %v425
    %3486 = vmatpush1.msra.mxu0 %v424
    %3487 = vmatprep.subr.mxu0 %v429
    %3488 = vmatpush1.msra.mxu0 %v428
    %3489 = vmatprep.subr.mxu0 %v433
    %3490 = vmatpush1.msra.mxu0 %v432
    %3491 = vmatprep.subr.mxu0 %v437
    %3492 = vmatpush1.msra.mxu0 %v436
    %3493 = vmatprep.subr.mxu0 %v441
    %3494 = vmatpush1.msra.mxu0 %v440
    %3495 = vmatprep.subr.mxu0 %v445
    %3496 = vmatpush1.msra.mxu0 %v444
    %3497 = vmatprep.subr.mxu0 %v449
    %3498 = vmatpush1.msra.mxu0 %v448
    %3499 = vmatprep.subr.mxu0 %v453
    %3500 = vmatpush1.msra.mxu0 %v452
    %3501 = vmatprep.subr.mxu0 %v457
    %3502 = vmatpush1.msra.mxu0 %v456
    %3503 = vmatprep.subr.mxu0 %v461
    %3504 = vmatpush1.msra.mxu0 %v460
    %3505 = vmatprep.subr.mxu0 %v465
    %3506 = vmatpush1.msra.mxu0 %v464
    %3507 = vmatprep.subr.mxu0 %v469
    %3508 = vmatpush1.msra.mxu0 %v468
    %3509 = vmatprep.subr.mxu0 %v473
    %3510 = vmatpush1.msra.mxu0 %v472
    %3511 = vmatprep.subr.mxu0 %v477
    %3512 = vmatpush1.msra.mxu0 %v476
    %3513 = vmatprep.subr.mxu0 %v481
    %3514 = vmatpush1.msra.mxu0 %v480
    %3515 = vmatprep.subr.mxu0 %v485
    %3516 = vmatpush1.msra.mxu0 %v484
    %3517 = vmatprep.subr.mxu0 %v489
    %3518 = vmatpush1.msra.mxu0 %v488
    %3519 = vmatprep.subr.mxu0 %v493
    %3520 = vmatpush1.msra.mxu0 %v492
    %3521 = vmatprep.subr.mxu0 %v497
    %3522 = vmatpush1.msra.mxu0 %v496
    %3523 = vmatprep.subr.mxu0 %v501
    %3524 = vmatpush1.msra.mxu0 %v500
    %3525 = vmatprep.subr.mxu0 %v505
    %3526 = vmatpush1.msra.mxu0 %v504
    %3527 = vmatprep.subr.mxu0 %v509
    %3528 = vmatpush1.msra.mxu0 %v508
    %3529 = vmatprep.mubr.f32.mxu0 %v3393
    %3530 = vmatmul.mubr.f32.gmra.mrb[0].mxu0 %v3392
    %v3531 = vpop.f32.mrb[0].mxu0
    %v3532 = vadd.f32 %v3461, %v3531
    %v3533 = vpop.f32.mrb[0].mxu0
    %v3534 = vadd.f32 %v3463, %v3533
    %3535 = vdwg.mxu0
    %3536 = vmatprep.subr.mxu0 %v259
    %3537 = vmatpush1.msra.mxu0 %v258
    %3538 = vmatprep.subr.mxu0 %v263
    %3539 = vmatpush1.msra.mxu0 %v262
    %3540 = vmatprep.subr.mxu0 %v267
    %3541 = vmatpush1.msra.mxu0 %v266
    %3542 = vmatprep.subr.mxu0 %v271
    %3543 = vmatpush1.msra.mxu0 %v270
    %3544 = vmatprep.subr.mxu0 %v275
    %3545 = vmatpush1.msra.mxu0 %v274
    %3546 = vmatprep.subr.mxu0 %v279
    %3547 = vmatpush1.msra.mxu0 %v278
    %3548 = vmatprep.subr.mxu0 %v283
    %3549 = vmatpush1.msra.mxu0 %v282
    %3550 = vmatprep.subr.mxu0 %v287
    %3551 = vmatpush1.msra.mxu0 %v286
    %3552 = vmatprep.subr.mxu0 %v291
    %3553 = vmatpush1.msra.mxu0 %v290
    %3554 = vmatprep.subr.mxu0 %v295
    %3555 = vmatpush1.msra.mxu0 %v294
    %3556 = vmatprep.subr.mxu0 %v299
    %3557 = vmatpush1.msra.mxu0 %v298
    %3558 = vmatprep.subr.mxu0 %v303
    %3559 = vmatpush1.msra.mxu0 %v302
    %3560 = vmatprep.subr.mxu0 %v307
    %3561 = vmatpush1.msra.mxu0 %v306
    %3562 = vmatprep.subr.mxu0 %v311
    %3563 = vmatpush1.msra.mxu0 %v310
    %3564 = vmatprep.subr.mxu0 %v315
    %3565 = vmatpush1.msra.mxu0 %v314
    %3566 = vmatprep.subr.mxu0 %v319
    %3567 = vmatpush1.msra.mxu0 %v318
    %3568 = vmatprep.subr.mxu0 %v323
    %3569 = vmatpush1.msra.mxu0 %v322
    %3570 = vmatprep.subr.mxu0 %v327
    %3571 = vmatpush1.msra.mxu0 %v326
    %3572 = vmatprep.subr.mxu0 %v331
    %3573 = vmatpush1.msra.mxu0 %v330
    %3574 = vmatprep.subr.mxu0 %v335
    %3575 = vmatpush1.msra.mxu0 %v334
    %3576 = vmatprep.subr.mxu0 %v339
    %3577 = vmatpush1.msra.mxu0 %v338
    %3578 = vmatprep.subr.mxu0 %v343
    %3579 = vmatpush1.msra.mxu0 %v342
    %3580 = vmatprep.subr.mxu0 %v347
    %3581 = vmatpush1.msra.mxu0 %v346
    %3582 = vmatprep.subr.mxu0 %v351
    %3583 = vmatpush1.msra.mxu0 %v350
    %3584 = vmatprep.subr.mxu0 %v355
    %3585 = vmatpush1.msra.mxu0 %v354
    %3586 = vmatprep.subr.mxu0 %v359
    %3587 = vmatpush1.msra.mxu0 %v358
    %3588 = vmatprep.subr.mxu0 %v363
    %3589 = vmatpush1.msra.mxu0 %v362
    %3590 = vmatprep.subr.mxu0 %v367
    %3591 = vmatpush1.msra.mxu0 %v366
    %3592 = vmatprep.subr.mxu0 %v371
    %3593 = vmatpush1.msra.mxu0 %v370
    %3594 = vmatprep.subr.mxu0 %v375
    %3595 = vmatpush1.msra.mxu0 %v374
    %3596 = vmatprep.subr.mxu0 %v379
    %3597 = vmatpush1.msra.mxu0 %v378
    %3598 = vmatprep.subr.mxu0 %v383
    %3599 = vmatpush1.msra.mxu0 %v382
    %3600 = vmatprep.mubr.f32.mxu0 %v3391
    %3601 = vmatmul.mubr.f32.gmra.mrb[0].mxu0 %v3390
    %v3602 = vpop.f32.mrb[0].mxu0
    %v3603 = vadd.f32 0.0, %v3602
    %v3604 = vpop.f32.mrb[0].mxu0
    %v3605 = vadd.f32 0.0, %v3604
    %3606 = vdwg.mxu0
    %3607 = vmatprep.subr.mxu0 %v387
    %3608 = vmatpush1.msra.mxu0 %v386
    %3609 = vmatprep.subr.mxu0 %v391
    %3610 = vmatpush1.msra.mxu0 %v390
    %3611 = vmatprep.subr.mxu0 %v395
    %3612 = vmatpush1.msra.mxu0 %v394
    %3613 = vmatprep.subr.mxu0 %v399
    %3614 = vmatpush1.msra.mxu0 %v398
    %3615 = vmatprep.subr.mxu0 %v403
    %3616 = vmatpush1.msra.mxu0 %v402
    %3617 = vmatprep.subr.mxu0 %v407
    %3618 = vmatpush1.msra.mxu0 %v406
    %3619 = vmatprep.subr.mxu0 %v411
    %3620 = vmatpush1.msra.mxu0 %v410
    %3621 = vmatprep.subr.mxu0 %v415
    %3622 = vmatpush1.msra.mxu0 %v414
    %3623 = vmatprep.subr.mxu0 %v419
    %3624 = vmatpush1.msra.mxu0 %v418
    %3625 = vmatprep.subr.mxu0 %v423
    %3626 = vmatpush1.msra.mxu0 %v422
    %3627 = vmatprep.subr.mxu0 %v427
    %3628 = vmatpush1.msra.mxu0 %v426
    %3629 = vmatprep.subr.mxu0 %v431
    %3630 = vmatpush1.msra.mxu0 %v430
    %3631 = vmatprep.subr.mxu0 %v435
    %3632 = vmatpush1.msra.mxu0 %v434
    %3633 = vmatprep.subr.mxu0 %v439
    %3634 = vmatpush1.msra.mxu0 %v438
    %3635 = vmatprep.subr.mxu0 %v443
    %3636 = vmatpush1.msra.mxu0 %v442
    %3637 = vmatprep.subr.mxu0 %v447
    %3638 = vmatpush1.msra.mxu0 %v446
    %3639 = vmatprep.subr.mxu0 %v451
    %3640 = vmatpush1.msra.mxu0 %v450
    %3641 = vmatprep.subr.mxu0 %v455
    %3642 = vmatpush1.msra.mxu0 %v454
    %3643 = vmatprep.subr.mxu0 %v459
    %3644 = vmatpush1.msra.mxu0 %v458
    %3645 = vmatprep.subr.mxu0 %v463
    %3646 = vmatpush1.msra.mxu0 %v462
    %3647 = vmatprep.subr.mxu0 %v467
    %3648 = vmatpush1.msra.mxu0 %v466
    %3649 = vmatprep.subr.mxu0 %v471
    %3650 = vmatpush1.msra.mxu0 %v470
    %3651 = vmatprep.subr.mxu0 %v475
    %3652 = vmatpush1.msra.mxu0 %v474
    %3653 = vmatprep.subr.mxu0 %v479
    %3654 = vmatpush1.msra.mxu0 %v478
    %3655 = vmatprep.subr.mxu0 %v483
    %3656 = vmatpush1.msra.mxu0 %v482
    %3657 = vmatprep.subr.mxu0 %v487
    %3658 = vmatpush1.msra.mxu0 %v486
    %3659 = vmatprep.subr.mxu0 %v491
    %3660 = vmatpush1.msra.mxu0 %v490
    %3661 = vmatprep.subr.mxu0 %v495
    %3662 = vmatpush1.msra.mxu0 %v494
    %3663 = vmatprep.subr.mxu0 %v499
    %3664 = vmatpush1.msra.mxu0 %v498
    %3665 = vmatprep.subr.mxu0 %v503
    %3666 = vmatpush1.msra.mxu0 %v502
    %3667 = vmatprep.subr.mxu0 %v507
    %3668 = vmatpush1.msra.mxu0 %v506
    %3669 = vmatprep.subr.mxu0 %v511
    %3670 = vmatpush1.msra.mxu0 %v510
    %3671 = vmatprep.mubr.f32.mxu0 %v3393
    %3672 = vmatmul.mubr.f32.gmra.mrb[0].mxu0 %v3392
    %v3673 = vpop.f32.mrb[0].mxu0
    %v3674 = vadd.f32 %v3603, %v3673
    %v3675 = vpop.f32.mrb[0].mxu0
    %v3676 = vadd.f32 %v3605, %v3675
    %3677 = vdwg.mxu0
    %v3678 = vld [vmem:[%s0 + $0x90] sm:$0xff]
    %v3679 = vld [vmem:[%s0 + $0x98] sm:$0xff]
    %v3680 = vld [vmem:[%s0 + $0xa0] sm:$0xff]
    %3681 = vmatprep.subr.mxu0 %v65
    %3682 = vmatpush1.msra.mxu0 %v64
    %3683 = vmatprep.subr.mxu0 %v69
    %3684 = vmatpush1.msra.mxu0 %v68
    %3685 = vmatprep.subr.mxu0 %v73
    %3686 = vmatpush1.msra.mxu0 %v72
    %3687 = vmatprep.subr.mxu0 %v77
    %3688 = vmatpush1.msra.mxu0 %v76
    %3689 = vmatprep.subr.mxu0 %v81
    %3690 = vmatpush1.msra.mxu0 %v80
    %3691 = vmatprep.subr.mxu0 %v85
    %3692 = vmatpush1.msra.mxu0 %v84
    %3693 = vmatprep.subr.mxu0 %v89
    %3694 = vmatpush1.msra.mxu0 %v88
    %3695 = vmatprep.subr.mxu0 %v93
    %3696 = vmatpush1.msra.mxu0 %v92
    %3697 = vmatprep.subr.mxu0 %v97
    %3698 = vmatpush1.msra.mxu0 %v96
    %3699 = vmatprep.subr.mxu0 %v101
    %3700 = vmatpush1.msra.mxu0 %v100
    %3701 = vmatprep.subr.mxu0 %v105
    %3702 = vmatpush1.msra.mxu0 %v104
    %3703 = vmatprep.subr.mxu0 %v109
    %3704 = vmatpush1.msra.mxu0 %v108
    %3705 = vmatprep.subr.mxu0 %v113
    %3706 = vmatpush1.msra.mxu0 %v112
    %3707 = vmatprep.subr.mxu0 %v117
    %3708 = vmatpush1.msra.mxu0 %v116
    %3709 = vmatprep.subr.mxu0 %v121
    %3710 = vmatpush1.msra.mxu0 %v120
    %3711 = vmatprep.subr.mxu0 %v125
    %3712 = vmatpush1.msra.mxu0 %v124
    %3713 = vmatprep.subr.mxu0 %v129
    %3714 = vmatpush1.msra.mxu0 %v128
    %3715 = vmatprep.subr.mxu0 %v133
    %3716 = vmatpush1.msra.mxu0 %v132
    %3717 = vmatprep.subr.mxu0 %v137
    %3718 = vmatpush1.msra.mxu0 %v136
    %3719 = vmatprep.subr.mxu0 %v141
    %3720 = vmatpush1.msra.mxu0 %v140
    %3721 = vmatprep.subr.mxu0 %v145
    %3722 = vmatpush1.msra.mxu0 %v144
    %3723 = vmatprep.subr.mxu0 %v149
    %3724 = vmatpush1.msra.mxu0 %v148
    %3725 = vmatprep.subr.mxu0 %v153
    %3726 = vmatpush1.msra.mxu0 %v152
    %3727 = vmatprep.subr.mxu0 %v157
    %3728 = vmatpush1.msra.mxu0 %v156
    %3729 = vmatprep.subr.mxu0 %v161
    %3730 = vmatpush1.msra.mxu0 %v160
    %3731 = vmatprep.subr.mxu0 %v165
    %3732 = vmatpush1.msra.mxu0 %v164
    %3733 = vmatprep.subr.mxu0 %v169
    %3734 = vmatpush1.msra.mxu0 %v168
    %3735 = vmatprep.subr.mxu0 %v173
    %3736 = vmatpush1.msra.mxu0 %v172
    %3737 = vmatprep.subr.mxu0 %v177
    %3738 = vmatpush1.msra.mxu0 %v176
    %3739 = vmatprep.subr.mxu0 %v181
    %3740 = vmatpush1.msra.mxu0 %v180
    %3741 = vmatprep.subr.mxu0 %v185
    %3742 = vmatpush1.msra.mxu0 %v184
    %3743 = vmatprep.subr.mxu0 %v189
    %3744 = vmatpush1.msra.mxu0 %v188
    %3745 = vmatprep.mubr.f32.mxu0 %v3104
    %3746 = vmatmul.mubr.f32.gmra.mrb[0].mxu0 %v3103
    %v3747 = vpop.f32.mrb[0].mxu0
    %v3748 = vadd.f32 %v3532, %v3747
    %v3749 = vpop.f32.mrb[0].mxu0
    %v3750 = vadd.f32 %v3534, %v3749
    %3751 = vdwg.mxu0
    %3752 = vmatprep.subr.mxu0 %v193
    %3753 = vmatpush1.msra.mxu0 %v192
    %3754 = vmatprep.subr.mxu0 %v197
    %3755 = vmatpush1.msra.mxu0 %v196
    %3756 = vmatprep.subr.mxu0 %v201
    %3757 = vmatpush1.msra.mxu0 %v200
    %3758 = vmatprep.subr.mxu0 %v205
    %3759 = vmatpush1.msra.mxu0 %v204
    %3760 = vmatprep.subr.mxu0 %v209
    %3761 = vmatpush1.msra.mxu0 %v208
    %3762 = vmatprep.subr.mxu0 %v213
    %3763 = vmatpush1.msra.mxu0 %v212
    %3764 = vmatprep.subr.mxu0 %v217
    %3765 = vmatpush1.msra.mxu0 %v216
    %3766 = vmatprep.subr.mxu0 %v221
    %3767 = vmatpush1.msra.mxu0 %v220
    %3768 = vmatprep.subr.mxu0 %v225
    %3769 = vmatpush1.msra.mxu0 %v224
    %3770 = vmatprep.subr.mxu0 %v229
    %3771 = vmatpush1.msra.mxu0 %v228
    %3772 = vmatprep.subr.mxu0 %v233
    %3773 = vmatpush1.msra.mxu0 %v232
    %3774 = vmatprep.subr.mxu0 %v237
    %3775 = vmatpush1.msra.mxu0 %v236
    %3776 = vmatprep.subr.mxu0 %v241
    %3777 = vmatpush1.msra.mxu0 %v240
    %3778 = vmatprep.subr.mxu0 %v245
    %3779 = vmatpush1.msra.mxu0 %v244
    %3780 = vmatprep.subr.mxu0 %v249
    %3781 = vmatpush1.msra.mxu0 %v248
    %3782 = vmatprep.subr.mxu0 %v253
    %3783 = vmatpush1.msra.mxu0 %v252
    %3784 = vmatprep.subr.mxu0 0.0
    %3785 = vmatpush1.msra.mxu0 0.0
    %3786 = vmatprep.subr.mxu0 0.0
    %3787 = vmatpush1.msra.mxu0 0.0
    %3788 = vmatprep.subr.mxu0 0.0
    %3789 = vmatpush1.msra.mxu0 0.0
    %3790 = vmatprep.subr.mxu0 0.0
    %3791 = vmatpush1.msra.mxu0 0.0
    %3792 = vmatprep.subr.mxu0 0.0
    %3793 = vmatpush1.msra.mxu0 0.0
    %3794 = vmatprep.subr.mxu0 0.0
    %3795 = vmatpush1.msra.mxu0 0.0
    %3796 = vmatprep.subr.mxu0 0.0
    %3797 = vmatpush1.msra.mxu0 0.0
    %3798 = vmatprep.subr.mxu0 0.0
    %3799 = vmatpush1.msra.mxu0 0.0
    %3800 = vmatprep.subr.mxu0 0.0
    %3801 = vmatpush1.msra.mxu0 0.0
    %3802 = vmatprep.subr.mxu0 0.0
    %3803 = vmatpush1.msra.mxu0 0.0
    %3804 = vmatprep.subr.mxu0 0.0
    %3805 = vmatpush1.msra.mxu0 0.0
    %3806 = vmatprep.subr.mxu0 0.0
    %3807 = vmatpush1.msra.mxu0 0.0
    %3808 = vmatprep.subr.mxu0 0.0
    %3809 = vmatpush1.msra.mxu0 0.0
    %3810 = vmatprep.subr.mxu0 0.0
    %3811 = vmatpush1.msra.mxu0 0.0
    %3812 = vmatprep.subr.mxu0 0.0
    %3813 = vmatpush1.msra.mxu0 0.0
    %3814 = vmatprep.subr.mxu0 0.0
    %3815 = vmatpush1.msra.mxu0 0.0
    %3816 = vmatprep.mubr.f32.mxu0 0.0
    %3817 = vmatmul.mubr.f32.gmra.mrb[0].mxu0 %v3105
    %v3818 = vpop.f32.mrb[0].mxu0
    %v3819 = vadd.f32 %v3748, %v3818
    %v3820 = vpop.f32.mrb[0].mxu0
    %v3821 = vadd.f32 %v3750, %v3820
    %3822 = vdwg.mxu0
    %3823 = vmatprep.subr.mxu0 %v67
    %3824 = vmatpush1.msra.mxu0 %v66
    %3825 = vmatprep.subr.mxu0 %v71
    %3826 = vmatpush1.msra.mxu0 %v70
    %3827 = vmatprep.subr.mxu0 %v75
    %3828 = vmatpush1.msra.mxu0 %v74
    %3829 = vmatprep.subr.mxu0 %v79
    %3830 = vmatpush1.msra.mxu0 %v78
    %3831 = vmatprep.subr.mxu0 %v83
    %3832 = vmatpush1.msra.mxu0 %v82
    %3833 = vmatprep.subr.mxu0 %v87
    %3834 = vmatpush1.msra.mxu0 %v86
    %3835 = vmatprep.subr.mxu0 %v91
    %3836 = vmatpush1.msra.mxu0 %v90
    %3837 = vmatprep.subr.mxu0 %v95
    %3838 = vmatpush1.msra.mxu0 %v94
    %3839 = vmatprep.subr.mxu0 %v99
    %3840 = vmatpush1.msra.mxu0 %v98
    %3841 = vmatprep.subr.mxu0 %v103
    %3842 = vmatpush1.msra.mxu0 %v102
    %3843 = vmatprep.subr.mxu0 %v107
    %3844 = vmatpush1.msra.mxu0 %v106
    %3845 = vmatprep.subr.mxu0 %v111
    %3846 = vmatpush1.msra.mxu0 %v110
    %3847 = vmatprep.subr.mxu0 %v115
    %3848 = vmatpush1.msra.mxu0 %v114
    %3849 = vmatprep.subr.mxu0 %v119
    %3850 = vmatpush1.msra.mxu0 %v118
    %3851 = vmatprep.subr.mxu0 %v123
    %3852 = vmatpush1.msra.mxu0 %v122
    %3853 = vmatprep.subr.mxu0 %v127
    %3854 = vmatpush1.msra.mxu0 %v126
    %3855 = vmatprep.subr.mxu0 %v131
    %3856 = vmatpush1.msra.mxu0 %v130
    %3857 = vmatprep.subr.mxu0 %v135
    %3858 = vmatpush1.msra.mxu0 %v134
    %3859 = vmatprep.subr.mxu0 %v139
    %3860 = vmatpush1.msra.mxu0 %v138
    %3861 = vmatprep.subr.mxu0 %v143
    %3862 = vmatpush1.msra.mxu0 %v142
    %3863 = vmatprep.subr.mxu0 %v147
    %3864 = vmatpush1.msra.mxu0 %v146
    %3865 = vmatprep.subr.mxu0 %v151
    %3866 = vmatpush1.msra.mxu0 %v150
    %3867 = vmatprep.subr.mxu0 %v155
    %3868 = vmatpush1.msra.mxu0 %v154
    %3869 = vmatprep.subr.mxu0 %v159
    %3870 = vmatpush1.msra.mxu0 %v158
    %3871 = vmatprep.subr.mxu0 %v163
    %3872 = vmatpush1.msra.mxu0 %v162
    %3873 = vmatprep.subr.mxu0 %v167
    %3874 = vmatpush1.msra.mxu0 %v166
    %3875 = vmatprep.subr.mxu0 %v171
    %3876 = vmatpush1.msra.mxu0 %v170
    %3877 = vmatprep.subr.mxu0 %v175
    %3878 = vmatpush1.msra.mxu0 %v174
    %3879 = vmatprep.subr.mxu0 %v179
    %3880 = vmatpush1.msra.mxu0 %v178
    %3881 = vmatprep.subr.mxu0 %v183
    %3882 = vmatpush1.msra.mxu0 %v182
    %3883 = vmatprep.subr.mxu0 %v187
    %3884 = vmatpush1.msra.mxu0 %v186
    %3885 = vmatprep.subr.mxu0 %v191
    %3886 = vmatpush1.msra.mxu0 %v190
    %3887 = vmatprep.mubr.f32.mxu0 %v3104
    %3888 = vmatmul.mubr.f32.gmra.mrb[0].mxu0 %v3103
    %v3889 = vpop.f32.mrb[0].mxu0
    %v3890 = vadd.f32 %v3674, %v3889
    %v3891 = vpop.f32.mrb[0].mxu0
    %v3892 = vadd.f32 %v3676, %v3891
    %3893 = vdwg.mxu0
    %3894 = vmatprep.subr.mxu0 %v195
    %3895 = vmatpush1.msra.mxu0 %v194
    %3896 = vmatprep.subr.mxu0 %v199
    %3897 = vmatpush1.msra.mxu0 %v198
    %3898 = vmatprep.subr.mxu0 %v203
    %3899 = vmatpush1.msra.mxu0 %v202
    %3900 = vmatprep.subr.mxu0 %v207
    %3901 = vmatpush1.msra.mxu0 %v206
    %3902 = vmatprep.subr.mxu0 %v211
    %3903 = vmatpush1.msra.mxu0 %v210
    %3904 = vmatprep.subr.mxu0 %v215
    %3905 = vmatpush1.msra.mxu0 %v214
    %3906 = vmatprep.subr.mxu0 %v219
    %3907 = vmatpush1.msra.mxu0 %v218
    %3908 = vmatprep.subr.mxu0 %v223
    %3909 = vmatpush1.msra.mxu0 %v222
    %3910 = vmatprep.subr.mxu0 %v227
    %3911 = vmatpush1.msra.mxu0 %v226
    %3912 = vmatprep.subr.mxu0 %v231
    %3913 = vmatpush1.msra.mxu0 %v230
    %3914 = vmatprep.subr.mxu0 %v235
    %3915 = vmatpush1.msra.mxu0 %v234
    %3916 = vmatprep.subr.mxu0 %v239
    %3917 = vmatpush1.msra.mxu0 %v238
    %3918 = vmatprep.subr.mxu0 %v243
    %3919 = vmatpush1.msra.mxu0 %v242
    %3920 = vmatprep.subr.mxu0 %v247
    %3921 = vmatpush1.msra.mxu0 %v246
    %3922 = vmatprep.subr.mxu0 %v251
    %3923 = vmatpush1.msra.mxu0 %v250
    %3924 = vmatprep.subr.mxu0 %v255
    %3925 = vmatpush1.msra.mxu0 %v254
    %3926 = vmatprep.subr.mxu0 0.0
    %3927 = vmatpush1.msra.mxu0 0.0
    %3928 = vmatprep.subr.mxu0 0.0
    %3929 = vmatpush1.msra.mxu0 0.0
    %3930 = vmatprep.subr.mxu0 0.0
    %3931 = vmatpush1.msra.mxu0 0.0
    %3932 = vmatprep.subr.mxu0 0.0
    %3933 = vmatpush1.msra.mxu0 0.0
    %3934 = vmatprep.subr.mxu0 0.0
    %3935 = vmatpush1.msra.mxu0 0.0
    %3936 = vmatprep.subr.mxu0 0.0
    %3937 = vmatpush1.msra.mxu0 0.0
    %3938 = vmatprep.subr.mxu0 0.0
    %3939 = vmatpush1.msra.mxu0 0.0
    %3940 = vmatprep.subr.mxu0 0.0
    %3941 = vmatpush1.msra.mxu0 0.0
    %3942 = vmatprep.subr.mxu0 0.0
    %3943 = vmatpush1.msra.mxu0 0.0
    %3944 = vmatprep.subr.mxu0 0.0
    %3945 = vmatpush1.msra.mxu0 0.0
    %3946 = vmatprep.subr.mxu0 0.0
    %3947 = vmatpush1.msra.mxu0 0.0
    %3948 = vmatprep.subr.mxu0 0.0
    %3949 = vmatpush1.msra.mxu0 0.0
    %3950 = vmatprep.subr.mxu0 0.0
    %3951 = vmatpush1.msra.mxu0 0.0
    %3952 = vmatprep.subr.mxu0 0.0
    %3953 = vmatpush1.msra.mxu0 0.0
    %3954 = vmatprep.subr.mxu0 0.0
    %3955 = vmatpush1.msra.mxu0 0.0
    %3956 = vmatprep.subr.mxu0 0.0
    %3957 = vmatpush1.msra.mxu0 0.0
    %3958 = vmatprep.mubr.f32.mxu0 0.0
    %3959 = vmatmul.mubr.f32.gmra.mrb[0].mxu0 %v3105
    %v3960 = vpop.f32.mrb[0].mxu0
    %v3961 = vadd.f32 %v3890, %v3960
    %v3962 = vpop.f32.mrb[0].mxu0
    %v3963 = vadd.f32 %v3892, %v3962
    %3964 = vdwg.mxu0
    %v3965 = vtanh.pop %v3819
    %v3966 = vtanh.pop %v3821
    %v3967 = vtanh.pop %v3961
    %v3968 = vtanh.pop %v3963
    %3969 = vmatprep.subr.mxu0 %v257
    %3970 = vmatpush1.msra.mxu0 %v256
    %3971 = vmatprep.subr.mxu0 %v261
    %3972 = vmatpush1.msra.mxu0 %v260
    %3973 = vmatprep.subr.mxu0 %v265
    %3974 = vmatpush1.msra.mxu0 %v264
    %3975 = vmatprep.subr.mxu0 %v269
    %3976 = vmatpush1.msra.mxu0 %v268
    %3977 = vmatprep.subr.mxu0 %v273
    %3978 = vmatpush1.msra.mxu0 %v272
    %3979 = vmatprep.subr.mxu0 %v277
    %3980 = vmatpush1.msra.mxu0 %v276
    %3981 = vmatprep.subr.mxu0 %v281
    %3982 = vmatpush1.msra.mxu0 %v280
    %3983 = vmatprep.subr.mxu0 %v285
    %3984 = vmatpush1.msra.mxu0 %v284
    %3985 = vmatprep.subr.mxu0 %v289
    %3986 = vmatpush1.msra.mxu0 %v288
    %3987 = vmatprep.subr.mxu0 %v293
    %3988 = vmatpush1.msra.mxu0 %v292
    %3989 = vmatprep.subr.mxu0 %v297
    %3990 = vmatpush1.msra.mxu0 %v296
    %3991 = vmatprep.subr.mxu0 %v301
    %3992 = vmatpush1.msra.mxu0 %v300
    %3993 = vmatprep.subr.mxu0 %v305
    %3994 = vmatpush1.msra.mxu0 %v304
    %3995 = vmatprep.subr.mxu0 %v309
    %3996 = vmatpush1.msra.mxu0 %v308
    %3997 = vmatprep.subr.mxu0 %v313
    %3998 = vmatpush1.msra.mxu0 %v312
    %3999 = vmatprep.subr.mxu0 %v317
    %4000 = vmatpush1.msra.mxu0 %v316
    %4001 = vmatprep.subr.mxu0 %v321
    %4002 = vmatpush1.msra.mxu0 %v320
    %4003 = vmatprep.subr.mxu0 %v325
    %4004 = vmatpush1.msra.mxu0 %v324
    %4005 = vmatprep.subr.mxu0 %v329
    %4006 = vmatpush1.msra.mxu0 %v328
    %4007 = vmatprep.subr.mxu0 %v333
    %4008 = vmatpush1.msra.mxu0 %v332
    %4009 = vmatprep.subr.mxu0 %v337
    %4010 = vmatpush1.msra.mxu0 %v336
    %4011 = vmatprep.subr.mxu0 %v341
    %4012 = vmatpush1.msra.mxu0 %v340
    %4013 = vmatprep.subr.mxu0 %v345
    %4014 = vmatpush1.msra.mxu0 %v344
    %4015 = vmatprep.subr.mxu0 %v349
    %4016 = vmatpush1.msra.mxu0 %v348
    %4017 = vmatprep.subr.mxu0 %v353
    %4018 = vmatpush1.msra.mxu0 %v352
    %4019 = vmatprep.subr.mxu0 %v357
    %4020 = vmatpush1.msra.mxu0 %v356
    %4021 = vmatprep.subr.mxu0 %v361
    %4022 = vmatpush1.msra.mxu0 %v360
    %4023 = vmatprep.subr.mxu0 %v365
    %4024 = vmatpush1.msra.mxu0 %v364
    %4025 = vmatprep.subr.mxu0 %v369
    %4026 = vmatpush1.msra.mxu0 %v368
    %4027 = vmatprep.subr.mxu0 %v373
    %4028 = vmatpush1.msra.mxu0 %v372
    %4029 = vmatprep.subr.mxu0 %v377
    %4030 = vmatpush1.msra.mxu0 %v376
    %4031 = vmatprep.subr.mxu0 %v381
    %4032 = vmatpush1.msra.mxu0 %v380
    %4033 = vmatprep.mubr.f32.mxu0 %v3966
    %4034 = vmatmul.mubr.f32.gmra.mrb[0].mxu0 %v3965
    %v4035 = vpop.f32.mrb[0].mxu0
    %v4036 = vadd.f32 0.0, %v4035
    %v4037 = vpop.f32.mrb[0].mxu0
    %v4038 = vadd.f32 0.0, %v4037
    %4039 = vdwg.mxu0
    %4040 = vmatprep.subr.mxu0 %v385
    %4041 = vmatpush1.msra.mxu0 %v384
    %4042 = vmatprep.subr.mxu0 %v389
    %4043 = vmatpush1.msra.mxu0 %v388
    %4044 = vmatprep.subr.mxu0 %v393
    %4045 = vmatpush1.msra.mxu0 %v392
    %4046 = vmatprep.subr.mxu0 %v397
    %4047 = vmatpush1.msra.mxu0 %v396
    %4048 = vmatprep.subr.mxu0 %v401
    %4049 = vmatpush1.msra.mxu0 %v400
    %4050 = vmatprep.subr.mxu0 %v405
    %4051 = vmatpush1.msra.mxu0 %v404
    %4052 = vmatprep.subr.mxu0 %v409
    %4053 = vmatpush1.msra.mxu0 %v408
    %4054 = vmatprep.subr.mxu0 %v413
    %4055 = vmatpush1.msra.mxu0 %v412
    %4056 = vmatprep.subr.mxu0 %v417
    %4057 = vmatpush1.msra.mxu0 %v416
    %4058 = vmatprep.subr.mxu0 %v421
    %4059 = vmatpush1.msra.mxu0 %v420
    %4060 = vmatprep.subr.mxu0 %v425
    %4061 = vmatpush1.msra.mxu0 %v424
    %4062 = vmatprep.subr.mxu0 %v429
    %4063 = vmatpush1.msra.mxu0 %v428
    %4064 = vmatprep.subr.mxu0 %v433
    %4065 = vmatpush1.msra.mxu0 %v432
    %4066 = vmatprep.subr.mxu0 %v437
    %4067 = vmatpush1.msra.mxu0 %v436
    %4068 = vmatprep.subr.mxu0 %v441
    %4069 = vmatpush1.msra.mxu0 %v440
    %4070 = vmatprep.subr.mxu0 %v445
    %4071 = vmatpush1.msra.mxu0 %v444
    %4072 = vmatprep.subr.mxu0 %v449
    %4073 = vmatpush1.msra.mxu0 %v448
    %4074 = vmatprep.subr.mxu0 %v453
    %4075 = vmatpush1.msra.mxu0 %v452
    %4076 = vmatprep.subr.mxu0 %v457
    %4077 = vmatpush1.msra.mxu0 %v456
    %4078 = vmatprep.subr.mxu0 %v461
    %4079 = vmatpush1.msra.mxu0 %v460
    %4080 = vmatprep.subr.mxu0 %v465
    %4081 = vmatpush1.msra.mxu0 %v464
    %4082 = vmatprep.subr.mxu0 %v469
    %4083 = vmatpush1.msra.mxu0 %v468
    %4084 = vmatprep.subr.mxu0 %v473
    %4085 = vmatpush1.msra.mxu0 %v472
    %4086 = vmatprep.subr.mxu0 %v477
    %4087 = vmatpush1.msra.mxu0 %v476
    %4088 = vmatprep.subr.mxu0 %v481
    %4089 = vmatpush1.msra.mxu0 %v480
    %4090 = vmatprep.subr.mxu0 %v485
    %4091 = vmatpush1.msra.mxu0 %v484
    %4092 = vmatprep.subr.mxu0 %v489
    %4093 = vmatpush1.msra.mxu0 %v488
    %4094 = vmatprep.subr.mxu0 %v493
    %4095 = vmatpush1.msra.mxu0 %v492
    %4096 = vmatprep.subr.mxu0 %v497
    %4097 = vmatpush1.msra.mxu0 %v496
    %4098 = vmatprep.subr.mxu0 %v501
    %4099 = vmatpush1.msra.mxu0 %v500
    %4100 = vmatprep.subr.mxu0 %v505
    %4101 = vmatpush1.msra.mxu0 %v504
    %4102 = vmatprep.subr.mxu0 %v509
    %4103 = vmatpush1.msra.mxu0 %v508
    %4104 = vmatprep.mubr.f32.mxu0 %v3968
    %4105 = vmatmul.mubr.f32.gmra.mrb[0].mxu0 %v3967
    %v4106 = vpop.f32.mrb[0].mxu0
    %v4107 = vadd.f32 %v4036, %v4106
    %v4108 = vpop.f32.mrb[0].mxu0
    %v4109 = vadd.f32 %v4038, %v4108
    %4110 = vdwg.mxu0
    %4111 = vmatprep.subr.mxu0 %v259
    %4112 = vmatpush1.msra.mxu0 %v258
    %4113 = vmatprep.subr.mxu0 %v263
    %4114 = vmatpush1.msra.mxu0 %v262
    %4115 = vmatprep.subr.mxu0 %v267
    %4116 = vmatpush1.msra.mxu0 %v266
    %4117 = vmatprep.subr.mxu0 %v271
    %4118 = vmatpush1.msra.mxu0 %v270
    %4119 = vmatprep.subr.mxu0 %v275
    %4120 = vmatpush1.msra.mxu0 %v274
    %4121 = vmatprep.subr.mxu0 %v279
    %4122 = vmatpush1.msra.mxu0 %v278
    %4123 = vmatprep.subr.mxu0 %v283
    %4124 = vmatpush1.msra.mxu0 %v282
    %4125 = vmatprep.subr.mxu0 %v287
    %4126 = vmatpush1.msra.mxu0 %v286
    %4127 = vmatprep.subr.mxu0 %v291
    %4128 = vmatpush1.msra.mxu0 %v290
    %4129 = vmatprep.subr.mxu0 %v295
    %4130 = vmatpush1.msra.mxu0 %v294
    %4131 = vmatprep.subr.mxu0 %v299
    %4132 = vmatpush1.msra.mxu0 %v298
    %4133 = vmatprep.subr.mxu0 %v303
    %4134 = vmatpush1.msra.mxu0 %v302
    %4135 = vmatprep.subr.mxu0 %v307
    %4136 = vmatpush1.msra.mxu0 %v306
    %4137 = vmatprep.subr.mxu0 %v311
    %4138 = vmatpush1.msra.mxu0 %v310
    %4139 = vmatprep.subr.mxu0 %v315
    %4140 = vmatpush1.msra.mxu0 %v314
    %4141 = vmatprep.subr.mxu0 %v319
    %4142 = vmatpush1.msra.mxu0 %v318
    %4143 = vmatprep.subr.mxu0 %v323
    %4144 = vmatpush1.msra.mxu0 %v322
    %4145 = vmatprep.subr.mxu0 %v327
    %4146 = vmatpush1.msra.mxu0 %v326
    %4147 = vmatprep.subr.mxu0 %v331
    %4148 = vmatpush1.msra.mxu0 %v330
    %4149 = vmatprep.subr.mxu0 %v335
    %4150 = vmatpush1.msra.mxu0 %v334
    %4151 = vmatprep.subr.mxu0 %v339
    %4152 = vmatpush1.msra.mxu0 %v338
    %4153 = vmatprep.subr.mxu0 %v343
    %4154 = vmatpush1.msra.mxu0 %v342
    %4155 = vmatprep.subr.mxu0 %v347
    %4156 = vmatpush1.msra.mxu0 %v346
    %4157 = vmatprep.subr.mxu0 %v351
    %4158 = vmatpush1.msra.mxu0 %v350
    %4159 = vmatprep.subr.mxu0 %v355
    %4160 = vmatpush1.msra.mxu0 %v354
    %4161 = vmatprep.subr.mxu0 %v359
    %4162 = vmatpush1.msra.mxu0 %v358
    %4163 = vmatprep.subr.mxu0 %v363
    %4164 = vmatpush1.msra.mxu0 %v362
    %4165 = vmatprep.subr.mxu0 %v367
    %4166 = vmatpush1.msra.mxu0 %v366
    %4167 = vmatprep.subr.mxu0 %v371
    %4168 = vmatpush1.msra.mxu0 %v370
    %4169 = vmatprep.subr.mxu0 %v375
    %4170 = vmatpush1.msra.mxu0 %v374
    %4171 = vmatprep.subr.mxu0 %v379
    %4172 = vmatpush1.msra.mxu0 %v378
    %4173 = vmatprep.subr.mxu0 %v383
    %4174 = vmatpush1.msra.mxu0 %v382
    %4175 = vmatprep.mubr.f32.mxu0 %v3966
    %4176 = vmatmul.mubr.f32.gmra.mrb[0].mxu0 %v3965
    %v4177 = vpop.f32.mrb[0].mxu0
    %v4178 = vadd.f32 0.0, %v4177
    %v4179 = vpop.f32.mrb[0].mxu0
    %v4180 = vadd.f32 0.0, %v4179
    %4181 = vdwg.mxu0
    %4182 = vmatprep.subr.mxu0 %v387
    %4183 = vmatpush1.msra.mxu0 %v386
    %4184 = vmatprep.subr.mxu0 %v391
    %4185 = vmatpush1.msra.mxu0 %v390
    %4186 = vmatprep.subr.mxu0 %v395
    %4187 = vmatpush1.msra.mxu0 %v394
    %4188 = vmatprep.subr.mxu0 %v399
    %4189 = vmatpush1.msra.mxu0 %v398
    %4190 = vmatprep.subr.mxu0 %v403
    %4191 = vmatpush1.msra.mxu0 %v402
    %4192 = vmatprep.subr.mxu0 %v407
    %4193 = vmatpush1.msra.mxu0 %v406
    %4194 = vmatprep.subr.mxu0 %v411
    %4195 = vmatpush1.msra.mxu0 %v410
    %4196 = vmatprep.subr.mxu0 %v415
    %4197 = vmatpush1.msra.mxu0 %v414
    %4198 = vmatprep.subr.mxu0 %v419
    %4199 = vmatpush1.msra.mxu0 %v418
    %4200 = vmatprep.subr.mxu0 %v423
    %4201 = vmatpush1.msra.mxu0 %v422
    %4202 = vmatprep.subr.mxu0 %v427
    %4203 = vmatpush1.msra.mxu0 %v426
    %4204 = vmatprep.subr.mxu0 %v431
    %4205 = vmatpush1.msra.mxu0 %v430
    %4206 = vmatprep.subr.mxu0 %v435
    %4207 = vmatpush1.msra.mxu0 %v434
    %4208 = vmatprep.subr.mxu0 %v439
    %4209 = vmatpush1.msra.mxu0 %v438
    %4210 = vmatprep.subr.mxu0 %v443
    %4211 = vmatpush1.msra.mxu0 %v442
    %4212 = vmatprep.subr.mxu0 %v447
    %4213 = vmatpush1.msra.mxu0 %v446
    %4214 = vmatprep.subr.mxu0 %v451
    %4215 = vmatpush1.msra.mxu0 %v450
    %4216 = vmatprep.subr.mxu0 %v455
    %4217 = vmatpush1.msra.mxu0 %v454
    %4218 = vmatprep.subr.mxu0 %v459
    %4219 = vmatpush1.msra.mxu0 %v458
    %4220 = vmatprep.subr.mxu0 %v463
    %4221 = vmatpush1.msra.mxu0 %v462
    %4222 = vmatprep.subr.mxu0 %v467
    %4223 = vmatpush1.msra.mxu0 %v466
    %4224 = vmatprep.subr.mxu0 %v471
    %4225 = vmatpush1.msra.mxu0 %v470
    %4226 = vmatprep.subr.mxu0 %v475
    %4227 = vmatpush1.msra.mxu0 %v474
    %4228 = vmatprep.subr.mxu0 %v479
    %4229 = vmatpush1.msra.mxu0 %v478
    %4230 = vmatprep.subr.mxu0 %v483
    %4231 = vmatpush1.msra.mxu0 %v482
    %4232 = vmatprep.subr.mxu0 %v487
    %4233 = vmatpush1.msra.mxu0 %v486
    %4234 = vmatprep.subr.mxu0 %v491
    %4235 = vmatpush1.msra.mxu0 %v490
    %4236 = vmatprep.subr.mxu0 %v495
    %4237 = vmatpush1.msra.mxu0 %v494
    %4238 = vmatprep.subr.mxu0 %v499
    %4239 = vmatpush1.msra.mxu0 %v498
    %4240 = vmatprep.subr.mxu0 %v503
    %4241 = vmatpush1.msra.mxu0 %v502
    %4242 = vmatprep.subr.mxu0 %v507
    %4243 = vmatpush1.msra.mxu0 %v506
    %4244 = vmatprep.subr.mxu0 %v511
    %4245 = vmatpush1.msra.mxu0 %v510
    %4246 = vmatprep.mubr.f32.mxu0 %v3968
    %4247 = vmatmul.mubr.f32.gmra.mrb[0].mxu0 %v3967
    %v4248 = vpop.f32.mrb[0].mxu0
    %v4249 = vadd.f32 %v4178, %v4248
    %v4250 = vpop.f32.mrb[0].mxu0
    %v4251 = vadd.f32 %v4180, %v4250
    %4252 = vdwg.mxu0
    %v4253 = vld [vmem:[%s0 + $0xa8] sm:$0xff]
    %v4254 = vld [vmem:[%s0 + $0xb0] sm:$0xff]
    %v4255 = vld [vmem:[%s0 + $0xb8] sm:$0xff]
    %4256 = vmatprep.subr.mxu0 %v65
    %4257 = vmatpush1.msra.mxu0 %v64
    %4258 = vmatprep.subr.mxu0 %v69
    %4259 = vmatpush1.msra.mxu0 %v68
    %4260 = vmatprep.subr.mxu0 %v73
    %4261 = vmatpush1.msra.mxu0 %v72
    %4262 = vmatprep.subr.mxu0 %v77
    %4263 = vmatpush1.msra.mxu0 %v76
    %4264 = vmatprep.subr.mxu0 %v81
    %4265 = vmatpush1.msra.mxu0 %v80
    %4266 = vmatprep.subr.mxu0 %v85
    %4267 = vmatpush1.msra.mxu0 %v84
    %4268 = vmatprep.subr.mxu0 %v89
    %4269 = vmatpush1.msra.mxu0 %v88
    %4270 = vmatprep.subr.mxu0 %v93
    %4271 = vmatpush1.msra.mxu0 %v92
    %4272 = vmatprep.subr.mxu0 %v97
    %4273 = vmatpush1.msra.mxu0 %v96
    %4274 = vmatprep.subr.mxu0 %v101
    %4275 = vmatpush1.msra.mxu0 %v100
    %4276 = vmatprep.subr.mxu0 %v105
    %4277 = vmatpush1.msra.mxu0 %v104
    %4278 = vmatprep.subr.mxu0 %v109
    %4279 = vmatpush1.msra.mxu0 %v108
    %4280 = vmatprep.subr.mxu0 %v113
    %4281 = vmatpush1.msra.mxu0 %v112
    %4282 = vmatprep.subr.mxu0 %v117
    %4283 = vmatpush1.msra.mxu0 %v116
    %4284 = vmatprep.subr.mxu0 %v121
    %4285 = vmatpush1.msra.mxu0 %v120
    %4286 = vmatprep.subr.mxu0 %v125
    %4287 = vmatpush1.msra.mxu0 %v124
    %4288 = vmatprep.subr.mxu0 %v129
    %4289 = vmatpush1.msra.mxu0 %v128
    %4290 = vmatprep.subr.mxu0 %v133
    %4291 = vmatpush1.msra.mxu0 %v132
    %4292 = vmatprep.subr.mxu0 %v137
    %4293 = vmatpush1.msra.mxu0 %v136
    %4294 = vmatprep.subr.mxu0 %v141
    %4295 = vmatpush1.msra.mxu0 %v140
    %4296 = vmatprep.subr.mxu0 %v145
    %4297 = vmatpush1.msra.mxu0 %v144
    %4298 = vmatprep.subr.mxu0 %v149
    %4299 = vmatpush1.msra.mxu0 %v148
    %4300 = vmatprep.subr.mxu0 %v153
    %4301 = vmatpush1.msra.mxu0 %v152
    %4302 = vmatprep.subr.mxu0 %v157
    %4303 = vmatpush1.msra.mxu0 %v156
    %4304 = vmatprep.subr.mxu0 %v161
    %4305 = vmatpush1.msra.mxu0 %v160
    %4306 = vmatprep.subr.mxu0 %v165
    %4307 = vmatpush1.msra.mxu0 %v164
    %4308 = vmatprep.subr.mxu0 %v169
    %4309 = vmatpush1.msra.mxu0 %v168
    %4310 = vmatprep.subr.mxu0 %v173
    %4311 = vmatpush1.msra.mxu0 %v172
    %4312 = vmatprep.subr.mxu0 %v177
    %4313 = vmatpush1.msra.mxu0 %v176
    %4314 = vmatprep.subr.mxu0 %v181
    %4315 = vmatpush1.msra.mxu0 %v180
    %4316 = vmatprep.subr.mxu0 %v185
    %4317 = vmatpush1.msra.mxu0 %v184
    %4318 = vmatprep.subr.mxu0 %v189
    %4319 = vmatpush1.msra.mxu0 %v188
    %4320 = vmatprep.mubr.f32.mxu0 %v3679
    %4321 = vmatmul.mubr.f32.gmra.mrb[0].mxu0 %v3678
    %v4322 = vpop.f32.mrb[0].mxu0
    %v4323 = vadd.f32 %v4107, %v4322
    %v4324 = vpop.f32.mrb[0].mxu0
    %v4325 = vadd.f32 %v4109, %v4324
    %4326 = vdwg.mxu0
    %4327 = vmatprep.subr.mxu0 %v193
    %4328 = vmatpush1.msra.mxu0 %v192
    %4329 = vmatprep.subr.mxu0 %v197
    %4330 = vmatpush1.msra.mxu0 %v196
    %4331 = vmatprep.subr.mxu0 %v201
    %4332 = vmatpush1.msra.mxu0 %v200
    %4333 = vmatprep.subr.mxu0 %v205
    %4334 = vmatpush1.msra.mxu0 %v204
    %4335 = vmatprep.subr.mxu0 %v209
    %4336 = vmatpush1.msra.mxu0 %v208
    %4337 = vmatprep.subr.mxu0 %v213
    %4338 = vmatpush1.msra.mxu0 %v212
    %4339 = vmatprep.subr.mxu0 %v217
    %4340 = vmatpush1.msra.mxu0 %v216
    %4341 = vmatprep.subr.mxu0 %v221
    %4342 = vmatpush1.msra.mxu0 %v220
    %4343 = vmatprep.subr.mxu0 %v225
    %4344 = vmatpush1.msra.mxu0 %v224
    %4345 = vmatprep.subr.mxu0 %v229
    %4346 = vmatpush1.msra.mxu0 %v228
    %4347 = vmatprep.subr.mxu0 %v233
    %4348 = vmatpush1.msra.mxu0 %v232
    %4349 = vmatprep.subr.mxu0 %v237
    %4350 = vmatpush1.msra.mxu0 %v236
    %4351 = vmatprep.subr.mxu0 %v241
    %4352 = vmatpush1.msra.mxu0 %v240
    %4353 = vmatprep.subr.mxu0 %v245
    %4354 = vmatpush1.msra.mxu0 %v244
    %4355 = vmatprep.subr.mxu0 %v249
    %4356 = vmatpush1.msra.mxu0 %v248
    %4357 = vmatprep.subr.mxu0 %v253
    %4358 = vmatpush1.msra.mxu0 %v252
    %4359 = vmatprep.subr.mxu0 0.0
    %4360 = vmatpush1.msra.mxu0 0.0
    %4361 = vmatprep.subr.mxu0 0.0
    %4362 = vmatpush1.msra.mxu0 0.0
    %4363 = vmatprep.subr.mxu0 0.0
    %4364 = vmatpush1.msra.mxu0 0.0
    %4365 = vmatprep.subr.mxu0 0.0
    %4366 = vmatpush1.msra.mxu0 0.0
    %4367 = vmatprep.subr.mxu0 0.0
    %4368 = vmatpush1.msra.mxu0 0.0
    %4369 = vmatprep.subr.mxu0 0.0
    %4370 = vmatpush1.msra.mxu0 0.0
    %4371 = vmatprep.subr.mxu0 0.0
    %4372 = vmatpush1.msra.mxu0 0.0
    %4373 = vmatprep.subr.mxu0 0.0
    %4374 = vmatpush1.msra.mxu0 0.0
    %4375 = vmatprep.subr.mxu0 0.0
    %4376 = vmatpush1.msra.mxu0 0.0
    %4377 = vmatprep.subr.mxu0 0.0
    %4378 = vmatpush1.msra.mxu0 0.0
    %4379 = vmatprep.subr.mxu0 0.0
    %4380 = vmatpush1.msra.mxu0 0.0
    %4381 = vmatprep.subr.mxu0 0.0
    %4382 = vmatpush1.msra.mxu0 0.0
    %4383 = vmatprep.subr.mxu0 0.0
    %4384 = vmatpush1.msra.mxu0 0.0
    %4385 = vmatprep.subr.mxu0 0.0
    %4386 = vmatpush1.msra.mxu0 0.0
    %4387 = vmatprep.subr.mxu0 0.0
    %4388 = vmatpush1.msra.mxu0 0.0
    %4389 = vmatprep.subr.mxu0 0.0
    %4390 = vmatpush1.msra.mxu0 0.0
    %4391 = vmatprep.mubr.f32.mxu0 0.0
    %4392 = vmatmul.mubr.f32.gmra.mrb[0].mxu0 %v3680
    %v4393 = vpop.f32.mrb[0].mxu0
    %v4394 = vadd.f32 %v4323, %v4393
    %v4395 = vpop.f32.mrb[0].mxu0
    %v4396 = vadd.f32 %v4325, %v4395
    %4397 = vdwg.mxu0
    %4398 = vmatprep.subr.mxu0 %v67
    %4399 = vmatpush1.msra.mxu0 %v66
    %4400 = vmatprep.subr.mxu0 %v71
    %4401 = vmatpush1.msra.mxu0 %v70
    %4402 = vmatprep.subr.mxu0 %v75
    %4403 = vmatpush1.msra.mxu0 %v74
    %4404 = vmatprep.subr.mxu0 %v79
    %4405 = vmatpush1.msra.mxu0 %v78
    %4406 = vmatprep.subr.mxu0 %v83
    %4407 = vmatpush1.msra.mxu0 %v82
    %4408 = vmatprep.subr.mxu0 %v87
    %4409 = vmatpush1.msra.mxu0 %v86
    %4410 = vmatprep.subr.mxu0 %v91
    %4411 = vmatpush1.msra.mxu0 %v90
    %4412 = vmatprep.subr.mxu0 %v95
    %4413 = vmatpush1.msra.mxu0 %v94
    %4414 = vmatprep.subr.mxu0 %v99
    %4415 = vmatpush1.msra.mxu0 %v98
    %4416 = vmatprep.subr.mxu0 %v103
    %4417 = vmatpush1.msra.mxu0 %v102
    %4418 = vmatprep.subr.mxu0 %v107
    %4419 = vmatpush1.msra.mxu0 %v106
    %4420 = vmatprep.subr.mxu0 %v111
    %4421 = vmatpush1.msra.mxu0 %v110
    %4422 = vmatprep.subr.mxu0 %v115
    %4423 = vmatpush1.msra.mxu0 %v114
    %4424 = vmatprep.subr.mxu0 %v119
    %4425 = vmatpush1.msra.mxu0 %v118
    %4426 = vmatprep.subr.mxu0 %v123
    %4427 = vmatpush1.msra.mxu0 %v122
    %4428 = vmatprep.subr.mxu0 %v127
    %4429 = vmatpush1.msra.mxu0 %v126
    %4430 = vmatprep.subr.mxu0 %v131
    %4431 = vmatpush1.msra.mxu0 %v130
    %4432 = vmatprep.subr.mxu0 %v135
    %4433 = vmatpush1.msra.mxu0 %v134
    %4434 = vmatprep.subr.mxu0 %v139
    %4435 = vmatpush1.msra.mxu0 %v138
    %4436 = vmatprep.subr.mxu0 %v143
    %4437 = vmatpush1.msra.mxu0 %v142
    %4438 = vmatprep.subr.mxu0 %v147
    %4439 = vmatpush1.msra.mxu0 %v146
    %4440 = vmatprep.subr.mxu0 %v151
    %4441 = vmatpush1.msra.mxu0 %v150
    %4442 = vmatprep.subr.mxu0 %v155
    %4443 = vmatpush1.msra.mxu0 %v154
    %4444 = vmatprep.subr.mxu0 %v159
    %4445 = vmatpush1.msra.mxu0 %v158
    %4446 = vmatprep.subr.mxu0 %v163
    %4447 = vmatpush1.msra.mxu0 %v162
    %4448 = vmatprep.subr.mxu0 %v167
    %4449 = vmatpush1.msra.mxu0 %v166
    %4450 = vmatprep.subr.mxu0 %v171
    %4451 = vmatpush1.msra.mxu0 %v170
    %4452 = vmatprep.subr.mxu0 %v175
    %4453 = vmatpush1.msra.mxu0 %v174
    %4454 = vmatprep.subr.mxu0 %v179
    %4455 = vmatpush1.msra.mxu0 %v178
    %4456 = vmatprep.subr.mxu0 %v183
    %4457 = vmatpush1.msra.mxu0 %v182
    %4458 = vmatprep.subr.mxu0 %v187
    %4459 = vmatpush1.msra.mxu0 %v186
    %4460 = vmatprep.subr.mxu0 %v191
    %4461 = vmatpush1.msra.mxu0 %v190
    %4462 = vmatprep.mubr.f32.mxu0 %v3679
    %4463 = vmatmul.mubr.f32.gmra.mrb[0].mxu0 %v3678
    %v4464 = vpop.f32.mrb[0].mxu0
    %v4465 = vadd.f32 %v4249, %v4464
    %v4466 = vpop.f32.mrb[0].mxu0
    %v4467 = vadd.f32 %v4251, %v4466
    %4468 = vdwg.mxu0
    %4469 = vmatprep.subr.mxu0 %v195
    %4470 = vmatpush1.msra.mxu0 %v194
    %4471 = vmatprep.subr.mxu0 %v199
    %4472 = vmatpush1.msra.mxu0 %v198
    %4473 = vmatprep.subr.mxu0 %v203
    %4474 = vmatpush1.msra.mxu0 %v202
    %4475 = vmatprep.subr.mxu0 %v207
    %4476 = vmatpush1.msra.mxu0 %v206
    %4477 = vmatprep.subr.mxu0 %v211
    %4478 = vmatpush1.msra.mxu0 %v210
    %4479 = vmatprep.subr.mxu0 %v215
    %4480 = vmatpush1.msra.mxu0 %v214
    %4481 = vmatprep.subr.mxu0 %v219
    %4482 = vmatpush1.msra.mxu0 %v218
    %4483 = vmatprep.subr.mxu0 %v223
    %4484 = vmatpush1.msra.mxu0 %v222
    %4485 = vmatprep.subr.mxu0 %v227
    %4486 = vmatpush1.msra.mxu0 %v226
    %4487 = vmatprep.subr.mxu0 %v231
    %4488 = vmatpush1.msra.mxu0 %v230
    %4489 = vmatprep.subr.mxu0 %v235
    %4490 = vmatpush1.msra.mxu0 %v234
    %4491 = vmatprep.subr.mxu0 %v239
    %4492 = vmatpush1.msra.mxu0 %v238
    %4493 = vmatprep.subr.mxu0 %v243
    %4494 = vmatpush1.msra.mxu0 %v242
    %4495 = vmatprep.subr.mxu0 %v247
    %4496 = vmatpush1.msra.mxu0 %v246
    %4497 = vmatprep.subr.mxu0 %v251
    %4498 = vmatpush1.msra.mxu0 %v250
    %4499 = vmatprep.subr.mxu0 %v255
    %4500 = vmatpush1.msra.mxu0 %v254
    %4501 = vmatprep.subr.mxu0 0.0
    %4502 = vmatpush1.msra.mxu0 0.0
    %4503 = vmatprep.subr.mxu0 0.0
    %4504 = vmatpush1.msra.mxu0 0.0
    %4505 = vmatprep.subr.mxu0 0.0
    %4506 = vmatpush1.msra.mxu0 0.0
    %4507 = vmatprep.subr.mxu0 0.0
    %4508 = vmatpush1.msra.mxu0 0.0
    %4509 = vmatprep.subr.mxu0 0.0
    %4510 = vmatpush1.msra.mxu0 0.0
    %4511 = vmatprep.subr.mxu0 0.0
    %4512 = vmatpush1.msra.mxu0 0.0
    %4513 = vmatprep.subr.mxu0 0.0
    %4514 = vmatpush1.msra.mxu0 0.0
    %4515 = vmatprep.subr.mxu0 0.0
    %4516 = vmatpush1.msra.mxu0 0.0
    %4517 = vmatprep.subr.mxu0 0.0
    %4518 = vmatpush1.msra.mxu0 0.0
    %4519 = vmatprep.subr.mxu0 0.0
    %4520 = vmatpush1.msra.mxu0 0.0
    %4521 = vmatprep.subr.mxu0 0.0
    %4522 = vmatpush1.msra.mxu0 0.0
    %4523 = vmatprep.subr.mxu0 0.0
    %4524 = vmatpush1.msra.mxu0 0.0
    %4525 = vmatprep.subr.mxu0 0.0
    %4526 = vmatpush1.msra.mxu0 0.0
    %4527 = vmatprep.subr.mxu0 0.0
    %4528 = vmatpush1.msra.mxu0 0.0
    %4529 = vmatprep.subr.mxu0 0.0
    %4530 = vmatpush1.msra.mxu0 0.0
    %4531 = vmatprep.subr.mxu0 0.0
    %4532 = vmatpush1.msra.mxu0 0.0
    %4533 = vmatprep.mubr.f32.mxu0 0.0
    %4534 = vmatmul.mubr.f32.gmra.mrb[0].mxu0 %v3680
    %v4535 = vpop.f32.mrb[0].mxu0
    %v4536 = vadd.f32 %v4465, %v4535
    %v4537 = vpop.f32.mrb[0].mxu0
    %v4538 = vadd.f32 %v4467, %v4537
    %4539 = vdwg.mxu0
    %v4540 = vtanh.pop %v4394
    %v4541 = vtanh.pop %v4396
    %v4542 = vtanh.pop %v4536
    %v4543 = vtanh.pop %v4538
    %4544 = vmatprep.subr.mxu0 %v257
    %4545 = vmatpush1.msra.mxu0 %v256
    %4546 = vmatprep.subr.mxu0 %v261
    %4547 = vmatpush1.msra.mxu0 %v260
    %4548 = vmatprep.subr.mxu0 %v265
    %4549 = vmatpush1.msra.mxu0 %v264
    %4550 = vmatprep.subr.mxu0 %v269
    %4551 = vmatpush1.msra.mxu0 %v268
    %4552 = vmatprep.subr.mxu0 %v273
    %4553 = vmatpush1.msra.mxu0 %v272
    %4554 = vmatprep.subr.mxu0 %v277
    %4555 = vmatpush1.msra.mxu0 %v276
    %4556 = vmatprep.subr.mxu0 %v281
    %4557 = vmatpush1.msra.mxu0 %v280
    %4558 = vmatprep.subr.mxu0 %v285
    %4559 = vmatpush1.msra.mxu0 %v284
    %4560 = vmatprep.subr.mxu0 %v289
    %4561 = vmatpush1.msra.mxu0 %v288
    %4562 = vmatprep.subr.mxu0 %v293
    %4563 = vmatpush1.msra.mxu0 %v292
    %4564 = vmatprep.subr.mxu0 %v297
    %4565 = vmatpush1.msra.mxu0 %v296
    %4566 = vmatprep.subr.mxu0 %v301
    %4567 = vmatpush1.msra.mxu0 %v300
    %4568 = vmatprep.subr.mxu0 %v305
    %4569 = vmatpush1.msra.mxu0 %v304
    %4570 = vmatprep.subr.mxu0 %v309
    %4571 = vmatpush1.msra.mxu0 %v308
    %4572 = vmatprep.subr.mxu0 %v313
    %4573 = vmatpush1.msra.mxu0 %v312
    %4574 = vmatprep.subr.mxu0 %v317
    %4575 = vmatpush1.msra.mxu0 %v316
    %4576 = vmatprep.subr.mxu0 %v321
    %4577 = vmatpush1.msra.mxu0 %v320
    %4578 = vmatprep.subr.mxu0 %v325
    %4579 = vmatpush1.msra.mxu0 %v324
    %4580 = vmatprep.subr.mxu0 %v329
    %4581 = vmatpush1.msra.mxu0 %v328
    %4582 = vmatprep.subr.mxu0 %v333
    %4583 = vmatpush1.msra.mxu0 %v332
    %4584 = vmatprep.subr.mxu0 %v337
    %4585 = vmatpush1.msra.mxu0 %v336
    %4586 = vmatprep.subr.mxu0 %v341
    %4587 = vmatpush1.msra.mxu0 %v340
    %4588 = vmatprep.subr.mxu0 %v345
    %4589 = vmatpush1.msra.mxu0 %v344
    %4590 = vmatprep.subr.mxu0 %v349
    %4591 = vmatpush1.msra.mxu0 %v348
    %4592 = vmatprep.subr.mxu0 %v353
    %4593 = vmatpush1.msra.mxu0 %v352
    %4594 = vmatprep.subr.mxu0 %v357
    %4595 = vmatpush1.msra.mxu0 %v356
    %4596 = vmatprep.subr.mxu0 %v361
    %4597 = vmatpush1.msra.mxu0 %v360
    %4598 = vmatprep.subr.mxu0 %v365
    %4599 = vmatpush1.msra.mxu0 %v364
    %4600 = vmatprep.subr.mxu0 %v369
    %4601 = vmatpush1.msra.mxu0 %v368
    %4602 = vmatprep.subr.mxu0 %v373
    %4603 = vmatpush1.msra.mxu0 %v372
    %4604 = vmatprep.subr.mxu0 %v377
    %4605 = vmatpush1.msra.mxu0 %v376
    %4606 = vmatprep.subr.mxu0 %v381
    %4607 = vmatpush1.msra.mxu0 %v380
    %4608 = vmatprep.mubr.f32.mxu0 %v4541
    %4609 = vmatmul.mubr.f32.gmra.mrb[0].mxu0 %v4540
    %v4610 = vpop.f32.mrb[0].mxu0
    %v4611 = vadd.f32 0.0, %v4610
    %v4612 = vpop.f32.mrb[0].mxu0
    %v4613 = vadd.f32 0.0, %v4612
    %4614 = vdwg.mxu0
    %4615 = vmatprep.subr.mxu0 %v385
    %4616 = vmatpush1.msra.mxu0 %v384
    %4617 = vmatprep.subr.mxu0 %v389
    %4618 = vmatpush1.msra.mxu0 %v388
    %4619 = vmatprep.subr.mxu0 %v393
    %4620 = vmatpush1.msra.mxu0 %v392
    %4621 = vmatprep.subr.mxu0 %v397
    %4622 = vmatpush1.msra.mxu0 %v396
    %4623 = vmatprep.subr.mxu0 %v401
    %4624 = vmatpush1.msra.mxu0 %v400
    %4625 = vmatprep.subr.mxu0 %v405
    %4626 = vmatpush1.msra.mxu0 %v404
    %4627 = vmatprep.subr.mxu0 %v409
    %4628 = vmatpush1.msra.mxu0 %v408
    %4629 = vmatprep.subr.mxu0 %v413
    %4630 = vmatpush1.msra.mxu0 %v412
    %4631 = vmatprep.subr.mxu0 %v417
    %4632 = vmatpush1.msra.mxu0 %v416
    %4633 = vmatprep.subr.mxu0 %v421
    %4634 = vmatpush1.msra.mxu0 %v420
    %4635 = vmatprep.subr.mxu0 %v425
    %4636 = vmatpush1.msra.mxu0 %v424
    %4637 = vmatprep.subr.mxu0 %v429
    %4638 = vmatpush1.msra.mxu0 %v428
    %4639 = vmatprep.subr.mxu0 %v433
    %4640 = vmatpush1.msra.mxu0 %v432
    %4641 = vmatprep.subr.mxu0 %v437
    %4642 = vmatpush1.msra.mxu0 %v436
    %4643 = vmatprep.subr.mxu0 %v441
    %4644 = vmatpush1.msra.mxu0 %v440
    %4645 = vmatprep.subr.mxu0 %v445
    %4646 = vmatpush1.msra.mxu0 %v444
    %4647 = vmatprep.subr.mxu0 %v449
    %4648 = vmatpush1.msra.mxu0 %v448
    %4649 = vmatprep.subr.mxu0 %v453
    %4650 = vmatpush1.msra.mxu0 %v452
    %4651 = vmatprep.subr.mxu0 %v457
    %4652 = vmatpush1.msra.mxu0 %v456
    %4653 = vmatprep.subr.mxu0 %v461
    %4654 = vmatpush1.msra.mxu0 %v460
    %4655 = vmatprep.subr.mxu0 %v465
    %4656 = vmatpush1.msra.mxu0 %v464
    %4657 = vmatprep.subr.mxu0 %v469
    %4658 = vmatpush1.msra.mxu0 %v468
    %4659 = vmatprep.subr.mxu0 %v473
    %4660 = vmatpush1.msra.mxu0 %v472
    %4661 = vmatprep.subr.mxu0 %v477
    %4662 = vmatpush1.msra.mxu0 %v476
    %4663 = vmatprep.subr.mxu0 %v481
    %4664 = vmatpush1.msra.mxu0 %v480
    %4665 = vmatprep.subr.mxu0 %v485
    %4666 = vmatpush1.msra.mxu0 %v484
    %4667 = vmatprep.subr.mxu0 %v489
    %4668 = vmatpush1.msra.mxu0 %v488
    %4669 = vmatprep.subr.mxu0 %v493
    %4670 = vmatpush1.msra.mxu0 %v492
    %4671 = vmatprep.subr.mxu0 %v497
    %4672 = vmatpush1.msra.mxu0 %v496
    %4673 = vmatprep.subr.mxu0 %v501
    %4674 = vmatpush1.msra.mxu0 %v500
    %4675 = vmatprep.subr.mxu0 %v505
    %4676 = vmatpush1.msra.mxu0 %v504
    %4677 = vmatprep.subr.mxu0 %v509
    %4678 = vmatpush1.msra.mxu0 %v508
    %4679 = vmatprep.mubr.f32.mxu0 %v4543
    %4680 = vmatmul.mubr.f32.gmra.mrb[0].mxu0 %v4542
    %v4681 = vpop.f32.mrb[0].mxu0
    %v4682 = vadd.f32 %v4611, %v4681
    %v4683 = vpop.f32.mrb[0].mxu0
    %v4684 = vadd.f32 %v4613, %v4683
    %4685 = vdwg.mxu0
    %4686 = vmatprep.subr.mxu0 %v259
    %4687 = vmatpush1.msra.mxu0 %v258
    %4688 = vmatprep.subr.mxu0 %v263
    %4689 = vmatpush1.msra.mxu0 %v262
    %4690 = vmatprep.subr.mxu0 %v267
    %4691 = vmatpush1.msra.mxu0 %v266
    %4692 = vmatprep.subr.mxu0 %v271
    %4693 = vmatpush1.msra.mxu0 %v270
    %4694 = vmatprep.subr.mxu0 %v275
    %4695 = vmatpush1.msra.mxu0 %v274
    %4696 = vmatprep.subr.mxu0 %v279
    %4697 = vmatpush1.msra.mxu0 %v278
    %4698 = vmatprep.subr.mxu0 %v283
    %4699 = vmatpush1.msra.mxu0 %v282
    %4700 = vmatprep.subr.mxu0 %v287
    %4701 = vmatpush1.msra.mxu0 %v286
    %4702 = vmatprep.subr.mxu0 %v291
    %4703 = vmatpush1.msra.mxu0 %v290
    %4704 = vmatprep.subr.mxu0 %v295
    %4705 = vmatpush1.msra.mxu0 %v294
    %4706 = vmatprep.subr.mxu0 %v299
    %4707 = vmatpush1.msra.mxu0 %v298
    %4708 = vmatprep.subr.mxu0 %v303
    %4709 = vmatpush1.msra.mxu0 %v302
    %4710 = vmatprep.subr.mxu0 %v307
    %4711 = vmatpush1.msra.mxu0 %v306
    %4712 = vmatprep.subr.mxu0 %v311
    %4713 = vmatpush1.msra.mxu0 %v310
    %4714 = vmatprep.subr.mxu0 %v315
    %4715 = vmatpush1.msra.mxu0 %v314
    %4716 = vmatprep.subr.mxu0 %v319
    %4717 = vmatpush1.msra.mxu0 %v318
    %4718 = vmatprep.subr.mxu0 %v323
    %4719 = vmatpush1.msra.mxu0 %v322
    %4720 = vmatprep.subr.mxu0 %v327
    %4721 = vmatpush1.msra.mxu0 %v326
    %4722 = vmatprep.subr.mxu0 %v331
    %4723 = vmatpush1.msra.mxu0 %v330
    %4724 = vmatprep.subr.mxu0 %v335
    %4725 = vmatpush1.msra.mxu0 %v334
    %4726 = vmatprep.subr.mxu0 %v339
    %4727 = vmatpush1.msra.mxu0 %v338
    %4728 = vmatprep.subr.mxu0 %v343
    %4729 = vmatpush1.msra.mxu0 %v342
    %4730 = vmatprep.subr.mxu0 %v347
    %4731 = vmatpush1.msra.mxu0 %v346
    %4732 = vmatprep.subr.mxu0 %v351
    %4733 = vmatpush1.msra.mxu0 %v350
    %4734 = vmatprep.subr.mxu0 %v355
    %4735 = vmatpush1.msra.mxu0 %v354
    %4736 = vmatprep.subr.mxu0 %v359
    %4737 = vmatpush1.msra.mxu0 %v358
    %4738 = vmatprep.subr.mxu0 %v363
    %4739 = vmatpush1.msra.mxu0 %v362
    %4740 = vmatprep.subr.mxu0 %v367
    %4741 = vmatpush1.msra.mxu0 %v366
    %4742 = vmatprep.subr.mxu0 %v371
    %4743 = vmatpush1.msra.mxu0 %v370
    %4744 = vmatprep.subr.mxu0 %v375
    %4745 = vmatpush1.msra.mxu0 %v374
    %4746 = vmatprep.subr.mxu0 %v379
    %4747 = vmatpush1.msra.mxu0 %v378
    %4748 = vmatprep.subr.mxu0 %v383
    %4749 = vmatpush1.msra.mxu0 %v382
    %4750 = vmatprep.mubr.f32.mxu0 %v4541
    %4751 = vmatmul.mubr.f32.gmra.mrb[0].mxu0 %v4540
    %v4752 = vpop.f32.mrb[0].mxu0
    %v4753 = vadd.f32 0.0, %v4752
    %v4754 = vpop.f32.mrb[0].mxu0
    %v4755 = vadd.f32 0.0, %v4754
    %4756 = vdwg.mxu0
    %4757 = vmatprep.subr.mxu0 %v387
    %4758 = vmatpush1.msra.mxu0 %v386
    %4759 = vmatprep.subr.mxu0 %v391
    %4760 = vmatpush1.msra.mxu0 %v390
    %4761 = vmatprep.subr.mxu0 %v395
    %4762 = vmatpush1.msra.mxu0 %v394
    %4763 = vmatprep.subr.mxu0 %v399
    %4764 = vmatpush1.msra.mxu0 %v398
    %4765 = vmatprep.subr.mxu0 %v403
    %4766 = vmatpush1.msra.mxu0 %v402
    %4767 = vmatprep.subr.mxu0 %v407
    %4768 = vmatpush1.msra.mxu0 %v406
    %4769 = vmatprep.subr.mxu0 %v411
    %4770 = vmatpush1.msra.mxu0 %v410
    %4771 = vmatprep.subr.mxu0 %v415
    %4772 = vmatpush1.msra.mxu0 %v414
    %4773 = vmatprep.subr.mxu0 %v419
    %4774 = vmatpush1.msra.mxu0 %v418
    %4775 = vmatprep.subr.mxu0 %v423
    %4776 = vmatpush1.msra.mxu0 %v422
    %4777 = vmatprep.subr.mxu0 %v427
    %4778 = vmatpush1.msra.mxu0 %v426
    %4779 = vmatprep.subr.mxu0 %v431
    %4780 = vmatpush1.msra.mxu0 %v430
    %4781 = vmatprep.subr.mxu0 %v435
    %4782 = vmatpush1.msra.mxu0 %v434
    %4783 = vmatprep.subr.mxu0 %v439
    %4784 = vmatpush1.msra.mxu0 %v438
    %4785 = vmatprep.subr.mxu0 %v443
    %4786 = vmatpush1.msra.mxu0 %v442
    %4787 = vmatprep.subr.mxu0 %v447
    %4788 = vmatpush1.msra.mxu0 %v446
    %4789 = vmatprep.subr.mxu0 %v451
    %4790 = vmatpush1.msra.mxu0 %v450
    %4791 = vmatprep.subr.mxu0 %v455
    %4792 = vmatpush1.msra.mxu0 %v454
    %4793 = vmatprep.subr.mxu0 %v459
    %4794 = vmatpush1.msra.mxu0 %v458
    %4795 = vmatprep.subr.mxu0 %v463
    %4796 = vmatpush1.msra.mxu0 %v462
    %4797 = vmatprep.subr.mxu0 %v467
    %4798 = vmatpush1.msra.mxu0 %v466
    %4799 = vmatprep.subr.mxu0 %v471
    %4800 = vmatpush1.msra.mxu0 %v470
    %4801 = vmatprep.subr.mxu0 %v475
    %4802 = vmatpush1.msra.mxu0 %v474
    %4803 = vmatprep.subr.mxu0 %v479
    %4804 = vmatpush1.msra.mxu0 %v478
    %4805 = vmatprep.subr.mxu0 %v483
    %4806 = vmatpush1.msra.mxu0 %v482
    %4807 = vmatprep.subr.mxu0 %v487
    %4808 = vmatpush1.msra.mxu0 %v486
    %4809 = vmatprep.subr.mxu0 %v491
    %4810 = vmatpush1.msra.mxu0 %v490
    %4811 = vmatprep.subr.mxu0 %v495
    %4812 = vmatpush1.msra.mxu0 %v494
    %4813 = vmatprep.subr.mxu0 %v499
    %4814 = vmatpush1.msra.mxu0 %v498
    %4815 = vmatprep.subr.mxu0 %v503
    %4816 = vmatpush1.msra.mxu0 %v502
    %4817 = vmatprep.subr.mxu0 %v507
    %4818 = vmatpush1.msra.mxu0 %v506
    %4819 = vmatprep.subr.mxu0 %v511
    %4820 = vmatpush1.msra.mxu0 %v510
    %4821 = vmatprep.mubr.f32.mxu0 %v4543
    %4822 = vmatmul.mubr.f32.gmra.mrb[0].mxu0 %v4542
    %v4823 = vpop.f32.mrb[0].mxu0
    %v4824 = vadd.f32 %v4753, %v4823
    %v4825 = vpop.f32.mrb[0].mxu0
    %v4826 = vadd.f32 %v4755, %v4825
    %4827 = vdwg.mxu0
    %4828 = vmatprep.subr.mxu0 %v65
    %4829 = vmatpush1.msra.mxu0 %v64
    %4830 = vmatprep.subr.mxu0 %v69
    %4831 = vmatpush1.msra.mxu0 %v68
    %4832 = vmatprep.subr.mxu0 %v73
    %4833 = vmatpush1.msra.mxu0 %v72
    %4834 = vmatprep.subr.mxu0 %v77
    %4835 = vmatpush1.msra.mxu0 %v76
    %4836 = vmatprep.subr.mxu0 %v81
    %4837 = vmatpush1.msra.mxu0 %v80
    %4838 = vmatprep.subr.mxu0 %v85
    %4839 = vmatpush1.msra.mxu0 %v84
    %4840 = vmatprep.subr.mxu0 %v89
    %4841 = vmatpush1.msra.mxu0 %v88
    %4842 = vmatprep.subr.mxu0 %v93
    %4843 = vmatpush1.msra.mxu0 %v92
    %4844 = vmatprep.subr.mxu0 %v97
    %4845 = vmatpush1.msra.mxu0 %v96
    %4846 = vmatprep.subr.mxu0 %v101
    %4847 = vmatpush1.msra.mxu0 %v100
    %4848 = vmatprep.subr.mxu0 %v105
    %4849 = vmatpush1.msra.mxu0 %v104
    %4850 = vmatprep.subr.mxu0 %v109
    %4851 = vmatpush1.msra.mxu0 %v108
    %4852 = vmatprep.subr.mxu0 %v113
    %4853 = vmatpush1.msra.mxu0 %v112
    %4854 = vmatprep.subr.mxu0 %v117
    %4855 = vmatpush1.msra.mxu0 %v116
    %4856 = vmatprep.subr.mxu0 %v121
    %4857 = vmatpush1.msra.mxu0 %v120
    %4858 = vmatprep.subr.mxu0 %v125
    %4859 = vmatpush1.msra.mxu0 %v124
    %4860 = vmatprep.subr.mxu0 %v129
    %4861 = vmatpush1.msra.mxu0 %v128
    %4862 = vmatprep.subr.mxu0 %v133
    %4863 = vmatpush1.msra.mxu0 %v132
    %4864 = vmatprep.subr.mxu0 %v137
    %4865 = vmatpush1.msra.mxu0 %v136
    %4866 = vmatprep.subr.mxu0 %v141
    %4867 = vmatpush1.msra.mxu0 %v140
    %4868 = vmatprep.subr.mxu0 %v145
    %4869 = vmatpush1.msra.mxu0 %v144
    %4870 = vmatprep.subr.mxu0 %v149
    %4871 = vmatpush1.msra.mxu0 %v148
    %4872 = vmatprep.subr.mxu0 %v153
    %4873 = vmatpush1.msra.mxu0 %v152
    %4874 = vmatprep.subr.mxu0 %v157
    %4875 = vmatpush1.msra.mxu0 %v156
    %4876 = vmatprep.subr.mxu0 %v161
    %4877 = vmatpush1.msra.mxu0 %v160
    %4878 = vmatprep.subr.mxu0 %v165
    %4879 = vmatpush1.msra.mxu0 %v164
    %4880 = vmatprep.subr.mxu0 %v169
    %4881 = vmatpush1.msra.mxu0 %v168
    %4882 = vmatprep.subr.mxu0 %v173
    %4883 = vmatpush1.msra.mxu0 %v172
    %4884 = vmatprep.subr.mxu0 %v177
    %4885 = vmatpush1.msra.mxu0 %v176
    %4886 = vmatprep.subr.mxu0 %v181
    %4887 = vmatpush1.msra.mxu0 %v180
    %4888 = vmatprep.subr.mxu0 %v185
    %4889 = vmatpush1.msra.mxu0 %v184
    %4890 = vmatprep.subr.mxu0 %v189
    %4891 = vmatpush1.msra.mxu0 %v188
    %4892 = vmatprep.mubr.f32.mxu0 %v4254
    %4893 = vmatmul.mubr.f32.gmra.mrb[0].mxu0 %v4253
    %v4894 = vpop.f32.mrb[0].mxu0
    %v4895 = vadd.f32 %v4682, %v4894
    %v4896 = vpop.f32.mrb[0].mxu0
    %v4897 = vadd.f32 %v4684, %v4896
    %4898 = vdwg.mxu0
    %4899 = vmatprep.subr.mxu0 %v193
    %4900 = vmatpush1.msra.mxu0 %v192
    %4901 = vmatprep.subr.mxu0 %v197
    %4902 = vmatpush1.msra.mxu0 %v196
    %4903 = vmatprep.subr.mxu0 %v201
    %4904 = vmatpush1.msra.mxu0 %v200
    %4905 = vmatprep.subr.mxu0 %v205
    %4906 = vmatpush1.msra.mxu0 %v204
    %4907 = vmatprep.subr.mxu0 %v209
    %4908 = vmatpush1.msra.mxu0 %v208
    %4909 = vmatprep.subr.mxu0 %v213
    %4910 = vmatpush1.msra.mxu0 %v212
    %4911 = vmatprep.subr.mxu0 %v217
    %4912 = vmatpush1.msra.mxu0 %v216
    %4913 = vmatprep.subr.mxu0 %v221
    %4914 = vmatpush1.msra.mxu0 %v220
    %4915 = vmatprep.subr.mxu0 %v225
    %4916 = vmatpush1.msra.mxu0 %v224
    %4917 = vmatprep.subr.mxu0 %v229
    %4918 = vmatpush1.msra.mxu0 %v228
    %4919 = vmatprep.subr.mxu0 %v233
    %4920 = vmatpush1.msra.mxu0 %v232
    %4921 = vmatprep.subr.mxu0 %v237
    %4922 = vmatpush1.msra.mxu0 %v236
    %4923 = vmatprep.subr.mxu0 %v241
    %4924 = vmatpush1.msra.mxu0 %v240
    %4925 = vmatprep.subr.mxu0 %v245
    %4926 = vmatpush1.msra.mxu0 %v244
    %4927 = vmatprep.subr.mxu0 %v249
    %4928 = vmatpush1.msra.mxu0 %v248
    %4929 = vmatprep.subr.mxu0 %v253
    %4930 = vmatpush1.msra.mxu0 %v252
    %4931 = vmatprep.subr.mxu0 0.0
    %4932 = vmatpush1.msra.mxu0 0.0
    %4933 = vmatprep.subr.mxu0 0.0
    %4934 = vmatpush1.msra.mxu0 0.0
    %4935 = vmatprep.subr.mxu0 0.0
    %4936 = vmatpush1.msra.mxu0 0.0
    %4937 = vmatprep.subr.mxu0 0.0
    %4938 = vmatpush1.msra.mxu0 0.0
    %4939 = vmatprep.subr.mxu0 0.0
    %4940 = vmatpush1.msra.mxu0 0.0
    %4941 = vmatprep.subr.mxu0 0.0
    %4942 = vmatpush1.msra.mxu0 0.0
    %4943 = vmatprep.subr.mxu0 0.0
    %4944 = vmatpush1.msra.mxu0 0.0
    %4945 = vmatprep.subr.mxu0 0.0
    %4946 = vmatpush1.msra.mxu0 0.0
    %4947 = vmatprep.subr.mxu0 0.0
    %4948 = vmatpush1.msra.mxu0 0.0
    %4949 = vmatprep.subr.mxu0 0.0
    %4950 = vmatpush1.msra.mxu0 0.0
    %4951 = vmatprep.subr.mxu0 0.0
    %4952 = vmatpush1.msra.mxu0 0.0
    %4953 = vmatprep.subr.mxu0 0.0
    %4954 = vmatpush1.msra.mxu0 0.0
    %4955 = vmatprep.subr.mxu0 0.0
    %4956 = vmatpush1.msra.mxu0 0.0
    %4957 = vmatprep.subr.mxu0 0.0
    %4958 = vmatpush1.msra.mxu0 0.0
    %4959 = vmatprep.subr.mxu0 0.0
    %4960 = vmatpush1.msra.mxu0 0.0
    %4961 = vmatprep.subr.mxu0 0.0
    %4962 = vmatpush1.msra.mxu0 0.0
    %4963 = vmatprep.mubr.f32.mxu0 0.0
    %4964 = vmatmul.mubr.f32.gmra.mrb[0].mxu0 %v4255
    %v4965 = vpop.f32.mrb[0].mxu0
    %v4966 = vadd.f32 %v4895, %v4965
    %v4967 = vpop.f32.mrb[0].mxu0
    %v4968 = vadd.f32 %v4897, %v4967
    %4969 = vdwg.mxu0
    %4970 = vmatprep.subr.mxu0 %v67
    %4971 = vmatpush1.msra.mxu0 %v66
    %4972 = vmatprep.subr.mxu0 %v71
    %4973 = vmatpush1.msra.mxu0 %v70
    %4974 = vmatprep.subr.mxu0 %v75
    %4975 = vmatpush1.msra.mxu0 %v74
    %4976 = vmatprep.subr.mxu0 %v79
    %4977 = vmatpush1.msra.mxu0 %v78
    %4978 = vmatprep.subr.mxu0 %v83
    %4979 = vmatpush1.msra.mxu0 %v82
    %4980 = vmatprep.subr.mxu0 %v87
    %4981 = vmatpush1.msra.mxu0 %v86
    %4982 = vmatprep.subr.mxu0 %v91
    %4983 = vmatpush1.msra.mxu0 %v90
    %4984 = vmatprep.subr.mxu0 %v95
    %4985 = vmatpush1.msra.mxu0 %v94
    %4986 = vmatprep.subr.mxu0 %v99
    %4987 = vmatpush1.msra.mxu0 %v98
    %4988 = vmatprep.subr.mxu0 %v103
    %4989 = vmatpush1.msra.mxu0 %v102
    %4990 = vmatprep.subr.mxu0 %v107
    %4991 = vmatpush1.msra.mxu0 %v106
    %4992 = vmatprep.subr.mxu0 %v111
    %4993 = vmatpush1.msra.mxu0 %v110
    %4994 = vmatprep.subr.mxu0 %v115
    %4995 = vmatpush1.msra.mxu0 %v114
    %4996 = vmatprep.subr.mxu0 %v119
    %4997 = vmatpush1.msra.mxu0 %v118
    %4998 = vmatprep.subr.mxu0 %v123
    %4999 = vmatpush1.msra.mxu0 %v122
    %5000 = vmatprep.subr.mxu0 %v127
    %5001 = vmatpush1.msra.mxu0 %v126
    %5002 = vmatprep.subr.mxu0 %v131
    %5003 = vmatpush1.msra.mxu0 %v130
    %5004 = vmatprep.subr.mxu0 %v135
    %5005 = vmatpush1.msra.mxu0 %v134
    %5006 = vmatprep.subr.mxu0 %v139
    %5007 = vmatpush1.msra.mxu0 %v138
    %5008 = vmatprep.subr.mxu0 %v143
    %5009 = vmatpush1.msra.mxu0 %v142
    %5010 = vmatprep.subr.mxu0 %v147
    %5011 = vmatpush1.msra.mxu0 %v146
    %5012 = vmatprep.subr.mxu0 %v151
    %5013 = vmatpush1.msra.mxu0 %v150
    %5014 = vmatprep.subr.mxu0 %v155
    %5015 = vmatpush1.msra.mxu0 %v154
    %5016 = vmatprep.subr.mxu0 %v159
    %5017 = vmatpush1.msra.mxu0 %v158
    %5018 = vmatprep.subr.mxu0 %v163
    %5019 = vmatpush1.msra.mxu0 %v162
    %5020 = vmatprep.subr.mxu0 %v167
    %5021 = vmatpush1.msra.mxu0 %v166
    %5022 = vmatprep.subr.mxu0 %v171
    %5023 = vmatpush1.msra.mxu0 %v170
    %5024 = vmatprep.subr.mxu0 %v175
    %5025 = vmatpush1.msra.mxu0 %v174
    %5026 = vmatprep.subr.mxu0 %v179
    %5027 = vmatpush1.msra.mxu0 %v178
    %5028 = vmatprep.subr.mxu0 %v183
    %5029 = vmatpush1.msra.mxu0 %v182
    %5030 = vmatprep.subr.mxu0 %v187
    %5031 = vmatpush1.msra.mxu0 %v186
    %5032 = vmatprep.subr.mxu0 %v191
    %5033 = vmatpush1.msra.mxu0 %v190
    %5034 = vmatprep.mubr.f32.mxu0 %v4254
    %5035 = vmatmul.mubr.f32.gmra.mrb[0].mxu0 %v4253
    %v5036 = vpop.f32.mrb[0].mxu0
    %v5037 = vadd.f32 %v4824, %v5036
    %v5038 = vpop.f32.mrb[0].mxu0
    %v5039 = vadd.f32 %v4826, %v5038
    %5040 = vdwg.mxu0
    %5041 = vmatprep.subr.mxu0 %v195
    %5042 = vmatpush1.msra.mxu0 %v194
    %5043 = vmatprep.subr.mxu0 %v199
    %5044 = vmatpush1.msra.mxu0 %v198
    %5045 = vmatprep.subr.mxu0 %v203
    %5046 = vmatpush1.msra.mxu0 %v202
    %5047 = vmatprep.subr.mxu0 %v207
    %5048 = vmatpush1.msra.mxu0 %v206
    %5049 = vmatprep.subr.mxu0 %v211
    %5050 = vmatpush1.msra.mxu0 %v210
    %5051 = vmatprep.subr.mxu0 %v215
    %5052 = vmatpush1.msra.mxu0 %v214
    %5053 = vmatprep.subr.mxu0 %v219
    %5054 = vmatpush1.msra.mxu0 %v218
    %5055 = vmatprep.subr.mxu0 %v223
    %5056 = vmatpush1.msra.mxu0 %v222
    %5057 = vmatprep.subr.mxu0 %v227
    %5058 = vmatpush1.msra.mxu0 %v226
    %5059 = vmatprep.subr.mxu0 %v231
    %5060 = vmatpush1.msra.mxu0 %v230
    %5061 = vmatprep.subr.mxu0 %v235
    %5062 = vmatpush1.msra.mxu0 %v234
    %5063 = vmatprep.subr.mxu0 %v239
    %5064 = vmatpush1.msra.mxu0 %v238
    %5065 = vmatprep.subr.mxu0 %v243
    %5066 = vmatpush1.msra.mxu0 %v242
    %5067 = vmatprep.subr.mxu0 %v247
    %5068 = vmatpush1.msra.mxu0 %v246
    %5069 = vmatprep.subr.mxu0 %v251
    %5070 = vmatpush1.msra.mxu0 %v250
    %5071 = vmatprep.subr.mxu0 %v255
    %5072 = vmatpush1.msra.mxu0 %v254
    %5073 = vmatprep.subr.mxu0 0.0
    %5074 = vmatpush1.msra.mxu0 0.0
    %5075 = vmatprep.subr.mxu0 0.0
    %5076 = vmatpush1.msra.mxu0 0.0
    %5077 = vmatprep.subr.mxu0 0.0
    %5078 = vmatpush1.msra.mxu0 0.0
    %5079 = vmatprep.subr.mxu0 0.0
    %5080 = vmatpush1.msra.mxu0 0.0
    %5081 = vmatprep.subr.mxu0 0.0
    %5082 = vmatpush1.msra.mxu0 0.0
    %5083 = vmatprep.subr.mxu0 0.0
    %5084 = vmatpush1.msra.mxu0 0.0
    %5085 = vmatprep.subr.mxu0 0.0
    %5086 = vmatpush1.msra.mxu0 0.0
    %5087 = vmatprep.subr.mxu0 0.0
    %5088 = vmatpush1.msra.mxu0 0.0
    %5089 = vmatprep.subr.mxu0 0.0
    %5090 = vmatpush1.msra.mxu0 0.0
    %5091 = vmatprep.subr.mxu0 0.0
    %5092 = vmatpush1.msra.mxu0 0.0
    %5093 = vmatprep.subr.mxu0 0.0
    %5094 = vmatpush1.msra.mxu0 0.0
    %5095 = vmatprep.subr.mxu0 0.0
    %5096 = vmatpush1.msra.mxu0 0.0
    %5097 = vmatprep.subr.mxu0 0.0
    %5098 = vmatpush1.msra.mxu0 0.0
    %5099 = vmatprep.subr.mxu0 0.0
    %5100 = vmatpush1.msra.mxu0 0.0
    %5101 = vmatprep.subr.mxu0 0.0
    %5102 = vmatpush1.msra.mxu0 0.0
    %5103 = vmatprep.subr.mxu0 0.0
    %5104 = vmatpush1.msra.mxu0 0.0
    %5105 = vmatprep.mubr.f32.mxu0 0.0
    %5106 = vmatmul.mubr.f32.gmra.mrb[0].mxu0 %v4255
    %v5107 = vpop.f32.mrb[0].mxu0
    %v5108 = vadd.f32 %v5037, %v5107
    %v5109 = vpop.f32.mrb[0].mxu0
    %v5110 = vadd.f32 %v5039, %v5109
    %5111 = vdwg.mxu0
    %v5112 = vtanh.pop %v4966
    %v5113 = vtanh.pop %v4968
    %v5114 = vtanh.pop %v5108
    %v5115 = vtanh.pop %v5110
    %v5116 = vld [vmem:[#allocation6] sm:$0xff]
    %v5117 = vld [vmem:[#allocation6 + $0x8] sm:$0xff]
    %v5118 = vld [vmem:[#allocation6 + $0x10] sm:$0xff]
    %v5119 = vld [vmem:[#allocation6 + $0x18] sm:$0xff]
    %v5120 = vld [vmem:[#allocation6 + $0x20] sm:$0xff]
    %v5121 = vld [vmem:[#allocation6 + $0x28] sm:$0xff]
    %v5122 = vld [vmem:[#allocation6 + $0x30] sm:$0xff]
    %v5123 = vld [vmem:[#allocation6 + $0x38] sm:$0xff]
    %v5124 = vld [vmem:[#allocation6 + $0x40] sm:$0xff]
    %v5125 = vld [vmem:[#allocation6 + $0x48] sm:$0xff]
    %v5126 = vld [vmem:[#allocation6 + $0x50] sm:$0xff]
    %v5127 = vld [vmem:[#allocation6 + $0x58] sm:$0xff]
    %v5128 = vld [vmem:[#allocation6 + $0x60] sm:$0xff]
    %v5129 = vld [vmem:[#allocation6 + $0x68] sm:$0xff]
    %v5130 = vld [vmem:[#allocation6 + $0x70] sm:$0xff]
    %v5131 = vld [vmem:[#allocation6 + $0x78] sm:$0xff]
    %v5132 = vld [vmem:[#allocation6 + $0x80] sm:$0xff]
    %v5133 = vld [vmem:[#allocation6 + $0x88] sm:$0xff]
    %v5134 = vld [vmem:[#allocation6 + $0x90] sm:$0xff]
    %v5135 = vld [vmem:[#allocation6 + $0x98] sm:$0xff]
    %v5136 = vld [vmem:[#allocation6 + $0xa0] sm:$0xff]
    %v5137 = vld [vmem:[#allocation6 + $0xa8] sm:$0xff]
    %v5138 = vld [vmem:[#allocation6 + $0xb0] sm:$0xff]
    %v5139 = vld [vmem:[#allocation6 + $0xb8] sm:$0xff]
    %v5140 = vld [vmem:[#allocation6 + $0xc0] sm:$0xff]
    %v5141 = vld [vmem:[#allocation6 + $0xc8] sm:$0xff]
    %v5142 = vld [vmem:[#allocation6 + $0xd0] sm:$0xff]
    %v5143 = vld [vmem:[#allocation6 + $0xd8] sm:$0xff]
    %v5144 = vld [vmem:[#allocation6 + $0xe0] sm:$0xff]
    %v5145 = vld [vmem:[#allocation6 + $0xe8] sm:$0xff]
    %v5146 = vld [vmem:[#allocation6 + $0xf0] sm:$0xff]
    %v5147 = vld [vmem:[#allocation6 + $0xf8] sm:$0xff]
    %v5148 = vld [vmem:[#allocation6 + $0x100] sm:$0xff]
    %v5149 = vld [vmem:[#allocation6 + $0x108] sm:$0xff]
    %v5150 = vld [vmem:[#allocation6 + $0x110] sm:$0xff]
    %v5151 = vld [vmem:[#allocation6 + $0x118] sm:$0xff]
    %v5152 = vld [vmem:[#allocation6 + $0x120] sm:$0xff]
    %v5153 = vld [vmem:[#allocation6 + $0x128] sm:$0xff]
    %v5154 = vld [vmem:[#allocation6 + $0x130] sm:$0xff]
    %v5155 = vld [vmem:[#allocation6 + $0x138] sm:$0xff]
    %v5156 = vld [vmem:[#allocation6 + $0x140] sm:$0xff]
    %v5157 = vld [vmem:[#allocation6 + $0x148] sm:$0xff]
    %v5158 = vld [vmem:[#allocation6 + $0x150] sm:$0xff]
    %v5159 = vld [vmem:[#allocation6 + $0x158] sm:$0xff]
    %v5160 = vld [vmem:[#allocation6 + $0x160] sm:$0xff]
    %v5161 = vld [vmem:[#allocation6 + $0x168] sm:$0xff]
    %v5162 = vld [vmem:[#allocation6 + $0x170] sm:$0xff]
    %v5163 = vld [vmem:[#allocation6 + $0x178] sm:$0xff]
    %v5164 = vld [vmem:[#allocation6 + $0x180] sm:$0xff]
    %v5165 = vld [vmem:[#allocation6 + $0x188] sm:$0xff]
    %v5166 = vld [vmem:[#allocation6 + $0x190] sm:$0xff]
    %v5167 = vld [vmem:[#allocation6 + $0x198] sm:$0xff]
    %v5168 = vld [vmem:[#allocation6 + $0x1a0] sm:$0xff]
    %v5169 = vld [vmem:[#allocation6 + $0x1a8] sm:$0xff]
    %v5170 = vld [vmem:[#allocation6 + $0x1b0] sm:$0xff]
    %v5171 = vld [vmem:[#allocation6 + $0x1b8] sm:$0xff]
    %v5172 = vld [vmem:[#allocation6 + $0x1c0] sm:$0xff]
    %v5173 = vld [vmem:[#allocation6 + $0x1c8] sm:$0xff]
    %v5174 = vld [vmem:[#allocation6 + $0x1d0] sm:$0xff]
    %v5175 = vld [vmem:[#allocation6 + $0x1d8] sm:$0xff]
    %v5176 = vld [vmem:[#allocation6 + $0x1e0] sm:$0xff]
    %v5177 = vld [vmem:[#allocation6 + $0x1e8] sm:$0xff]
    %v5178 = vld [vmem:[#allocation6 + $0x1f0] sm:$0xff]
    %v5179 = vld [vmem:[#allocation6 + $0x1f8] sm:$0xff]
    %v5180 = vld [vmem:[%s5] sm:$0xff]
    %5181 = vmatprep.subr.mxu0 0.0
    %5182 = vmatpush1.msra.mxu0 %v5116
    %5183 = vmatprep.subr.mxu0 0.0
    %5184 = vmatpush1.msra.mxu0 %v5117
    %5185 = vmatprep.subr.mxu0 0.0
    %5186 = vmatpush1.msra.mxu0 %v5118
    %5187 = vmatprep.subr.mxu0 0.0
    %5188 = vmatpush1.msra.mxu0 %v5119
    %5189 = vmatprep.subr.mxu0 0.0
    %5190 = vmatpush1.msra.mxu0 %v5120
    %5191 = vmatprep.subr.mxu0 0.0
    %5192 = vmatpush1.msra.mxu0 %v5121
    %5193 = vmatprep.subr.mxu0 0.0
    %5194 = vmatpush1.msra.mxu0 %v5122
    %5195 = vmatprep.subr.mxu0 0.0
    %5196 = vmatpush1.msra.mxu0 %v5123
    %5197 = vmatprep.subr.mxu0 0.0
    %5198 = vmatpush1.msra.mxu0 %v5124
    %5199 = vmatprep.subr.mxu0 0.0
    %5200 = vmatpush1.msra.mxu0 %v5125
    %5201 = vmatprep.subr.mxu0 0.0
    %5202 = vmatpush1.msra.mxu0 %v5126
    %5203 = vmatprep.subr.mxu0 0.0
    %5204 = vmatpush1.msra.mxu0 %v5127
    %5205 = vmatprep.subr.mxu0 0.0
    %5206 = vmatpush1.msra.mxu0 %v5128
    %5207 = vmatprep.subr.mxu0 0.0
    %5208 = vmatpush1.msra.mxu0 %v5129
    %5209 = vmatprep.subr.mxu0 0.0
    %5210 = vmatpush1.msra.mxu0 %v5130
    %5211 = vmatprep.subr.mxu0 0.0
    %5212 = vmatpush1.msra.mxu0 %v5131
    %5213 = vmatprep.subr.mxu0 0.0
    %5214 = vmatpush1.msra.mxu0 %v5132
    %5215 = vmatprep.subr.mxu0 0.0
    %5216 = vmatpush1.msra.mxu0 %v5133
    %5217 = vmatprep.subr.mxu0 0.0
    %5218 = vmatpush1.msra.mxu0 %v5134
    %5219 = vmatprep.subr.mxu0 0.0
    %5220 = vmatpush1.msra.mxu0 %v5135
    %5221 = vmatprep.subr.mxu0 0.0
    %5222 = vmatpush1.msra.mxu0 %v5136
    %5223 = vmatprep.subr.mxu0 0.0
    %5224 = vmatpush1.msra.mxu0 %v5137
    %5225 = vmatprep.subr.mxu0 0.0
    %5226 = vmatpush1.msra.mxu0 %v5138
    %5227 = vmatprep.subr.mxu0 0.0
    %5228 = vmatpush1.msra.mxu0 %v5139
    %5229 = vmatprep.subr.mxu0 0.0
    %5230 = vmatpush1.msra.mxu0 %v5140
    %5231 = vmatprep.subr.mxu0 0.0
    %5232 = vmatpush1.msra.mxu0 %v5141
    %5233 = vmatprep.subr.mxu0 0.0
    %5234 = vmatpush1.msra.mxu0 %v5142
    %5235 = vmatprep.subr.mxu0 0.0
    %5236 = vmatpush1.msra.mxu0 %v5143
    %5237 = vmatprep.subr.mxu0 0.0
    %5238 = vmatpush1.msra.mxu0 %v5144
    %5239 = vmatprep.subr.mxu0 0.0
    %5240 = vmatpush1.msra.mxu0 %v5145
    %5241 = vmatprep.subr.mxu0 0.0
    %5242 = vmatpush1.msra.mxu0 %v5146
    %5243 = vmatprep.subr.mxu0 0.0
    %5244 = vmatpush1.msra.mxu0 %v5147
    %5245 = vmatprep.mubr.f32.mxu0 %v5113
    %5246 = vmatmul.mubr.f32.gmra.mrb[0].mxu0 %v5112
    %v5247 = vpop.f32.mrb[0].mxu0
    %v5248 = vadd.f32 %v5180, %v5247
    %v5249 = vpop.f32.mrb[0].mxu0
    %5250 = vdwg.mxu0
    %5251 = vmatprep.subr.mxu0 0.0
    %5252 = vmatpush1.msra.mxu0 %v5148
    %5253 = vmatprep.subr.mxu0 0.0
    %5254 = vmatpush1.msra.mxu0 %v5149
    %5255 = vmatprep.subr.mxu0 0.0
    %5256 = vmatpush1.msra.mxu0 %v5150
    %5257 = vmatprep.subr.mxu0 0.0
    %5258 = vmatpush1.msra.mxu0 %v5151
    %5259 = vmatprep.subr.mxu0 0.0
    %5260 = vmatpush1.msra.mxu0 %v5152
    %5261 = vmatprep.subr.mxu0 0.0
    %5262 = vmatpush1.msra.mxu0 %v5153
    %5263 = vmatprep.subr.mxu0 0.0
    %5264 = vmatpush1.msra.mxu0 %v5154
    %5265 = vmatprep.subr.mxu0 0.0
    %5266 = vmatpush1.msra.mxu0 %v5155
    %5267 = vmatprep.subr.mxu0 0.0
    %5268 = vmatpush1.msra.mxu0 %v5156
    %5269 = vmatprep.subr.mxu0 0.0
    %5270 = vmatpush1.msra.mxu0 %v5157
    %5271 = vmatprep.subr.mxu0 0.0
    %5272 = vmatpush1.msra.mxu0 %v5158
    %5273 = vmatprep.subr.mxu0 0.0
    %5274 = vmatpush1.msra.mxu0 %v5159
    %5275 = vmatprep.subr.mxu0 0.0
    %5276 = vmatpush1.msra.mxu0 %v5160
    %5277 = vmatprep.subr.mxu0 0.0
    %5278 = vmatpush1.msra.mxu0 %v5161
    %5279 = vmatprep.subr.mxu0 0.0
    %5280 = vmatpush1.msra.mxu0 %v5162
    %5281 = vmatprep.subr.mxu0 0.0
    %5282 = vmatpush1.msra.mxu0 %v5163
    %5283 = vmatprep.subr.mxu0 0.0
    %5284 = vmatpush1.msra.mxu0 %v5164
    %5285 = vmatprep.subr.mxu0 0.0
    %5286 = vmatpush1.msra.mxu0 %v5165
    %5287 = vmatprep.subr.mxu0 0.0
    %5288 = vmatpush1.msra.mxu0 %v5166
    %5289 = vmatprep.subr.mxu0 0.0
    %5290 = vmatpush1.msra.mxu0 %v5167
    %5291 = vmatprep.subr.mxu0 0.0
    %5292 = vmatpush1.msra.mxu0 %v5168
    %5293 = vmatprep.subr.mxu0 0.0
    %5294 = vmatpush1.msra.mxu0 %v5169
    %5295 = vmatprep.subr.mxu0 0.0
    %5296 = vmatpush1.msra.mxu0 %v5170
    %5297 = vmatprep.subr.mxu0 0.0
    %5298 = vmatpush1.msra.mxu0 %v5171
    %5299 = vmatprep.subr.mxu0 0.0
    %5300 = vmatpush1.msra.mxu0 %v5172
    %5301 = vmatprep.subr.mxu0 0.0
    %5302 = vmatpush1.msra.mxu0 %v5173
    %5303 = vmatprep.subr.mxu0 0.0
    %5304 = vmatpush1.msra.mxu0 %v5174
    %5305 = vmatprep.subr.mxu0 0.0
    %5306 = vmatpush1.msra.mxu0 %v5175
    %5307 = vmatprep.subr.mxu0 0.0
    %5308 = vmatpush1.msra.mxu0 %v5176
    %5309 = vmatprep.subr.mxu0 0.0
    %5310 = vmatpush1.msra.mxu0 %v5177
    %5311 = vmatprep.subr.mxu0 0.0
    %5312 = vmatpush1.msra.mxu0 %v5178
    %5313 = vmatprep.subr.mxu0 0.0
    %5314 = vmatpush1.msra.mxu0 %v5179
    %5315 = vmatprep.mubr.f32.mxu0 %v5115
    %5316 = vmatmul.mubr.f32.gmra.mrb[0].mxu0 %v5114
    %v5317 = vpop.f32.mrb[0].mxu0
    %v5318 = vadd.f32 %v5248, %v5317
    %v5319 = vpop.f32.mrb[0].mxu0
    %5320 = vdwg.mxu0
    %5321 = vst [vmem:[%s6] sm:$0xff] %v5318
    // Predicated region
    $region38: #{model_forward.1} parent=1 // pred_check
      _
    $region39: #{model_forward.1} parent=1 // pred_check_branch
      %5323 = sbr.rel (0) target = $region41
    $region40: #{model_forward.1} parent=1 // pred_region
      _
    $region41: #{model_forward.1} parent=1 // pred_fallthru
      _
    // Predicated region
    $region42: #{model_forward.1} parent=1 // pred_check
      _
    $region43: #{model_forward.1} parent=1 // pred_check_branch
      %5325 = sbr.rel (0) target = $region45
    $region44: #{model_forward.1} parent=1 // pred_region
      _
    $region45: #{model_forward.1} parent=1 // pred_fallthru
      _
    %5326 = vsyncpa [#allocation3], 1
    %5327 = vsyncpa [#allocation5], 1

</llo_original>
